<compile_context>
chip_gen: v6e
topology: v6e:2x2x1
jax: 0.10.0
libtpu: 0.0.40
codegen_flags: <defaults>
</compile_context>

<pallas_src>
import jax
import jax.numpy as jnp
from jax import lax
from jax.experimental import pallas as pl
from jax.experimental.pallas import tpu as pltpu


# ----------------------------------------------------------------------------
# Fused kernel factory.
# Ref order: x, then per layer [W_ih, W_hh, bias_x, b_hn], then
# w1, b1, w2, b2, w3, b3, then the output ref.
#   W_ih : (D_in, 3H)   fused input weights, gates [r | z | n]
#   W_hh : (H,    3H)   fused hidden weights
#   bias_x: (1, 3H)     = b_ih + [b_hr, b_hz, 0]   (folded into projection)
#   b_hn : (1, H)       = hidden bias of the n gate (must stay inside r*(...))
# ----------------------------------------------------------------------------
def make_fused_rnn_kernel(num_layers, T, H):
    def kernel(*refs):
        x_ref = refs[0]
        out_ref = refs[-1]
        params = refs[1:-1]
        B = x_ref.shape[0]

        # Load the whole (B, T, D_in) input once; it is tiny and stays on-chip.
        x = x_ref[...].astype(jnp.float32)
        seq = [x[:, t, :] for t in range(T)]          # T values of (B, D_in)

        for layer in range(num_layers):
            wih_ref, whh_ref, bx_ref, bhn_ref = params[4 * layer: 4 * layer + 4]
            W_ih = wih_ref[...]                       # (D_in, 3H)
            W_hh = whh_ref[...]                       # (H, 3H)
            Bx = bx_ref[...]                          # (1, 3H)
            Bhn = bhn_ref[...]                        # (1, H)

            # ---- Hoisted input projection: independent across t, off the
            # serial chain; the LLO scheduler can overlap these matmuls. ----
            xps = [
                jnp.dot(seq[t], W_ih, preferred_element_type=jnp.float32) + Bx
                for t in range(T)
            ]

            # ---- Serial recurrence: only h @ W_hh + cheap VPU/EUP math. ----
            h = jnp.zeros((B, H), jnp.float32)
            new_seq = []
            for t in range(T):                        # fully unrolled (T small)
                hp = jnp.dot(h, W_hh, preferred_element_type=jnp.float32)  # (B,3H)
                xp = xps[t]
                r = jax.nn.sigmoid(xp[:, 0:H] + hp[:, 0:H])
                z = jax.nn.sigmoid(xp[:, H:2 * H] + hp[:, H:2 * H])
                n = jnp.tanh(xp[:, 2 * H:3 * H] + r * (hp[:, 2 * H:3 * H] + Bhn))
                h = (1.0 - z) * n + z * h
                new_seq.append(h)
            seq = new_seq                             # feeds the next layer

        # ---- Fused MLP head on the last hidden state (never leaves VMEM). ----
        w1, b1, w2, b2, w3, b3 = params[4 * num_layers:]
        y = seq[-1]                                   # (B, H) last timestep
        y = jnp.maximum(
            jnp.dot(y, w1[...], preferred_element_type=jnp.float32) + b1[...], 0.0)
        y = jnp.maximum(
            jnp.dot(y, w2[...], preferred_element_type=jnp.float32) + b2[...], 0.0)
        y = jnp.dot(y, w3[...], preferred_element_type=jnp.float32) + b3[...]
        out_ref[...] = y.astype(out_ref.dtype)

    return kernel


# ----------------------------------------------------------------------------
# Wrapper: pre-combines biases, flattens params, launches the single kernel.
# x: (B, T, input_dim) batch_first.  Returns (B,) == out[:, 0].
# ----------------------------------------------------------------------------
def rnn_forward(x, gru_params, head_params):
    B, T, _ = x.shape
    H = gru_params[0][1].shape[0]
    O = head_params[4].shape[1]
    num_layers = len(gru_params)

    flat = [x.astype(jnp.float32)]
    for (W_ih, W_hh, b_ih, b_hh) in gru_params:
        # r/z gates: b_ih + b_hh combined; n gate: keep b_hn separate.
        bias_x = b_ih + jnp.concatenate(
            [b_hh[: 2 * H], jnp.zeros((H,), b_hh.dtype)])
        b_hn = b_hh[2 * H:]
        flat += [W_ih, W_hh, bias_x.reshape(1, 3 * H), b_hn.reshape(1, H)]
    w1, b1, w2, b2, w3, b3 = head_params
    flat += [w1, b1.reshape(1, -1), w2, b2.reshape(1, -1), w3, b3.reshape(1, -1)]

    kernel = make_fused_rnn_kernel(num_layers, T, H)
    out = pl.pallas_call(
        kernel,
        out_shape=jax.ShapeDtypeStruct((B, O), jnp.float32),
        in_specs=[pl.BlockSpec(memory_space=pltpu.MemorySpace.VMEM)] * len(flat),
        out_specs=pl.BlockSpec(memory_space=pltpu.MemorySpace.VMEM),
    )(*flat)
    return out[:, 0]


# ----------------------------------------------------------------------------
# Pure-JAX reference (PyTorch nn.GRU semantics, same fused weight layout).
# ----------------------------------------------------------------------------
def rnn_reference(x, gru_params, head_params):
    h_seq = x.astype(jnp.float32)                     # (B, T, D)
    for (W_ih, W_hh, b_ih, b_hh) in gru_params:
        B, T, _ = h_seq.shape
        H = W_hh.shape[0]

        def step(h, xt):
            xp = xt @ W_ih + b_ih                     # (B, 3H)
            hp = h @ W_hh + b_hh                      # (B, 3H)
            r = jax.nn.sigmoid(xp[:, :H] + hp[:, :H])
            z = jax.nn.sigmoid(xp[:, H:2 * H] + hp[:, H:2 * H])
            n = jnp.tanh(xp[:, 2 * H:] + r * hp[:, 2 * H:])
            hn = (1.0 - z) * n + z * h
            return hn, hn

        h0 = jnp.zeros((B, H), jnp.float32)
        _, ys = lax.scan(step, h0, jnp.transpose(h_seq, (1, 0, 2)))
        h_seq = jnp.transpose(ys, (1, 0, 2))
    h_last = h_seq[:, -1, :]
    w1, b1, w2, b2, w3, b3 = head_params
    y = jnp.maximum(h_last @ w1 + b1, 0.0)
    y = jnp.maximum(y @ w2 + b2, 0.0)
    y = y @ w3 + b3
    return y[:, 0]


# ----------------------------------------------------------------------------
# Deterministic PyTorch-style init (U(-1/sqrt(fan), 1/sqrt(fan))), fused layout.
# ----------------------------------------------------------------------------
def init_params(key, input_dim, hidden_dim, num_layers, output_dim):
    H = hidden_dim
    k_gru = float(1.0 / (H ** 0.5))
    gru_params = []
    for layer in range(num_layers):
        d_in = input_dim if layer == 0 else H
        key, k1, k2, k3, k4 = jax.random.split(key, 5)
        W_ih = jax.random.uniform(k1, (d_in, 3 * H), jnp.float32, -k_gru, k_gru)
        W_hh = jax.random.uniform(k2, (H, 3 * H), jnp.float32, -k_gru, k_gru)
        b_ih = jax.random.uniform(k3, (3 * H,), jnp.float32, -k_gru, k_gru)
        b_hh = jax.random.uniform(k4, (3 * H,), jnp.float32, -k_gru, k_gru)
        gru_params.append((W_ih, W_hh, b_ih, b_hh))

    def linear(key, fan_in, fan_out):
        k = float(1.0 / (fan_in ** 0.5))
        kw, kb = jax.random.split(key)
        w = jax.random.uniform(kw, (fan_in, fan_out), jnp.float32, -k, k)
        b = jax.random.uniform(kb, (fan_out,), jnp.float32, -k, k)
        return w, b

    key, kf1, kf2, kf3 = jax.random.split(key, 4)
    w1, b1 = linear(kf1, H, H)
    w2, b2 = linear(kf2, H, H)
    w3, b3 = linear(kf3, H, output_dim)
    return gru_params, (w1, b1, w2, b2, w3, b3)


if __name__ == "__main__":
    B, T = 2, 8
    input_dim, hidden_dim, num_layers, output_dim = 16, 32, 2, 8

    key = jax.random.PRNGKey(0)
    key, kx, kp = jax.random.split(key, 3)
    x = jax.random.normal(kx, (B, T, input_dim), jnp.float32)
    gru_params, head_params = init_params(kp, input_dim, hidden_dim,
                                          num_layers, output_dim)

    out = rnn_forward(x, gru_params, head_params)
    out = jax.block_until_ready(out)
    assert out.shape == (B,), out.shape

    ref = rnn_reference(x, gru_params, head_params)
    assert jnp.allclose(out, ref, rtol=1e-4, atol=1e-4), (out, ref)

    print("KERNEL_OK")
</pallas_src>

<mosaic_0001>
module attributes {stable_mosaic.version = 11 : i64} {
  func.func @kernel(%arg0: memref<2x8x16xf32, #tpu.memory_space<vmem>>, %arg1: memref<16x96xf32, #tpu.memory_space<vmem>>, %arg2: memref<32x96xf32, #tpu.memory_space<vmem>>, %arg3: memref<1x96xf32, #tpu.memory_space<vmem>>, %arg4: memref<1x32xf32, #tpu.memory_space<vmem>>, %arg5: memref<32x96xf32, #tpu.memory_space<vmem>>, %arg6: memref<32x96xf32, #tpu.memory_space<vmem>>, %arg7: memref<1x96xf32, #tpu.memory_space<vmem>>, %arg8: memref<1x32xf32, #tpu.memory_space<vmem>>, %arg9: memref<32x32xf32, #tpu.memory_space<vmem>>, %arg10: memref<1x32xf32, #tpu.memory_space<vmem>>, %arg11: memref<32x32xf32, #tpu.memory_space<vmem>>, %arg12: memref<1x32xf32, #tpu.memory_space<vmem>>, %arg13: memref<32x8xf32, #tpu.memory_space<vmem>>, %arg14: memref<1x8xf32, #tpu.memory_space<vmem>>, %arg15: memref<2x8xf32, #tpu.memory_space<vmem>>) attributes {dimension_semantics = [], scalar_prefetch = 0 : i64, scratch_operands = 0 : i64, tpu.core_type = #tpu.core_type<tc>} {
    %c0 = arith.constant 0 : index
    %c0_0 = arith.constant 0 : index
    %c0_1 = arith.constant 0 : index
    %0 = vector.load %arg0[%c0, %c0_0, %c0_1] : memref<2x8x16xf32, #tpu.memory_space<vmem>>, vector<2x8x16xf32>
    %1 = vector.extract_strided_slice %0 {offsets = [0, 0, 0], sizes = [2, 1, 16], strides = [1, 1, 1]} : vector<2x8x16xf32> to vector<2x1x16xf32>
    %2 = vector.shape_cast %1 : vector<2x1x16xf32> to vector<2x16xf32>
    %3 = vector.extract_strided_slice %0 {offsets = [0, 1, 0], sizes = [2, 1, 16], strides = [1, 1, 1]} : vector<2x8x16xf32> to vector<2x1x16xf32>
    %4 = vector.shape_cast %3 : vector<2x1x16xf32> to vector<2x16xf32>
    %5 = vector.extract_strided_slice %0 {offsets = [0, 2, 0], sizes = [2, 1, 16], strides = [1, 1, 1]} : vector<2x8x16xf32> to vector<2x1x16xf32>
    %6 = vector.shape_cast %5 : vector<2x1x16xf32> to vector<2x16xf32>
    %7 = vector.extract_strided_slice %0 {offsets = [0, 3, 0], sizes = [2, 1, 16], strides = [1, 1, 1]} : vector<2x8x16xf32> to vector<2x1x16xf32>
    %8 = vector.shape_cast %7 : vector<2x1x16xf32> to vector<2x16xf32>
    %9 = vector.extract_strided_slice %0 {offsets = [0, 4, 0], sizes = [2, 1, 16], strides = [1, 1, 1]} : vector<2x8x16xf32> to vector<2x1x16xf32>
    %10 = vector.shape_cast %9 : vector<2x1x16xf32> to vector<2x16xf32>
    %11 = vector.extract_strided_slice %0 {offsets = [0, 5, 0], sizes = [2, 1, 16], strides = [1, 1, 1]} : vector<2x8x16xf32> to vector<2x1x16xf32>
    %12 = vector.shape_cast %11 : vector<2x1x16xf32> to vector<2x16xf32>
    %13 = vector.extract_strided_slice %0 {offsets = [0, 6, 0], sizes = [2, 1, 16], strides = [1, 1, 1]} : vector<2x8x16xf32> to vector<2x1x16xf32>
    %14 = vector.shape_cast %13 : vector<2x1x16xf32> to vector<2x16xf32>
    %15 = vector.extract_strided_slice %0 {offsets = [0, 7, 0], sizes = [2, 1, 16], strides = [1, 1, 1]} : vector<2x8x16xf32> to vector<2x1x16xf32>
    %16 = vector.shape_cast %15 : vector<2x1x16xf32> to vector<2x16xf32>
    %c0_2 = arith.constant 0 : index
    %c0_3 = arith.constant 0 : index
    %17 = vector.load %arg1[%c0_2, %c0_3] : memref<16x96xf32, #tpu.memory_space<vmem>>, vector<16x96xf32>
    %c0_4 = arith.constant 0 : index
    %c0_5 = arith.constant 0 : index
    %18 = vector.load %arg2[%c0_4, %c0_5] : memref<32x96xf32, #tpu.memory_space<vmem>>, vector<32x96xf32>
    %c0_6 = arith.constant 0 : index
    %c0_7 = arith.constant 0 : index
    %19 = vector.load %arg3[%c0_6, %c0_7] : memref<1x96xf32, #tpu.memory_space<vmem>>, vector<1x96xf32>
    %c0_8 = arith.constant 0 : index
    %c0_9 = arith.constant 0 : index
    %20 = vector.load %arg4[%c0_8, %c0_9] : memref<1x32xf32, #tpu.memory_space<vmem>>, vector<1x32xf32>
    %cst = arith.constant dense<0.000000e+00> : vector<2x96xf32>
    %21 = tpu.matmul %2, %17, %cst {dimension_numbers = #tpu.dot_dimension_numbers<[1], [0], [0], [1], [0, 0, 1, 1], [], []>} : vector<2x16xf32>, vector<16x96xf32>, vector<2x96xf32> -> vector<2x96xf32>
    %22 = vector.broadcast %19 : vector<1x96xf32> to vector<2x96xf32>
    %23 = arith.addf %21, %22 : vector<2x96xf32>
    %cst_10 = arith.constant dense<0.000000e+00> : vector<2x96xf32>
    %24 = tpu.matmul %4, %17, %cst_10 {dimension_numbers = #tpu.dot_dimension_numbers<[1], [0], [0], [1], [0, 0, 1, 1], [], []>} : vector<2x16xf32>, vector<16x96xf32>, vector<2x96xf32> -> vector<2x96xf32>
    %25 = vector.broadcast %19 : vector<1x96xf32> to vector<2x96xf32>
    %26 = arith.addf %24, %25 : vector<2x96xf32>
    %cst_11 = arith.constant dense<0.000000e+00> : vector<2x96xf32>
    %27 = tpu.matmul %6, %17, %cst_11 {dimension_numbers = #tpu.dot_dimension_numbers<[1], [0], [0], [1], [0, 0, 1, 1], [], []>} : vector<2x16xf32>, vector<16x96xf32>, vector<2x96xf32> -> vector<2x96xf32>
    %28 = vector.broadcast %19 : vector<1x96xf32> to vector<2x96xf32>
    %29 = arith.addf %27, %28 : vector<2x96xf32>
    %cst_12 = arith.constant dense<0.000000e+00> : vector<2x96xf32>
    %30 = tpu.matmul %8, %17, %cst_12 {dimension_numbers = #tpu.dot_dimension_numbers<[1], [0], [0], [1], [0, 0, 1, 1], [], []>} : vector<2x16xf32>, vector<16x96xf32>, vector<2x96xf32> -> vector<2x96xf32>
    %31 = vector.broadcast %19 : vector<1x96xf32> to vector<2x96xf32>
    %32 = arith.addf %30, %31 : vector<2x96xf32>
    %cst_13 = arith.constant dense<0.000000e+00> : vector<2x96xf32>
    %33 = tpu.matmul %10, %17, %cst_13 {dimension_numbers = #tpu.dot_dimension_numbers<[1], [0], [0], [1], [0, 0, 1, 1], [], []>} : vector<2x16xf32>, vector<16x96xf32>, vector<2x96xf32> -> vector<2x96xf32>
    %34 = vector.broadcast %19 : vector<1x96xf32> to vector<2x96xf32>
    %35 = arith.addf %33, %34 : vector<2x96xf32>
    %cst_14 = arith.constant dense<0.000000e+00> : vector<2x96xf32>
    %36 = tpu.matmul %12, %17, %cst_14 {dimension_numbers = #tpu.dot_dimension_numbers<[1], [0], [0], [1], [0, 0, 1, 1], [], []>} : vector<2x16xf32>, vector<16x96xf32>, vector<2x96xf32> -> vector<2x96xf32>
    %37 = vector.broadcast %19 : vector<1x96xf32> to vector<2x96xf32>
    %38 = arith.addf %36, %37 : vector<2x96xf32>
    %cst_15 = arith.constant dense<0.000000e+00> : vector<2x96xf32>
    %39 = tpu.matmul %14, %17, %cst_15 {dimension_numbers = #tpu.dot_dimension_numbers<[1], [0], [0], [1], [0, 0, 1, 1], [], []>} : vector<2x16xf32>, vector<16x96xf32>, vector<2x96xf32> -> vector<2x96xf32>
    %40 = vector.broadcast %19 : vector<1x96xf32> to vector<2x96xf32>
    %41 = arith.addf %39, %40 : vector<2x96xf32>
    %cst_16 = arith.constant dense<0.000000e+00> : vector<2x96xf32>
    %42 = tpu.matmul %16, %17, %cst_16 {dimension_numbers = #tpu.dot_dimension_numbers<[1], [0], [0], [1], [0, 0, 1, 1], [], []>} : vector<2x16xf32>, vector<16x96xf32>, vector<2x96xf32> -> vector<2x96xf32>
    %43 = vector.broadcast %19 : vector<1x96xf32> to vector<2x96xf32>
    %44 = arith.addf %42, %43 : vector<2x96xf32>
    %cst_17 = arith.constant 0.000000e+00 : f32
    %45 = vector.broadcast %cst_17 : f32 to vector<2x32xf32>
    %cst_18 = arith.constant dense<0.000000e+00> : vector<2x96xf32>
    %46 = tpu.matmul %45, %18, %cst_18 {dimension_numbers = #tpu.dot_dimension_numbers<[1], [0], [0], [1], [0, 0, 1, 1], [], []>} : vector<2x32xf32>, vector<32x96xf32>, vector<2x96xf32> -> vector<2x96xf32>
    %47 = vector.extract_strided_slice %23 {offsets = [0, 0], sizes = [2, 32], strides = [1, 1]} : vector<2x96xf32> to vector<2x32xf32>
    %48 = vector.extract_strided_slice %46 {offsets = [0, 0], sizes = [2, 32], strides = [1, 1]} : vector<2x96xf32> to vector<2x32xf32>
    %49 = arith.addf %47, %48 : vector<2x32xf32>
    %50 = arith.negf %49 : vector<2x32xf32>
    %51 = math.exp %50 : vector<2x32xf32>
    %cst_19 = arith.constant 1.000000e+00 : f32
    %52 = vector.broadcast %cst_19 : f32 to vector<2x32xf32>
    %53 = arith.addf %52, %51 : vector<2x32xf32>
    %54 = arith.divf %52, %53 : vector<2x32xf32>
    %55 = vector.extract_strided_slice %23 {offsets = [0, 32], sizes = [2, 32], strides = [1, 1]} : vector<2x96xf32> to vector<2x32xf32>
    %56 = vector.extract_strided_slice %46 {offsets = [0, 32], sizes = [2, 32], strides = [1, 1]} : vector<2x96xf32> to vector<2x32xf32>
    %57 = arith.addf %55, %56 : vector<2x32xf32>
    %58 = arith.negf %57 : vector<2x32xf32>
    %59 = math.exp %58 : vector<2x32xf32>
    %cst_20 = arith.constant 1.000000e+00 : f32
    %60 = vector.broadcast %cst_20 : f32 to vector<2x32xf32>
    %61 = arith.addf %60, %59 : vector<2x32xf32>
    %62 = arith.divf %60, %61 : vector<2x32xf32>
    %63 = vector.extract_strided_slice %23 {offsets = [0, 64], sizes = [2, 32], strides = [1, 1]} : vector<2x96xf32> to vector<2x32xf32>
    %64 = vector.extract_strided_slice %46 {offsets = [0, 64], sizes = [2, 32], strides = [1, 1]} : vector<2x96xf32> to vector<2x32xf32>
    %65 = vector.broadcast %20 : vector<1x32xf32> to vector<2x32xf32>
    %66 = arith.addf %64, %65 : vector<2x32xf32>
    %67 = arith.mulf %54, %66 : vector<2x32xf32>
    %68 = arith.addf %63, %67 : vector<2x32xf32>
    %69 = math.tanh %68 : vector<2x32xf32>
    %cst_21 = arith.constant 1.000000e+00 : f32
    %70 = vector.broadcast %cst_21 : f32 to vector<2x32xf32>
    %71 = arith.subf %70, %62 : vector<2x32xf32>
    %72 = arith.mulf %71, %69 : vector<2x32xf32>
    %73 = arith.mulf %62, %45 : vector<2x32xf32>
    %74 = arith.addf %72, %73 : vector<2x32xf32>
    %cst_22 = arith.constant dense<0.000000e+00> : vector<2x96xf32>
    %75 = tpu.matmul %74, %18, %cst_22 {dimension_numbers = #tpu.dot_dimension_numbers<[1], [0], [0], [1], [0, 0, 1, 1], [], []>} : vector<2x32xf32>, vector<32x96xf32>, vector<2x96xf32> -> vector<2x96xf32>
    %76 = vector.extract_strided_slice %26 {offsets = [0, 0], sizes = [2, 32], strides = [1, 1]} : vector<2x96xf32> to vector<2x32xf32>
    %77 = vector.extract_strided_slice %75 {offsets = [0, 0], sizes = [2, 32], strides = [1, 1]} : vector<2x96xf32> to vector<2x32xf32>
    %78 = arith.addf %76, %77 : vector<2x32xf32>
    %79 = arith.negf %78 : vector<2x32xf32>
    %80 = math.exp %79 : vector<2x32xf32>
    %cst_23 = arith.constant 1.000000e+00 : f32
    %81 = vector.broadcast %cst_23 : f32 to vector<2x32xf32>
    %82 = arith.addf %81, %80 : vector<2x32xf32>
    %83 = arith.divf %81, %82 : vector<2x32xf32>
    %84 = vector.extract_strided_slice %26 {offsets = [0, 32], sizes = [2, 32], strides = [1, 1]} : vector<2x96xf32> to vector<2x32xf32>
    %85 = vector.extract_strided_slice %75 {offsets = [0, 32], sizes = [2, 32], strides = [1, 1]} : vector<2x96xf32> to vector<2x32xf32>
    %86 = arith.addf %84, %85 : vector<2x32xf32>
    %87 = arith.negf %86 : vector<2x32xf32>
    %88 = math.exp %87 : vector<2x32xf32>
    %cst_24 = arith.constant 1.000000e+00 : f32
    %89 = vector.broadcast %cst_24 : f32 to vector<2x32xf32>
    %90 = arith.addf %89, %88 : vector<2x32xf32>
    %91 = arith.divf %89, %90 : vector<2x32xf32>
    %92 = vector.extract_strided_slice %26 {offsets = [0, 64], sizes = [2, 32], strides = [1, 1]} : vector<2x96xf32> to vector<2x32xf32>
    %93 = vector.extract_strided_slice %75 {offsets = [0, 64], sizes = [2, 32], strides = [1, 1]} : vector<2x96xf32> to vector<2x32xf32>
    %94 = vector.broadcast %20 : vector<1x32xf32> to vector<2x32xf32>
    %95 = arith.addf %93, %94 : vector<2x32xf32>
    %96 = arith.mulf %83, %95 : vector<2x32xf32>
    %97 = arith.addf %92, %96 : vector<2x32xf32>
    %98 = math.tanh %97 : vector<2x32xf32>
    %cst_25 = arith.constant 1.000000e+00 : f32
    %99 = vector.broadcast %cst_25 : f32 to vector<2x32xf32>
    %100 = arith.subf %99, %91 : vector<2x32xf32>
    %101 = arith.mulf %100, %98 : vector<2x32xf32>
    %102 = arith.mulf %91, %74 : vector<2x32xf32>
    %103 = arith.addf %101, %102 : vector<2x32xf32>
    %cst_26 = arith.constant dense<0.000000e+00> : vector<2x96xf32>
    %104 = tpu.matmul %103, %18, %cst_26 {dimension_numbers = #tpu.dot_dimension_numbers<[1], [0], [0], [1], [0, 0, 1, 1], [], []>} : vector<2x32xf32>, vector<32x96xf32>, vector<2x96xf32> -> vector<2x96xf32>
    %105 = vector.extract_strided_slice %29 {offsets = [0, 0], sizes = [2, 32], strides = [1, 1]} : vector<2x96xf32> to vector<2x32xf32>
    %106 = vector.extract_strided_slice %104 {offsets = [0, 0], sizes = [2, 32], strides = [1, 1]} : vector<2x96xf32> to vector<2x32xf32>
    %107 = arith.addf %105, %106 : vector<2x32xf32>
    %108 = arith.negf %107 : vector<2x32xf32>
    %109 = math.exp %108 : vector<2x32xf32>
    %cst_27 = arith.constant 1.000000e+00 : f32
    %110 = vector.broadcast %cst_27 : f32 to vector<2x32xf32>
    %111 = arith.addf %110, %109 : vector<2x32xf32>
    %112 = arith.divf %110, %111 : vector<2x32xf32>
    %113 = vector.extract_strided_slice %29 {offsets = [0, 32], sizes = [2, 32], strides = [1, 1]} : vector<2x96xf32> to vector<2x32xf32>
    %114 = vector.extract_strided_slice %104 {offsets = [0, 32], sizes = [2, 32], strides = [1, 1]} : vector<2x96xf32> to vector<2x32xf32>
    %115 = arith.addf %113, %114 : vector<2x32xf32>
    %116 = arith.negf %115 : vector<2x32xf32>
    %117 = math.exp %116 : vector<2x32xf32>
    %cst_28 = arith.constant 1.000000e+00 : f32
    %118 = vector.broadcast %cst_28 : f32 to vector<2x32xf32>
    %119 = arith.addf %118, %117 : vector<2x32xf32>
    %120 = arith.divf %118, %119 : vector<2x32xf32>
    %121 = vector.extract_strided_slice %29 {offsets = [0, 64], sizes = [2, 32], strides = [1, 1]} : vector<2x96xf32> to vector<2x32xf32>
    %122 = vector.extract_strided_slice %104 {offsets = [0, 64], sizes = [2, 32], strides = [1, 1]} : vector<2x96xf32> to vector<2x32xf32>
    %123 = vector.broadcast %20 : vector<1x32xf32> to vector<2x32xf32>
    %124 = arith.addf %122, %123 : vector<2x32xf32>
    %125 = arith.mulf %112, %124 : vector<2x32xf32>
    %126 = arith.addf %121, %125 : vector<2x32xf32>
    %127 = math.tanh %126 : vector<2x32xf32>
    %cst_29 = arith.constant 1.000000e+00 : f32
    %128 = vector.broadcast %cst_29 : f32 to vector<2x32xf32>
    %129 = arith.subf %128, %120 : vector<2x32xf32>
    %130 = arith.mulf %129, %127 : vector<2x32xf32>
    %131 = arith.mulf %120, %103 : vector<2x32xf32>
    %132 = arith.addf %130, %131 : vector<2x32xf32>
    %cst_30 = arith.constant dense<0.000000e+00> : vector<2x96xf32>
    %133 = tpu.matmul %132, %18, %cst_30 {dimension_numbers = #tpu.dot_dimension_numbers<[1], [0], [0], [1], [0, 0, 1, 1], [], []>} : vector<2x32xf32>, vector<32x96xf32>, vector<2x96xf32> -> vector<2x96xf32>
    %134 = vector.extract_strided_slice %32 {offsets = [0, 0], sizes = [2, 32], strides = [1, 1]} : vector<2x96xf32> to vector<2x32xf32>
    %135 = vector.extract_strided_slice %133 {offsets = [0, 0], sizes = [2, 32], strides = [1, 1]} : vector<2x96xf32> to vector<2x32xf32>
    %136 = arith.addf %134, %135 : vector<2x32xf32>
    %137 = arith.negf %136 : vector<2x32xf32>
    %138 = math.exp %137 : vector<2x32xf32>
    %cst_31 = arith.constant 1.000000e+00 : f32
    %139 = vector.broadcast %cst_31 : f32 to vector<2x32xf32>
    %140 = arith.addf %139, %138 : vector<2x32xf32>
    %141 = arith.divf %139, %140 : vector<2x32xf32>
    %142 = vector.extract_strided_slice %32 {offsets = [0, 32], sizes = [2, 32], strides = [1, 1]} : vector<2x96xf32> to vector<2x32xf32>
    %143 = vector.extract_strided_slice %133 {offsets = [0, 32], sizes = [2, 32], strides = [1, 1]} : vector<2x96xf32> to vector<2x32xf32>
    %144 = arith.addf %142, %143 : vector<2x32xf32>
    %145 = arith.negf %144 : vector<2x32xf32>
    %146 = math.exp %145 : vector<2x32xf32>
    %cst_32 = arith.constant 1.000000e+00 : f32
    %147 = vector.broadcast %cst_32 : f32 to vector<2x32xf32>
    %148 = arith.addf %147, %146 : vector<2x32xf32>
    %149 = arith.divf %147, %148 : vector<2x32xf32>
    %150 = vector.extract_strided_slice %32 {offsets = [0, 64], sizes = [2, 32], strides = [1, 1]} : vector<2x96xf32> to vector<2x32xf32>
    %151 = vector.extract_strided_slice %133 {offsets = [0, 64], sizes = [2, 32], strides = [1, 1]} : vector<2x96xf32> to vector<2x32xf32>
    %152 = vector.broadcast %20 : vector<1x32xf32> to vector<2x32xf32>
    %153 = arith.addf %151, %152 : vector<2x32xf32>
    %154 = arith.mulf %141, %153 : vector<2x32xf32>
    %155 = arith.addf %150, %154 : vector<2x32xf32>
    %156 = math.tanh %155 : vector<2x32xf32>
    %cst_33 = arith.constant 1.000000e+00 : f32
    %157 = vector.broadcast %cst_33 : f32 to vector<2x32xf32>
    %158 = arith.subf %157, %149 : vector<2x32xf32>
    %159 = arith.mulf %158, %156 : vector<2x32xf32>
    %160 = arith.mulf %149, %132 : vector<2x32xf32>
    %161 = arith.addf %159, %160 : vector<2x32xf32>
    %cst_34 = arith.constant dense<0.000000e+00> : vector<2x96xf32>
    %162 = tpu.matmul %161, %18, %cst_34 {dimension_numbers = #tpu.dot_dimension_numbers<[1], [0], [0], [1], [0, 0, 1, 1], [], []>} : vector<2x32xf32>, vector<32x96xf32>, vector<2x96xf32> -> vector<2x96xf32>
    %163 = vector.extract_strided_slice %35 {offsets = [0, 0], sizes = [2, 32], strides = [1, 1]} : vector<2x96xf32> to vector<2x32xf32>
    %164 = vector.extract_strided_slice %162 {offsets = [0, 0], sizes = [2, 32], strides = [1, 1]} : vector<2x96xf32> to vector<2x32xf32>
    %165 = arith.addf %163, %164 : vector<2x32xf32>
    %166 = arith.negf %165 : vector<2x32xf32>
    %167 = math.exp %166 : vector<2x32xf32>
    %cst_35 = arith.constant 1.000000e+00 : f32
    %168 = vector.broadcast %cst_35 : f32 to vector<2x32xf32>
    %169 = arith.addf %168, %167 : vector<2x32xf32>
    %170 = arith.divf %168, %169 : vector<2x32xf32>
    %171 = vector.extract_strided_slice %35 {offsets = [0, 32], sizes = [2, 32], strides = [1, 1]} : vector<2x96xf32> to vector<2x32xf32>
    %172 = vector.extract_strided_slice %162 {offsets = [0, 32], sizes = [2, 32], strides = [1, 1]} : vector<2x96xf32> to vector<2x32xf32>
    %173 = arith.addf %171, %172 : vector<2x32xf32>
    %174 = arith.negf %173 : vector<2x32xf32>
    %175 = math.exp %174 : vector<2x32xf32>
    %cst_36 = arith.constant 1.000000e+00 : f32
    %176 = vector.broadcast %cst_36 : f32 to vector<2x32xf32>
    %177 = arith.addf %176, %175 : vector<2x32xf32>
    %178 = arith.divf %176, %177 : vector<2x32xf32>
    %179 = vector.extract_strided_slice %35 {offsets = [0, 64], sizes = [2, 32], strides = [1, 1]} : vector<2x96xf32> to vector<2x32xf32>
    %180 = vector.extract_strided_slice %162 {offsets = [0, 64], sizes = [2, 32], strides = [1, 1]} : vector<2x96xf32> to vector<2x32xf32>
    %181 = vector.broadcast %20 : vector<1x32xf32> to vector<2x32xf32>
    %182 = arith.addf %180, %181 : vector<2x32xf32>
    %183 = arith.mulf %170, %182 : vector<2x32xf32>
    %184 = arith.addf %179, %183 : vector<2x32xf32>
    %185 = math.tanh %184 : vector<2x32xf32>
    %cst_37 = arith.constant 1.000000e+00 : f32
    %186 = vector.broadcast %cst_37 : f32 to vector<2x32xf32>
    %187 = arith.subf %186, %178 : vector<2x32xf32>
    %188 = arith.mulf %187, %185 : vector<2x32xf32>
    %189 = arith.mulf %178, %161 : vector<2x32xf32>
    %190 = arith.addf %188, %189 : vector<2x32xf32>
    %cst_38 = arith.constant dense<0.000000e+00> : vector<2x96xf32>
    %191 = tpu.matmul %190, %18, %cst_38 {dimension_numbers = #tpu.dot_dimension_numbers<[1], [0], [0], [1], [0, 0, 1, 1], [], []>} : vector<2x32xf32>, vector<32x96xf32>, vector<2x96xf32> -> vector<2x96xf32>
    %192 = vector.extract_strided_slice %38 {offsets = [0, 0], sizes = [2, 32], strides = [1, 1]} : vector<2x96xf32> to vector<2x32xf32>
    %193 = vector.extract_strided_slice %191 {offsets = [0, 0], sizes = [2, 32], strides = [1, 1]} : vector<2x96xf32> to vector<2x32xf32>
    %194 = arith.addf %192, %193 : vector<2x32xf32>
    %195 = arith.negf %194 : vector<2x32xf32>
    %196 = math.exp %195 : vector<2x32xf32>
    %cst_39 = arith.constant 1.000000e+00 : f32
    %197 = vector.broadcast %cst_39 : f32 to vector<2x32xf32>
    %198 = arith.addf %197, %196 : vector<2x32xf32>
    %199 = arith.divf %197, %198 : vector<2x32xf32>
    %200 = vector.extract_strided_slice %38 {offsets = [0, 32], sizes = [2, 32], strides = [1, 1]} : vector<2x96xf32> to vector<2x32xf32>
    %201 = vector.extract_strided_slice %191 {offsets = [0, 32], sizes = [2, 32], strides = [1, 1]} : vector<2x96xf32> to vector<2x32xf32>
    %202 = arith.addf %200, %201 : vector<2x32xf32>
    %203 = arith.negf %202 : vector<2x32xf32>
    %204 = math.exp %203 : vector<2x32xf32>
    %cst_40 = arith.constant 1.000000e+00 : f32
    %205 = vector.broadcast %cst_40 : f32 to vector<2x32xf32>
    %206 = arith.addf %205, %204 : vector<2x32xf32>
    %207 = arith.divf %205, %206 : vector<2x32xf32>
    %208 = vector.extract_strided_slice %38 {offsets = [0, 64], sizes = [2, 32], strides = [1, 1]} : vector<2x96xf32> to vector<2x32xf32>
    %209 = vector.extract_strided_slice %191 {offsets = [0, 64], sizes = [2, 32], strides = [1, 1]} : vector<2x96xf32> to vector<2x32xf32>
    %210 = vector.broadcast %20 : vector<1x32xf32> to vector<2x32xf32>
    %211 = arith.addf %209, %210 : vector<2x32xf32>
    %212 = arith.mulf %199, %211 : vector<2x32xf32>
    %213 = arith.addf %208, %212 : vector<2x32xf32>
    %214 = math.tanh %213 : vector<2x32xf32>
    %cst_41 = arith.constant 1.000000e+00 : f32
    %215 = vector.broadcast %cst_41 : f32 to vector<2x32xf32>
    %216 = arith.subf %215, %207 : vector<2x32xf32>
    %217 = arith.mulf %216, %214 : vector<2x32xf32>
    %218 = arith.mulf %207, %190 : vector<2x32xf32>
    %219 = arith.addf %217, %218 : vector<2x32xf32>
    %cst_42 = arith.constant dense<0.000000e+00> : vector<2x96xf32>
    %220 = tpu.matmul %219, %18, %cst_42 {dimension_numbers = #tpu.dot_dimension_numbers<[1], [0], [0], [1], [0, 0, 1, 1], [], []>} : vector<2x32xf32>, vector<32x96xf32>, vector<2x96xf32> -> vector<2x96xf32>
    %221 = vector.extract_strided_slice %41 {offsets = [0, 0], sizes = [2, 32], strides = [1, 1]} : vector<2x96xf32> to vector<2x32xf32>
    %222 = vector.extract_strided_slice %220 {offsets = [0, 0], sizes = [2, 32], strides = [1, 1]} : vector<2x96xf32> to vector<2x32xf32>
    %223 = arith.addf %221, %222 : vector<2x32xf32>
    %224 = arith.negf %223 : vector<2x32xf32>
    %225 = math.exp %224 : vector<2x32xf32>
    %cst_43 = arith.constant 1.000000e+00 : f32
    %226 = vector.broadcast %cst_43 : f32 to vector<2x32xf32>
    %227 = arith.addf %226, %225 : vector<2x32xf32>
    %228 = arith.divf %226, %227 : vector<2x32xf32>
    %229 = vector.extract_strided_slice %41 {offsets = [0, 32], sizes = [2, 32], strides = [1, 1]} : vector<2x96xf32> to vector<2x32xf32>
    %230 = vector.extract_strided_slice %220 {offsets = [0, 32], sizes = [2, 32], strides = [1, 1]} : vector<2x96xf32> to vector<2x32xf32>
    %231 = arith.addf %229, %230 : vector<2x32xf32>
    %232 = arith.negf %231 : vector<2x32xf32>
    %233 = math.exp %232 : vector<2x32xf32>
    %cst_44 = arith.constant 1.000000e+00 : f32
    %234 = vector.broadcast %cst_44 : f32 to vector<2x32xf32>
    %235 = arith.addf %234, %233 : vector<2x32xf32>
    %236 = arith.divf %234, %235 : vector<2x32xf32>
    %237 = vector.extract_strided_slice %41 {offsets = [0, 64], sizes = [2, 32], strides = [1, 1]} : vector<2x96xf32> to vector<2x32xf32>
    %238 = vector.extract_strided_slice %220 {offsets = [0, 64], sizes = [2, 32], strides = [1, 1]} : vector<2x96xf32> to vector<2x32xf32>
    %239 = vector.broadcast %20 : vector<1x32xf32> to vector<2x32xf32>
    %240 = arith.addf %238, %239 : vector<2x32xf32>
    %241 = arith.mulf %228, %240 : vector<2x32xf32>
    %242 = arith.addf %237, %241 : vector<2x32xf32>
    %243 = math.tanh %242 : vector<2x32xf32>
    %cst_45 = arith.constant 1.000000e+00 : f32
    %244 = vector.broadcast %cst_45 : f32 to vector<2x32xf32>
    %245 = arith.subf %244, %236 : vector<2x32xf32>
    %246 = arith.mulf %245, %243 : vector<2x32xf32>
    %247 = arith.mulf %236, %219 : vector<2x32xf32>
    %248 = arith.addf %246, %247 : vector<2x32xf32>
    %cst_46 = arith.constant dense<0.000000e+00> : vector<2x96xf32>
    %249 = tpu.matmul %248, %18, %cst_46 {dimension_numbers = #tpu.dot_dimension_numbers<[1], [0], [0], [1], [0, 0, 1, 1], [], []>} : vector<2x32xf32>, vector<32x96xf32>, vector<2x96xf32> -> vector<2x96xf32>
    %250 = vector.extract_strided_slice %44 {offsets = [0, 0], sizes = [2, 32], strides = [1, 1]} : vector<2x96xf32> to vector<2x32xf32>
    %251 = vector.extract_strided_slice %249 {offsets = [0, 0], sizes = [2, 32], strides = [1, 1]} : vector<2x96xf32> to vector<2x32xf32>
    %252 = arith.addf %250, %251 : vector<2x32xf32>
    %253 = arith.negf %252 : vector<2x32xf32>
    %254 = math.exp %253 : vector<2x32xf32>
    %cst_47 = arith.constant 1.000000e+00 : f32
    %255 = vector.broadcast %cst_47 : f32 to vector<2x32xf32>
    %256 = arith.addf %255, %254 : vector<2x32xf32>
    %257 = arith.divf %255, %256 : vector<2x32xf32>
    %258 = vector.extract_strided_slice %44 {offsets = [0, 32], sizes = [2, 32], strides = [1, 1]} : vector<2x96xf32> to vector<2x32xf32>
    %259 = vector.extract_strided_slice %249 {offsets = [0, 32], sizes = [2, 32], strides = [1, 1]} : vector<2x96xf32> to vector<2x32xf32>
    %260 = arith.addf %258, %259 : vector<2x32xf32>
    %261 = arith.negf %260 : vector<2x32xf32>
    %262 = math.exp %261 : vector<2x32xf32>
    %cst_48 = arith.constant 1.000000e+00 : f32
    %263 = vector.broadcast %cst_48 : f32 to vector<2x32xf32>
    %264 = arith.addf %263, %262 : vector<2x32xf32>
    %265 = arith.divf %263, %264 : vector<2x32xf32>
    %266 = vector.extract_strided_slice %44 {offsets = [0, 64], sizes = [2, 32], strides = [1, 1]} : vector<2x96xf32> to vector<2x32xf32>
    %267 = vector.extract_strided_slice %249 {offsets = [0, 64], sizes = [2, 32], strides = [1, 1]} : vector<2x96xf32> to vector<2x32xf32>
    %268 = vector.broadcast %20 : vector<1x32xf32> to vector<2x32xf32>
    %269 = arith.addf %267, %268 : vector<2x32xf32>
    %270 = arith.mulf %257, %269 : vector<2x32xf32>
    %271 = arith.addf %266, %270 : vector<2x32xf32>
    %272 = math.tanh %271 : vector<2x32xf32>
    %cst_49 = arith.constant 1.000000e+00 : f32
    %273 = vector.broadcast %cst_49 : f32 to vector<2x32xf32>
    %274 = arith.subf %273, %265 : vector<2x32xf32>
    %275 = arith.mulf %274, %272 : vector<2x32xf32>
    %276 = arith.mulf %265, %248 : vector<2x32xf32>
    %277 = arith.addf %275, %276 : vector<2x32xf32>
    %c0_50 = arith.constant 0 : index
    %c0_51 = arith.constant 0 : index
    %278 = vector.load %arg5[%c0_50, %c0_51] : memref<32x96xf32, #tpu.memory_space<vmem>>, vector<32x96xf32>
    %c0_52 = arith.constant 0 : index
    %c0_53 = arith.constant 0 : index
    %279 = vector.load %arg6[%c0_52, %c0_53] : memref<32x96xf32, #tpu.memory_space<vmem>>, vector<32x96xf32>
    %c0_54 = arith.constant 0 : index
    %c0_55 = arith.constant 0 : index
    %280 = vector.load %arg7[%c0_54, %c0_55] : memref<1x96xf32, #tpu.memory_space<vmem>>, vector<1x96xf32>
    %c0_56 = arith.constant 0 : index
    %c0_57 = arith.constant 0 : index
    %281 = vector.load %arg8[%c0_56, %c0_57] : memref<1x32xf32, #tpu.memory_space<vmem>>, vector<1x32xf32>
    %cst_58 = arith.constant dense<0.000000e+00> : vector<2x96xf32>
    %282 = tpu.matmul %74, %278, %cst_58 {dimension_numbers = #tpu.dot_dimension_numbers<[1], [0], [0], [1], [0, 0, 1, 1], [], []>} : vector<2x32xf32>, vector<32x96xf32>, vector<2x96xf32> -> vector<2x96xf32>
    %283 = vector.broadcast %280 : vector<1x96xf32> to vector<2x96xf32>
    %284 = arith.addf %282, %283 : vector<2x96xf32>
    %cst_59 = arith.constant dense<0.000000e+00> : vector<2x96xf32>
    %285 = tpu.matmul %103, %278, %cst_59 {dimension_numbers = #tpu.dot_dimension_numbers<[1], [0], [0], [1], [0, 0, 1, 1], [], []>} : vector<2x32xf32>, vector<32x96xf32>, vector<2x96xf32> -> vector<2x96xf32>
    %286 = vector.broadcast %280 : vector<1x96xf32> to vector<2x96xf32>
    %287 = arith.addf %285, %286 : vector<2x96xf32>
    %cst_60 = arith.constant dense<0.000000e+00> : vector<2x96xf32>
    %288 = tpu.matmul %132, %278, %cst_60 {dimension_numbers = #tpu.dot_dimension_numbers<[1], [0], [0], [1], [0, 0, 1, 1], [], []>} : vector<2x32xf32>, vector<32x96xf32>, vector<2x96xf32> -> vector<2x96xf32>
    %289 = vector.broadcast %280 : vector<1x96xf32> to vector<2x96xf32>
    %290 = arith.addf %288, %289 : vector<2x96xf32>
    %cst_61 = arith.constant dense<0.000000e+00> : vector<2x96xf32>
    %291 = tpu.matmul %161, %278, %cst_61 {dimension_numbers = #tpu.dot_dimension_numbers<[1], [0], [0], [1], [0, 0, 1, 1], [], []>} : vector<2x32xf32>, vector<32x96xf32>, vector<2x96xf32> -> vector<2x96xf32>
    %292 = vector.broadcast %280 : vector<1x96xf32> to vector<2x96xf32>
    %293 = arith.addf %291, %292 : vector<2x96xf32>
    %cst_62 = arith.constant dense<0.000000e+00> : vector<2x96xf32>
    %294 = tpu.matmul %190, %278, %cst_62 {dimension_numbers = #tpu.dot_dimension_numbers<[1], [0], [0], [1], [0, 0, 1, 1], [], []>} : vector<2x32xf32>, vector<32x96xf32>, vector<2x96xf32> -> vector<2x96xf32>
    %295 = vector.broadcast %280 : vector<1x96xf32> to vector<2x96xf32>
    %296 = arith.addf %294, %295 : vector<2x96xf32>
    %cst_63 = arith.constant dense<0.000000e+00> : vector<2x96xf32>
    %297 = tpu.matmul %219, %278, %cst_63 {dimension_numbers = #tpu.dot_dimension_numbers<[1], [0], [0], [1], [0, 0, 1, 1], [], []>} : vector<2x32xf32>, vector<32x96xf32>, vector<2x96xf32> -> vector<2x96xf32>
    %298 = vector.broadcast %280 : vector<1x96xf32> to vector<2x96xf32>
    %299 = arith.addf %297, %298 : vector<2x96xf32>
    %cst_64 = arith.constant dense<0.000000e+00> : vector<2x96xf32>
    %300 = tpu.matmul %248, %278, %cst_64 {dimension_numbers = #tpu.dot_dimension_numbers<[1], [0], [0], [1], [0, 0, 1, 1], [], []>} : vector<2x32xf32>, vector<32x96xf32>, vector<2x96xf32> -> vector<2x96xf32>
    %301 = vector.broadcast %280 : vector<1x96xf32> to vector<2x96xf32>
    %302 = arith.addf %300, %301 : vector<2x96xf32>
    %cst_65 = arith.constant dense<0.000000e+00> : vector<2x96xf32>
    %303 = tpu.matmul %277, %278, %cst_65 {dimension_numbers = #tpu.dot_dimension_numbers<[1], [0], [0], [1], [0, 0, 1, 1], [], []>} : vector<2x32xf32>, vector<32x96xf32>, vector<2x96xf32> -> vector<2x96xf32>
    %304 = vector.broadcast %280 : vector<1x96xf32> to vector<2x96xf32>
    %305 = arith.addf %303, %304 : vector<2x96xf32>
    %cst_66 = arith.constant 0.000000e+00 : f32
    %306 = vector.broadcast %cst_66 : f32 to vector<2x32xf32>
    %cst_67 = arith.constant dense<0.000000e+00> : vector<2x96xf32>
    %307 = tpu.matmul %306, %279, %cst_67 {dimension_numbers = #tpu.dot_dimension_numbers<[1], [0], [0], [1], [0, 0, 1, 1], [], []>} : vector<2x32xf32>, vector<32x96xf32>, vector<2x96xf32> -> vector<2x96xf32>
    %308 = vector.extract_strided_slice %284 {offsets = [0, 0], sizes = [2, 32], strides = [1, 1]} : vector<2x96xf32> to vector<2x32xf32>
    %309 = vector.extract_strided_slice %307 {offsets = [0, 0], sizes = [2, 32], strides = [1, 1]} : vector<2x96xf32> to vector<2x32xf32>
    %310 = arith.addf %308, %309 : vector<2x32xf32>
    %311 = arith.negf %310 : vector<2x32xf32>
    %312 = math.exp %311 : vector<2x32xf32>
    %cst_68 = arith.constant 1.000000e+00 : f32
    %313 = vector.broadcast %cst_68 : f32 to vector<2x32xf32>
    %314 = arith.addf %313, %312 : vector<2x32xf32>
    %315 = arith.divf %313, %314 : vector<2x32xf32>
    %316 = vector.extract_strided_slice %284 {offsets = [0, 32], sizes = [2, 32], strides = [1, 1]} : vector<2x96xf32> to vector<2x32xf32>
    %317 = vector.extract_strided_slice %307 {offsets = [0, 32], sizes = [2, 32], strides = [1, 1]} : vector<2x96xf32> to vector<2x32xf32>
    %318 = arith.addf %316, %317 : vector<2x32xf32>
    %319 = arith.negf %318 : vector<2x32xf32>
    %320 = math.exp %319 : vector<2x32xf32>
    %cst_69 = arith.constant 1.000000e+00 : f32
    %321 = vector.broadcast %cst_69 : f32 to vector<2x32xf32>
    %322 = arith.addf %321, %320 : vector<2x32xf32>
    %323 = arith.divf %321, %322 : vector<2x32xf32>
    %324 = vector.extract_strided_slice %284 {offsets = [0, 64], sizes = [2, 32], strides = [1, 1]} : vector<2x96xf32> to vector<2x32xf32>
    %325 = vector.extract_strided_slice %307 {offsets = [0, 64], sizes = [2, 32], strides = [1, 1]} : vector<2x96xf32> to vector<2x32xf32>
    %326 = vector.broadcast %281 : vector<1x32xf32> to vector<2x32xf32>
    %327 = arith.addf %325, %326 : vector<2x32xf32>
    %328 = arith.mulf %315, %327 : vector<2x32xf32>
    %329 = arith.addf %324, %328 : vector<2x32xf32>
    %330 = math.tanh %329 : vector<2x32xf32>
    %cst_70 = arith.constant 1.000000e+00 : f32
    %331 = vector.broadcast %cst_70 : f32 to vector<2x32xf32>
    %332 = arith.subf %331, %323 : vector<2x32xf32>
    %333 = arith.mulf %332, %330 : vector<2x32xf32>
    %334 = arith.mulf %323, %306 : vector<2x32xf32>
    %335 = arith.addf %333, %334 : vector<2x32xf32>
    %cst_71 = arith.constant dense<0.000000e+00> : vector<2x96xf32>
    %336 = tpu.matmul %335, %279, %cst_71 {dimension_numbers = #tpu.dot_dimension_numbers<[1], [0], [0], [1], [0, 0, 1, 1], [], []>} : vector<2x32xf32>, vector<32x96xf32>, vector<2x96xf32> -> vector<2x96xf32>
    %337 = vector.extract_strided_slice %287 {offsets = [0, 0], sizes = [2, 32], strides = [1, 1]} : vector<2x96xf32> to vector<2x32xf32>
    %338 = vector.extract_strided_slice %336 {offsets = [0, 0], sizes = [2, 32], strides = [1, 1]} : vector<2x96xf32> to vector<2x32xf32>
    %339 = arith.addf %337, %338 : vector<2x32xf32>
    %340 = arith.negf %339 : vector<2x32xf32>
    %341 = math.exp %340 : vector<2x32xf32>
    %cst_72 = arith.constant 1.000000e+00 : f32
    %342 = vector.broadcast %cst_72 : f32 to vector<2x32xf32>
    %343 = arith.addf %342, %341 : vector<2x32xf32>
    %344 = arith.divf %342, %343 : vector<2x32xf32>
    %345 = vector.extract_strided_slice %287 {offsets = [0, 32], sizes = [2, 32], strides = [1, 1]} : vector<2x96xf32> to vector<2x32xf32>
    %346 = vector.extract_strided_slice %336 {offsets = [0, 32], sizes = [2, 32], strides = [1, 1]} : vector<2x96xf32> to vector<2x32xf32>
    %347 = arith.addf %345, %346 : vector<2x32xf32>
    %348 = arith.negf %347 : vector<2x32xf32>
    %349 = math.exp %348 : vector<2x32xf32>
    %cst_73 = arith.constant 1.000000e+00 : f32
    %350 = vector.broadcast %cst_73 : f32 to vector<2x32xf32>
    %351 = arith.addf %350, %349 : vector<2x32xf32>
    %352 = arith.divf %350, %351 : vector<2x32xf32>
    %353 = vector.extract_strided_slice %287 {offsets = [0, 64], sizes = [2, 32], strides = [1, 1]} : vector<2x96xf32> to vector<2x32xf32>
    %354 = vector.extract_strided_slice %336 {offsets = [0, 64], sizes = [2, 32], strides = [1, 1]} : vector<2x96xf32> to vector<2x32xf32>
    %355 = vector.broadcast %281 : vector<1x32xf32> to vector<2x32xf32>
    %356 = arith.addf %354, %355 : vector<2x32xf32>
    %357 = arith.mulf %344, %356 : vector<2x32xf32>
    %358 = arith.addf %353, %357 : vector<2x32xf32>
    %359 = math.tanh %358 : vector<2x32xf32>
    %cst_74 = arith.constant 1.000000e+00 : f32
    %360 = vector.broadcast %cst_74 : f32 to vector<2x32xf32>
    %361 = arith.subf %360, %352 : vector<2x32xf32>
    %362 = arith.mulf %361, %359 : vector<2x32xf32>
    %363 = arith.mulf %352, %335 : vector<2x32xf32>
    %364 = arith.addf %362, %363 : vector<2x32xf32>
    %cst_75 = arith.constant dense<0.000000e+00> : vector<2x96xf32>
    %365 = tpu.matmul %364, %279, %cst_75 {dimension_numbers = #tpu.dot_dimension_numbers<[1], [0], [0], [1], [0, 0, 1, 1], [], []>} : vector<2x32xf32>, vector<32x96xf32>, vector<2x96xf32> -> vector<2x96xf32>
    %366 = vector.extract_strided_slice %290 {offsets = [0, 0], sizes = [2, 32], strides = [1, 1]} : vector<2x96xf32> to vector<2x32xf32>
    %367 = vector.extract_strided_slice %365 {offsets = [0, 0], sizes = [2, 32], strides = [1, 1]} : vector<2x96xf32> to vector<2x32xf32>
    %368 = arith.addf %366, %367 : vector<2x32xf32>
    %369 = arith.negf %368 : vector<2x32xf32>
    %370 = math.exp %369 : vector<2x32xf32>
    %cst_76 = arith.constant 1.000000e+00 : f32
    %371 = vector.broadcast %cst_76 : f32 to vector<2x32xf32>
    %372 = arith.addf %371, %370 : vector<2x32xf32>
    %373 = arith.divf %371, %372 : vector<2x32xf32>
    %374 = vector.extract_strided_slice %290 {offsets = [0, 32], sizes = [2, 32], strides = [1, 1]} : vector<2x96xf32> to vector<2x32xf32>
    %375 = vector.extract_strided_slice %365 {offsets = [0, 32], sizes = [2, 32], strides = [1, 1]} : vector<2x96xf32> to vector<2x32xf32>
    %376 = arith.addf %374, %375 : vector<2x32xf32>
    %377 = arith.negf %376 : vector<2x32xf32>
    %378 = math.exp %377 : vector<2x32xf32>
    %cst_77 = arith.constant 1.000000e+00 : f32
    %379 = vector.broadcast %cst_77 : f32 to vector<2x32xf32>
    %380 = arith.addf %379, %378 : vector<2x32xf32>
    %381 = arith.divf %379, %380 : vector<2x32xf32>
    %382 = vector.extract_strided_slice %290 {offsets = [0, 64], sizes = [2, 32], strides = [1, 1]} : vector<2x96xf32> to vector<2x32xf32>
    %383 = vector.extract_strided_slice %365 {offsets = [0, 64], sizes = [2, 32], strides = [1, 1]} : vector<2x96xf32> to vector<2x32xf32>
    %384 = vector.broadcast %281 : vector<1x32xf32> to vector<2x32xf32>
    %385 = arith.addf %383, %384 : vector<2x32xf32>
    %386 = arith.mulf %373, %385 : vector<2x32xf32>
    %387 = arith.addf %382, %386 : vector<2x32xf32>
    %388 = math.tanh %387 : vector<2x32xf32>
    %cst_78 = arith.constant 1.000000e+00 : f32
    %389 = vector.broadcast %cst_78 : f32 to vector<2x32xf32>
    %390 = arith.subf %389, %381 : vector<2x32xf32>
    %391 = arith.mulf %390, %388 : vector<2x32xf32>
    %392 = arith.mulf %381, %364 : vector<2x32xf32>
    %393 = arith.addf %391, %392 : vector<2x32xf32>
    %cst_79 = arith.constant dense<0.000000e+00> : vector<2x96xf32>
    %394 = tpu.matmul %393, %279, %cst_79 {dimension_numbers = #tpu.dot_dimension_numbers<[1], [0], [0], [1], [0, 0, 1, 1], [], []>} : vector<2x32xf32>, vector<32x96xf32>, vector<2x96xf32> -> vector<2x96xf32>
    %395 = vector.extract_strided_slice %293 {offsets = [0, 0], sizes = [2, 32], strides = [1, 1]} : vector<2x96xf32> to vector<2x32xf32>
    %396 = vector.extract_strided_slice %394 {offsets = [0, 0], sizes = [2, 32], strides = [1, 1]} : vector<2x96xf32> to vector<2x32xf32>
    %397 = arith.addf %395, %396 : vector<2x32xf32>
    %398 = arith.negf %397 : vector<2x32xf32>
    %399 = math.exp %398 : vector<2x32xf32>
    %cst_80 = arith.constant 1.000000e+00 : f32
    %400 = vector.broadcast %cst_80 : f32 to vector<2x32xf32>
    %401 = arith.addf %400, %399 : vector<2x32xf32>
    %402 = arith.divf %400, %401 : vector<2x32xf32>
    %403 = vector.extract_strided_slice %293 {offsets = [0, 32], sizes = [2, 32], strides = [1, 1]} : vector<2x96xf32> to vector<2x32xf32>
    %404 = vector.extract_strided_slice %394 {offsets = [0, 32], sizes = [2, 32], strides = [1, 1]} : vector<2x96xf32> to vector<2x32xf32>
    %405 = arith.addf %403, %404 : vector<2x32xf32>
    %406 = arith.negf %405 : vector<2x32xf32>
    %407 = math.exp %406 : vector<2x32xf32>
    %cst_81 = arith.constant 1.000000e+00 : f32
    %408 = vector.broadcast %cst_81 : f32 to vector<2x32xf32>
    %409 = arith.addf %408, %407 : vector<2x32xf32>
    %410 = arith.divf %408, %409 : vector<2x32xf32>
    %411 = vector.extract_strided_slice %293 {offsets = [0, 64], sizes = [2, 32], strides = [1, 1]} : vector<2x96xf32> to vector<2x32xf32>
    %412 = vector.extract_strided_slice %394 {offsets = [0, 64], sizes = [2, 32], strides = [1, 1]} : vector<2x96xf32> to vector<2x32xf32>
    %413 = vector.broadcast %281 : vector<1x32xf32> to vector<2x32xf32>
    %414 = arith.addf %412, %413 : vector<2x32xf32>
    %415 = arith.mulf %402, %414 : vector<2x32xf32>
    %416 = arith.addf %411, %415 : vector<2x32xf32>
    %417 = math.tanh %416 : vector<2x32xf32>
    %cst_82 = arith.constant 1.000000e+00 : f32
    %418 = vector.broadcast %cst_82 : f32 to vector<2x32xf32>
    %419 = arith.subf %418, %410 : vector<2x32xf32>
    %420 = arith.mulf %419, %417 : vector<2x32xf32>
    %421 = arith.mulf %410, %393 : vector<2x32xf32>
    %422 = arith.addf %420, %421 : vector<2x32xf32>
    %cst_83 = arith.constant dense<0.000000e+00> : vector<2x96xf32>
    %423 = tpu.matmul %422, %279, %cst_83 {dimension_numbers = #tpu.dot_dimension_numbers<[1], [0], [0], [1], [0, 0, 1, 1], [], []>} : vector<2x32xf32>, vector<32x96xf32>, vector<2x96xf32> -> vector<2x96xf32>
    %424 = vector.extract_strided_slice %296 {offsets = [0, 0], sizes = [2, 32], strides = [1, 1]} : vector<2x96xf32> to vector<2x32xf32>
    %425 = vector.extract_strided_slice %423 {offsets = [0, 0], sizes = [2, 32], strides = [1, 1]} : vector<2x96xf32> to vector<2x32xf32>
    %426 = arith.addf %424, %425 : vector<2x32xf32>
    %427 = arith.negf %426 : vector<2x32xf32>
    %428 = math.exp %427 : vector<2x32xf32>
    %cst_84 = arith.constant 1.000000e+00 : f32
    %429 = vector.broadcast %cst_84 : f32 to vector<2x32xf32>
    %430 = arith.addf %429, %428 : vector<2x32xf32>
    %431 = arith.divf %429, %430 : vector<2x32xf32>
    %432 = vector.extract_strided_slice %296 {offsets = [0, 32], sizes = [2, 32], strides = [1, 1]} : vector<2x96xf32> to vector<2x32xf32>
    %433 = vector.extract_strided_slice %423 {offsets = [0, 32], sizes = [2, 32], strides = [1, 1]} : vector<2x96xf32> to vector<2x32xf32>
    %434 = arith.addf %432, %433 : vector<2x32xf32>
    %435 = arith.negf %434 : vector<2x32xf32>
    %436 = math.exp %435 : vector<2x32xf32>
    %cst_85 = arith.constant 1.000000e+00 : f32
    %437 = vector.broadcast %cst_85 : f32 to vector<2x32xf32>
    %438 = arith.addf %437, %436 : vector<2x32xf32>
    %439 = arith.divf %437, %438 : vector<2x32xf32>
    %440 = vector.extract_strided_slice %296 {offsets = [0, 64], sizes = [2, 32], strides = [1, 1]} : vector<2x96xf32> to vector<2x32xf32>
    %441 = vector.extract_strided_slice %423 {offsets = [0, 64], sizes = [2, 32], strides = [1, 1]} : vector<2x96xf32> to vector<2x32xf32>
    %442 = vector.broadcast %281 : vector<1x32xf32> to vector<2x32xf32>
    %443 = arith.addf %441, %442 : vector<2x32xf32>
    %444 = arith.mulf %431, %443 : vector<2x32xf32>
    %445 = arith.addf %440, %444 : vector<2x32xf32>
    %446 = math.tanh %445 : vector<2x32xf32>
    %cst_86 = arith.constant 1.000000e+00 : f32
    %447 = vector.broadcast %cst_86 : f32 to vector<2x32xf32>
    %448 = arith.subf %447, %439 : vector<2x32xf32>
    %449 = arith.mulf %448, %446 : vector<2x32xf32>
    %450 = arith.mulf %439, %422 : vector<2x32xf32>
    %451 = arith.addf %449, %450 : vector<2x32xf32>
    %cst_87 = arith.constant dense<0.000000e+00> : vector<2x96xf32>
    %452 = tpu.matmul %451, %279, %cst_87 {dimension_numbers = #tpu.dot_dimension_numbers<[1], [0], [0], [1], [0, 0, 1, 1], [], []>} : vector<2x32xf32>, vector<32x96xf32>, vector<2x96xf32> -> vector<2x96xf32>
    %453 = vector.extract_strided_slice %299 {offsets = [0, 0], sizes = [2, 32], strides = [1, 1]} : vector<2x96xf32> to vector<2x32xf32>
    %454 = vector.extract_strided_slice %452 {offsets = [0, 0], sizes = [2, 32], strides = [1, 1]} : vector<2x96xf32> to vector<2x32xf32>
    %455 = arith.addf %453, %454 : vector<2x32xf32>
    %456 = arith.negf %455 : vector<2x32xf32>
    %457 = math.exp %456 : vector<2x32xf32>
    %cst_88 = arith.constant 1.000000e+00 : f32
    %458 = vector.broadcast %cst_88 : f32 to vector<2x32xf32>
    %459 = arith.addf %458, %457 : vector<2x32xf32>
    %460 = arith.divf %458, %459 : vector<2x32xf32>
    %461 = vector.extract_strided_slice %299 {offsets = [0, 32], sizes = [2, 32], strides = [1, 1]} : vector<2x96xf32> to vector<2x32xf32>
    %462 = vector.extract_strided_slice %452 {offsets = [0, 32], sizes = [2, 32], strides = [1, 1]} : vector<2x96xf32> to vector<2x32xf32>
    %463 = arith.addf %461, %462 : vector<2x32xf32>
    %464 = arith.negf %463 : vector<2x32xf32>
    %465 = math.exp %464 : vector<2x32xf32>
    %cst_89 = arith.constant 1.000000e+00 : f32
    %466 = vector.broadcast %cst_89 : f32 to vector<2x32xf32>
    %467 = arith.addf %466, %465 : vector<2x32xf32>
    %468 = arith.divf %466, %467 : vector<2x32xf32>
    %469 = vector.extract_strided_slice %299 {offsets = [0, 64], sizes = [2, 32], strides = [1, 1]} : vector<2x96xf32> to vector<2x32xf32>
    %470 = vector.extract_strided_slice %452 {offsets = [0, 64], sizes = [2, 32], strides = [1, 1]} : vector<2x96xf32> to vector<2x32xf32>
    %471 = vector.broadcast %281 : vector<1x32xf32> to vector<2x32xf32>
    %472 = arith.addf %470, %471 : vector<2x32xf32>
    %473 = arith.mulf %460, %472 : vector<2x32xf32>
    %474 = arith.addf %469, %473 : vector<2x32xf32>
    %475 = math.tanh %474 : vector<2x32xf32>
    %cst_90 = arith.constant 1.000000e+00 : f32
    %476 = vector.broadcast %cst_90 : f32 to vector<2x32xf32>
    %477 = arith.subf %476, %468 : vector<2x32xf32>
    %478 = arith.mulf %477, %475 : vector<2x32xf32>
    %479 = arith.mulf %468, %451 : vector<2x32xf32>
    %480 = arith.addf %478, %479 : vector<2x32xf32>
    %cst_91 = arith.constant dense<0.000000e+00> : vector<2x96xf32>
    %481 = tpu.matmul %480, %279, %cst_91 {dimension_numbers = #tpu.dot_dimension_numbers<[1], [0], [0], [1], [0, 0, 1, 1], [], []>} : vector<2x32xf32>, vector<32x96xf32>, vector<2x96xf32> -> vector<2x96xf32>
    %482 = vector.extract_strided_slice %302 {offsets = [0, 0], sizes = [2, 32], strides = [1, 1]} : vector<2x96xf32> to vector<2x32xf32>
    %483 = vector.extract_strided_slice %481 {offsets = [0, 0], sizes = [2, 32], strides = [1, 1]} : vector<2x96xf32> to vector<2x32xf32>
    %484 = arith.addf %482, %483 : vector<2x32xf32>
    %485 = arith.negf %484 : vector<2x32xf32>
    %486 = math.exp %485 : vector<2x32xf32>
    %cst_92 = arith.constant 1.000000e+00 : f32
    %487 = vector.broadcast %cst_92 : f32 to vector<2x32xf32>
    %488 = arith.addf %487, %486 : vector<2x32xf32>
    %489 = arith.divf %487, %488 : vector<2x32xf32>
    %490 = vector.extract_strided_slice %302 {offsets = [0, 32], sizes = [2, 32], strides = [1, 1]} : vector<2x96xf32> to vector<2x32xf32>
    %491 = vector.extract_strided_slice %481 {offsets = [0, 32], sizes = [2, 32], strides = [1, 1]} : vector<2x96xf32> to vector<2x32xf32>
    %492 = arith.addf %490, %491 : vector<2x32xf32>
    %493 = arith.negf %492 : vector<2x32xf32>
    %494 = math.exp %493 : vector<2x32xf32>
    %cst_93 = arith.constant 1.000000e+00 : f32
    %495 = vector.broadcast %cst_93 : f32 to vector<2x32xf32>
    %496 = arith.addf %495, %494 : vector<2x32xf32>
    %497 = arith.divf %495, %496 : vector<2x32xf32>
    %498 = vector.extract_strided_slice %302 {offsets = [0, 64], sizes = [2, 32], strides = [1, 1]} : vector<2x96xf32> to vector<2x32xf32>
    %499 = vector.extract_strided_slice %481 {offsets = [0, 64], sizes = [2, 32], strides = [1, 1]} : vector<2x96xf32> to vector<2x32xf32>
    %500 = vector.broadcast %281 : vector<1x32xf32> to vector<2x32xf32>
    %501 = arith.addf %499, %500 : vector<2x32xf32>
    %502 = arith.mulf %489, %501 : vector<2x32xf32>
    %503 = arith.addf %498, %502 : vector<2x32xf32>
    %504 = math.tanh %503 : vector<2x32xf32>
    %cst_94 = arith.constant 1.000000e+00 : f32
    %505 = vector.broadcast %cst_94 : f32 to vector<2x32xf32>
    %506 = arith.subf %505, %497 : vector<2x32xf32>
    %507 = arith.mulf %506, %504 : vector<2x32xf32>
    %508 = arith.mulf %497, %480 : vector<2x32xf32>
    %509 = arith.addf %507, %508 : vector<2x32xf32>
    %cst_95 = arith.constant dense<0.000000e+00> : vector<2x96xf32>
    %510 = tpu.matmul %509, %279, %cst_95 {dimension_numbers = #tpu.dot_dimension_numbers<[1], [0], [0], [1], [0, 0, 1, 1], [], []>} : vector<2x32xf32>, vector<32x96xf32>, vector<2x96xf32> -> vector<2x96xf32>
    %511 = vector.extract_strided_slice %305 {offsets = [0, 0], sizes = [2, 32], strides = [1, 1]} : vector<2x96xf32> to vector<2x32xf32>
    %512 = vector.extract_strided_slice %510 {offsets = [0, 0], sizes = [2, 32], strides = [1, 1]} : vector<2x96xf32> to vector<2x32xf32>
    %513 = arith.addf %511, %512 : vector<2x32xf32>
    %514 = arith.negf %513 : vector<2x32xf32>
    %515 = math.exp %514 : vector<2x32xf32>
    %cst_96 = arith.constant 1.000000e+00 : f32
    %516 = vector.broadcast %cst_96 : f32 to vector<2x32xf32>
    %517 = arith.addf %516, %515 : vector<2x32xf32>
    %518 = arith.divf %516, %517 : vector<2x32xf32>
    %519 = vector.extract_strided_slice %305 {offsets = [0, 32], sizes = [2, 32], strides = [1, 1]} : vector<2x96xf32> to vector<2x32xf32>
    %520 = vector.extract_strided_slice %510 {offsets = [0, 32], sizes = [2, 32], strides = [1, 1]} : vector<2x96xf32> to vector<2x32xf32>
    %521 = arith.addf %519, %520 : vector<2x32xf32>
    %522 = arith.negf %521 : vector<2x32xf32>
    %523 = math.exp %522 : vector<2x32xf32>
    %cst_97 = arith.constant 1.000000e+00 : f32
    %524 = vector.broadcast %cst_97 : f32 to vector<2x32xf32>
    %525 = arith.addf %524, %523 : vector<2x32xf32>
    %526 = arith.divf %524, %525 : vector<2x32xf32>
    %527 = vector.extract_strided_slice %305 {offsets = [0, 64], sizes = [2, 32], strides = [1, 1]} : vector<2x96xf32> to vector<2x32xf32>
    %528 = vector.extract_strided_slice %510 {offsets = [0, 64], sizes = [2, 32], strides = [1, 1]} : vector<2x96xf32> to vector<2x32xf32>
    %529 = vector.broadcast %281 : vector<1x32xf32> to vector<2x32xf32>
    %530 = arith.addf %528, %529 : vector<2x32xf32>
    %531 = arith.mulf %518, %530 : vector<2x32xf32>
    %532 = arith.addf %527, %531 : vector<2x32xf32>
    %533 = math.tanh %532 : vector<2x32xf32>
    %cst_98 = arith.constant 1.000000e+00 : f32
    %534 = vector.broadcast %cst_98 : f32 to vector<2x32xf32>
    %535 = arith.subf %534, %526 : vector<2x32xf32>
    %536 = arith.mulf %535, %533 : vector<2x32xf32>
    %537 = arith.mulf %526, %509 : vector<2x32xf32>
    %538 = arith.addf %536, %537 : vector<2x32xf32>
    %c0_99 = arith.constant 0 : index
    %c0_100 = arith.constant 0 : index
    %539 = vector.load %arg9[%c0_99, %c0_100] : memref<32x32xf32, #tpu.memory_space<vmem>>, vector<32x32xf32>
    %cst_101 = arith.constant dense<0.000000e+00> : vector<2x32xf32>
    %540 = tpu.matmul %538, %539, %cst_101 {dimension_numbers = #tpu.dot_dimension_numbers<[1], [0], [0], [1], [0, 0, 1, 1], [], []>} : vector<2x32xf32>, vector<32x32xf32>, vector<2x32xf32> -> vector<2x32xf32>
    %c0_102 = arith.constant 0 : index
    %c0_103 = arith.constant 0 : index
    %541 = vector.load %arg10[%c0_102, %c0_103] : memref<1x32xf32, #tpu.memory_space<vmem>>, vector<1x32xf32>
    %542 = vector.broadcast %541 : vector<1x32xf32> to vector<2x32xf32>
    %543 = arith.addf %540, %542 : vector<2x32xf32>
    %cst_104 = arith.constant 0.000000e+00 : f32
    %544 = vector.broadcast %cst_104 : f32 to vector<2x32xf32>
    %545 = arith.maximumf %543, %544 : vector<2x32xf32>
    %c0_105 = arith.constant 0 : index
    %c0_106 = arith.constant 0 : index
    %546 = vector.load %arg11[%c0_105, %c0_106] : memref<32x32xf32, #tpu.memory_space<vmem>>, vector<32x32xf32>
    %cst_107 = arith.constant dense<0.000000e+00> : vector<2x32xf32>
    %547 = tpu.matmul %545, %546, %cst_107 {dimension_numbers = #tpu.dot_dimension_numbers<[1], [0], [0], [1], [0, 0, 1, 1], [], []>} : vector<2x32xf32>, vector<32x32xf32>, vector<2x32xf32> -> vector<2x32xf32>
    %c0_108 = arith.constant 0 : index
    %c0_109 = arith.constant 0 : index
    %548 = vector.load %arg12[%c0_108, %c0_109] : memref<1x32xf32, #tpu.memory_space<vmem>>, vector<1x32xf32>
    %549 = vector.broadcast %548 : vector<1x32xf32> to vector<2x32xf32>
    %550 = arith.addf %547, %549 : vector<2x32xf32>
    %cst_110 = arith.constant 0.000000e+00 : f32
    %551 = vector.broadcast %cst_110 : f32 to vector<2x32xf32>
    %552 = arith.maximumf %550, %551 : vector<2x32xf32>
    %c0_111 = arith.constant 0 : index
    %c0_112 = arith.constant 0 : index
    %553 = vector.load %arg13[%c0_111, %c0_112] : memref<32x8xf32, #tpu.memory_space<vmem>>, vector<32x8xf32>
    %cst_113 = arith.constant dense<0.000000e+00> : vector<2x8xf32>
    %554 = tpu.matmul %552, %553, %cst_113 {dimension_numbers = #tpu.dot_dimension_numbers<[1], [0], [0], [1], [0, 0, 1, 1], [], []>} : vector<2x32xf32>, vector<32x8xf32>, vector<2x8xf32> -> vector<2x8xf32>
    %c0_114 = arith.constant 0 : index
    %c0_115 = arith.constant 0 : index
    %555 = vector.load %arg14[%c0_114, %c0_115] : memref<1x8xf32, #tpu.memory_space<vmem>>, vector<1x8xf32>
    %556 = vector.broadcast %555 : vector<1x8xf32> to vector<2x8xf32>
    %557 = arith.addf %554, %556 : vector<2x8xf32>
    %c0_116 = arith.constant 0 : index
    %c0_117 = arith.constant 0 : index
    %558 = vector.load %arg15[%c0_116, %c0_117] : memref<2x8xf32, #tpu.memory_space<vmem>>, vector<2x8xf32>
    tpu.vector_store %arg15[%c0_116, %c0_117], %557 {strides = array<i32>} : memref<2x8xf32, #tpu.memory_space<vmem>>, vector<2x8xf32>,
    return
  }
}

</mosaic_0001>

<llo_original>
// kernel: tpu_custom_call.1
$region0: #{tpu_custom_call.1}
  #allocation0 [shape = 'u32[]', space=smem, size = 0x4, offset = 0x4, fixed_abs, tag = 'smem constant byte address 0x4 - core index']
  #allocation1 [shape = 'u32[144,128]{1,0:T(1,128)}', space=vmem, size = 0x12000, scoped, tag = 'internal scratch']
  %s0 = inlined_call_operand.hbm [shape: f32[2,8,16], index: 0, kind: input, shape index: {}]
  %s1 = inlined_call_operand.hbm [shape: f32[16,96], index: 1, kind: input, shape index: {}]
  %s2 = inlined_call_operand.vmem [shape: f32[32,96], index: 2, kind: input, shape index: {}]
  %s3 = inlined_call_operand.vmem [shape: f32[1,96], index: 3, kind: input, shape index: {}]
  %s4 = inlined_call_operand.vmem [shape: f32[1,32], index: 4, kind: input, shape index: {}]
  %s5 = inlined_call_operand.hbm [shape: f32[32,96], index: 5, kind: input, shape index: {}]
  %s6 = inlined_call_operand.hbm [shape: f32[32,96], index: 6, kind: input, shape index: {}]
  %s7 = inlined_call_operand.vmem [shape: f32[1,96], index: 7, kind: input, shape index: {}]
  %s8 = inlined_call_operand.vmem [shape: f32[1,32], index: 8, kind: input, shape index: {}]
  %s9 = inlined_call_operand.hbm [shape: f32[32,32], index: 9, kind: input, shape index: {}]
  %s10 = inlined_call_operand.vmem [shape: f32[1,32], index: 10, kind: input, shape index: {}]
  %s11 = inlined_call_operand.hbm [shape: f32[32,32], index: 11, kind: input, shape index: {}]
  %s12 = inlined_call_operand.vmem [shape: f32[1,32], index: 12, kind: input, shape index: {}]
  %s13 = inlined_call_operand.vmem [shape: f32[32,8], index: 13, kind: input, shape index: {}]
  %s14 = inlined_call_operand.vmem [shape: f32[1,8], index: 14, kind: input, shape index: {}]
  %s15 = inlined_call_operand.hbm [shape: f32[2,8], index: 15, kind: output, shape index: {}]
  %s16 = sld [smem:[#allocation0]]
  $region94: #{tpu_custom_call.1} parent=0
    _
  %s18 = ssub.s32 1, %s16
  %s19 = scalar_select 0, %s18, %s16
  $region1: #{tpu_custom_call.1} parent=0
    #allocation2 [shape = 'u8[8192]{0}', space=vmem, size = 0x2000, scoped, tag = 'input window, operand 0, single buffered']
    #allocation3 [shape = 's32[1]{0}', space=sflag, size = 0x4, scoped, tag = 'scoped memory for tpu_custom_call.1']
    #allocation4 [shape = 's32[1]{0}', space=sflag, size = 0x4, scoped, tag = 'scoped memory for tpu_custom_call.1']
    #allocation5 [shape = 'u8[8192]{0}', space=vmem, size = 0x2000, scoped, tag = 'input window, operand 1, single buffered']
    #allocation6 [shape = 's32[1]{0}', space=sflag, size = 0x4, scoped, tag = 'scoped memory for tpu_custom_call.1']
    #allocation7 [shape = 'u8[16384]{0}', space=vmem, size = 0x4000, scoped, tag = 'input window, operand 5, single buffered']
    #allocation8 [shape = 'u8[16384]{0}', space=vmem, size = 0x4000, scoped, tag = 'input window, operand 6, single buffered']
    #allocation9 [shape = 's32[1]{0}', space=sflag, size = 0x4, scoped, tag = 'scoped memory for tpu_custom_call.1']
    #allocation10 [shape = 'u8[16384]{0}', space=vmem, size = 0x4000, scoped, tag = 'input window, operand 9, single buffered']
    #allocation11 [shape = 'u8[16384]{0}', space=vmem, size = 0x4000, scoped, tag = 'input window, operand 11, single buffered']
    #allocation12 [shape = 's32[1]{0}', space=sflag, size = 0x4, scoped, tag = 'scoped memory for tpu_custom_call.1']
    #allocation13 [shape = 'u8[1024]{0}', space=vmem, size = 0x400, scoped, tag = 'output window, operand 0, single buffered']
    %20 = vsyncpa [#allocation3], 0
    %21 = vsyncpa [#allocation6], 0
    %22 = vsyncpa [#allocation9], 0
    %23 = vsyncpa [#allocation12], 0
    %24 = vsyncpa [#allocation4], 0
    // Predicated region
    $region2: #{tpu_custom_call.1} parent=1 // pred_check
      _
    $region3: #{tpu_custom_call.1} parent=1 // pred_check_branch
      %26 = sbr.rel (0) target = $region5
    $region4: #{tpu_custom_call.1} parent=1 // pred_region
      %s28 = ssub.s32 256, 256
      %29 = vsyncadd [#allocation3], %s28
      %s30 = sshll.u32 [#allocation2], 4
      %s31 = int_to_ptr.vmem [resolvable:$true] %s30
      %36 = dma.hbm_to_vmem [thread:$0]  %s0, 256, %s31, [#allocation3], 128, 128, 8
    $region5: #{tpu_custom_call.1} parent=1 // pred_fallthru
      _
    // Predicated region
    $region6: #{tpu_custom_call.1} parent=1 // pred_check
      _
    $region7: #{tpu_custom_call.1} parent=1 // pred_check_branch
      %38 = sbr.rel (0) target = $region9
    $region8: #{tpu_custom_call.1} parent=1 // pred_region
      %s40 = ssub.s32 256, 256
      %41 = vsyncadd [#allocation6], %s40
      %s42 = sshll.u32 [#allocation5], 4
      %s43 = int_to_ptr.vmem [resolvable:$true] %s42
      %48 = dma.hbm_to_vmem [thread:$0]  %s1, 256, %s43, [#allocation6], 128, 128, 8
    $region9: #{tpu_custom_call.1} parent=1 // pred_fallthru
      _
    // Predicated region
    $region10: #{tpu_custom_call.1} parent=1 // pred_check
      _
    $region11: #{tpu_custom_call.1} parent=1 // pred_check_branch
      %50 = sbr.rel (0) target = $region13
    $region12: #{tpu_custom_call.1} parent=1 // pred_region
      _
    $region13: #{tpu_custom_call.1} parent=1 // pred_fallthru
      _
    // Predicated region
    $region14: #{tpu_custom_call.1} parent=1 // pred_check
      _
    $region15: #{tpu_custom_call.1} parent=1 // pred_check_branch
      %52 = sbr.rel (0) target = $region17
    $region16: #{tpu_custom_call.1} parent=1 // pred_region
      _
    $region17: #{tpu_custom_call.1} parent=1 // pred_fallthru
      _
    // Predicated region
    $region18: #{tpu_custom_call.1} parent=1 // pred_check
      _
    $region19: #{tpu_custom_call.1} parent=1 // pred_check_branch
      %54 = sbr.rel (0) target = $region21
    $region20: #{tpu_custom_call.1} parent=1 // pred_region
      _
    $region21: #{tpu_custom_call.1} parent=1 // pred_fallthru
      _
    // Predicated region
    $region22: #{tpu_custom_call.1} parent=1 // pred_check
      _
    $region23: #{tpu_custom_call.1} parent=1 // pred_check_branch
      %56 = sbr.rel (0) target = $region25
    $region24: #{tpu_custom_call.1} parent=1 // pred_region
      %s58 = ssub.s32 512, 512
      %59 = vsyncadd [#allocation6], %s58
      %s60 = sshll.u32 [#allocation7], 4
      %s61 = int_to_ptr.vmem [resolvable:$true] %s60
      %66 = dma.hbm_to_vmem [thread:$0]  %s5, 512, %s61, [#allocation6], 128, 128, 8
    $region25: #{tpu_custom_call.1} parent=1 // pred_fallthru
      _
    // Predicated region
    $region26: #{tpu_custom_call.1} parent=1 // pred_check
      _
    $region27: #{tpu_custom_call.1} parent=1 // pred_check_branch
      %68 = sbr.rel (0) target = $region29
    $region28: #{tpu_custom_call.1} parent=1 // pred_region
      %s70 = ssub.s32 512, 512
      %71 = vsyncadd [#allocation9], %s70
      %s72 = sshll.u32 [#allocation8], 4
      %s73 = int_to_ptr.vmem [resolvable:$true] %s72
      %78 = dma.hbm_to_vmem [thread:$0]  %s6, 512, %s73, [#allocation9], 128, 128, 8
    $region29: #{tpu_custom_call.1} parent=1 // pred_fallthru
      _
    // Predicated region
    $region30: #{tpu_custom_call.1} parent=1 // pred_check
      _
    $region31: #{tpu_custom_call.1} parent=1 // pred_check_branch
      %80 = sbr.rel (0) target = $region33
    $region32: #{tpu_custom_call.1} parent=1 // pred_region
      _
    $region33: #{tpu_custom_call.1} parent=1 // pred_fallthru
      _
    // Predicated region
    $region34: #{tpu_custom_call.1} parent=1 // pred_check
      _
    $region35: #{tpu_custom_call.1} parent=1 // pred_check_branch
      %82 = sbr.rel (0) target = $region37
    $region36: #{tpu_custom_call.1} parent=1 // pred_region
      _
    $region37: #{tpu_custom_call.1} parent=1 // pred_fallthru
      _
    // Predicated region
    $region38: #{tpu_custom_call.1} parent=1 // pred_check
      _
    $region39: #{tpu_custom_call.1} parent=1 // pred_check_branch
      %84 = sbr.rel (0) target = $region41
    $region40: #{tpu_custom_call.1} parent=1 // pred_region
      %s86 = ssub.s32 512, 512
      %87 = vsyncadd [#allocation9], %s86
      %s88 = sshll.u32 [#allocation10], 4
      %s89 = int_to_ptr.vmem [resolvable:$true] %s88
      %94 = dma.hbm_to_vmem [thread:$0]  %s9, 512, %s89, [#allocation9], 128, 128, 8
    $region41: #{tpu_custom_call.1} parent=1 // pred_fallthru
      _
    // Predicated region
    $region42: #{tpu_custom_call.1} parent=1 // pred_check
      _
    $region43: #{tpu_custom_call.1} parent=1 // pred_check_branch
      %96 = sbr.rel (0) target = $region45
    $region44: #{tpu_custom_call.1} parent=1 // pred_region
      _
    $region45: #{tpu_custom_call.1} parent=1 // pred_fallthru
      _
    // Predicated region
    $region46: #{tpu_custom_call.1} parent=1 // pred_check
      _
    $region47: #{tpu_custom_call.1} parent=1 // pred_check_branch
      %98 = sbr.rel (0) target = $region49
    $region48: #{tpu_custom_call.1} parent=1 // pred_region
      %s100 = ssub.s32 512, 512
      %101 = vsyncadd [#allocation12], %s100
      %s102 = sshll.u32 [#allocation11], 4
      %s103 = int_to_ptr.vmem [resolvable:$true] %s102
      %108 = dma.hbm_to_vmem [thread:$0]  %s11, 512, %s103, [#allocation12], 128, 128, 8
    $region49: #{tpu_custom_call.1} parent=1 // pred_fallthru
      _
    // Predicated region
    $region50: #{tpu_custom_call.1} parent=1 // pred_check
      _
    $region51: #{tpu_custom_call.1} parent=1 // pred_check_branch
      %110 = sbr.rel (0) target = $region53
    $region52: #{tpu_custom_call.1} parent=1 // pred_region
      _
    $region53: #{tpu_custom_call.1} parent=1 // pred_fallthru
      _
    // Predicated region
    $region54: #{tpu_custom_call.1} parent=1 // pred_check
      _
    $region55: #{tpu_custom_call.1} parent=1 // pred_check_branch
      %112 = sbr.rel (0) target = $region57
    $region56: #{tpu_custom_call.1} parent=1 // pred_region
      _
    $region57: #{tpu_custom_call.1} parent=1 // pred_fallthru
      _
    // Predicated region
    $region58: #{tpu_custom_call.1} parent=1 // pred_check
      _
    $region59: #{tpu_custom_call.1} parent=1 // pred_check_branch
      %114 = sbr.rel (0) target = $region61
    $region60: #{tpu_custom_call.1} parent=1 // pred_region
      _
    $region61: #{tpu_custom_call.1} parent=1 // pred_fallthru
      _
    // Predicated region
    $region62: #{tpu_custom_call.1} parent=1 // pred_check
      _
    $region63: #{tpu_custom_call.1} parent=1 // pred_check_branch
      %116 = sbr.rel (0) target = $region65
    $region64: #{tpu_custom_call.1} parent=1 // pred_region
      %117 = dma.done [#allocation3], 256
    $region65: #{tpu_custom_call.1} parent=1 // pred_fallthru
      _
    // Predicated region
    $region66: #{tpu_custom_call.1} parent=1 // pred_check
      _
    $region67: #{tpu_custom_call.1} parent=1 // pred_check_branch
      %119 = sbr.rel (0) target = $region69
    $region68: #{tpu_custom_call.1} parent=1 // pred_region
      %120 = dma.done [#allocation6], 256
    $region69: #{tpu_custom_call.1} parent=1 // pred_fallthru
      _
    // Predicated region
    $region70: #{tpu_custom_call.1} parent=1 // pred_check
      _
    $region71: #{tpu_custom_call.1} parent=1 // pred_check_branch
      %122 = sbr.rel (0) target = $region73
    $region72: #{tpu_custom_call.1} parent=1 // pred_region
      %123 = dma.done [#allocation6], 512
    $region73: #{tpu_custom_call.1} parent=1 // pred_fallthru
      _
    // Predicated region
    $region74: #{tpu_custom_call.1} parent=1 // pred_check
      _
    $region75: #{tpu_custom_call.1} parent=1 // pred_check_branch
      %125 = sbr.rel (0) target = $region77
    $region76: #{tpu_custom_call.1} parent=1 // pred_region
      %126 = dma.done [#allocation9], 512
    $region77: #{tpu_custom_call.1} parent=1 // pred_fallthru
      _
    // Predicated region
    $region78: #{tpu_custom_call.1} parent=1 // pred_check
      _
    $region79: #{tpu_custom_call.1} parent=1 // pred_check_branch
      %128 = sbr.rel (0) target = $region81
    $region80: #{tpu_custom_call.1} parent=1 // pred_region
      %129 = dma.done [#allocation9], 512
    $region81: #{tpu_custom_call.1} parent=1 // pred_fallthru
      _
    // Predicated region
    $region82: #{tpu_custom_call.1} parent=1 // pred_check
      _
    $region83: #{tpu_custom_call.1} parent=1 // pred_check_branch
      %131 = sbr.rel (0) target = $region85
    $region84: #{tpu_custom_call.1} parent=1 // pred_region
      %132 = dma.done [#allocation12], 512
    $region85: #{tpu_custom_call.1} parent=1 // pred_fallthru
      _
    %v133 = vld [vmem:[#allocation2] sm:$0xff]
    %v134 = vld [vmem:[#allocation2 + $0x8] sm:$0xff]
    %v135 = vld [vmem:[#allocation5] sm:$0xff]
    %v136 = vld [vmem:[#allocation5 + $0x8] sm:$0xff]
    %v137 = vld [vmem:[%s2] sm:$0xff]
    %v138 = vld [vmem:[%s2 + $0x8] sm:$0xff]
    %v139 = vld [vmem:[%s2 + $0x10] sm:$0xff]
    %v140 = vld [vmem:[%s2 + $0x18] sm:$0xff]
    %v141 = vld [vmem:[%s3] sm:$0x1]
    %v142 = vld [vmem:[%s4] sm:$0x1]
    %v144 = vlaneseq
    %v145 = vshrl.u32 %v144, 7
    %v146 = vsub.s32 0, %v145
    %v147 = vrot.slane %v141, %v146
    %v151 = vrot.slane %v134, 7
    %vm152 = vcmask 1041409
    %v153 = vsel %vm152, %v151, %v133
    %vm154 = vcmask 130048
    %v155 = vsel %vm154, %v153, 0
    %157 = vmatprep.subr.mxu0 0.0
    %158 = vmatpush1.msra.mxu0 0.0
    %159 = vmatprep.subr.mxu0 0.0
    %160 = vmatpush1.msra.mxu0 0.0
    %161 = vmatprep.subr.mxu0 0.0
    %162 = vmatpush1.msra.mxu0 0.0
    %163 = vmatprep.subr.mxu0 0.0
    %164 = vmatpush1.msra.mxu0 0.0
    %165 = vmatprep.subr.mxu0 0.0
    %166 = vmatpush1.msra.mxu0 0.0
    %167 = vmatprep.subr.mxu0 0.0
    %168 = vmatpush1.msra.mxu0 0.0
    %169 = vmatprep.subr.mxu0 0.0
    %170 = vmatpush1.msra.mxu0 0.0
    %171 = vmatprep.subr.mxu0 0.0
    %172 = vmatpush1.msra.mxu0 0.0
    %173 = vmatprep.subr.mxu0 0.0
    %174 = vmatpush1.msra.mxu0 0.0
    %175 = vmatprep.subr.mxu0 0.0
    %176 = vmatpush1.msra.mxu0 0.0
    %177 = vmatprep.subr.mxu0 0.0
    %178 = vmatpush1.msra.mxu0 0.0
    %179 = vmatprep.subr.mxu0 0.0
    %180 = vmatpush1.msra.mxu0 0.0
    %181 = vmatprep.subr.mxu0 0.0
    %182 = vmatpush1.msra.mxu0 0.0
    %183 = vmatprep.subr.mxu0 0.0
    %184 = vmatpush1.msra.mxu0 0.0
    %185 = vmatprep.subr.mxu0 0.0
    %186 = vmatpush1.msra.mxu0 %v136
    %187 = vmatprep.subr.mxu0 0.0
    %188 = vmatpush1.msra.mxu0 %v135
    %189 = vmatprep.subr.mxu0 0.0
    %190 = vmatpush2.msra.mxu0 0.0
    %191 = vmatprep.subr.mxu0 0.0
    %192 = vmatpush2.msra.mxu0 0.0
    %193 = vmatprep.subr.mxu0 0.0
    %194 = vmatpush2.msra.mxu0 0.0
    %195 = vmatprep.subr.mxu0 0.0
    %196 = vmatpush2.msra.mxu0 0.0
    %197 = vmatprep.subr.mxu0 0.0
    %198 = vmatpush2.msra.mxu0 0.0
    %199 = vmatprep.subr.mxu0 0.0
    %200 = vmatpush2.msra.mxu0 0.0
    %201 = vmatprep.subr.mxu0 0.0
    %202 = vmatpush2.msra.mxu0 0.0
    %203 = vmatprep.subr.mxu0 0.0
    %204 = vmatpush2.msra.mxu0 0.0
    %205 = vmatprep.subr.mxu0 0.0
    %206 = vmatpush2.msra.mxu0 0.0
    %207 = vmatprep.subr.mxu0 0.0
    %208 = vmatpush2.msra.mxu0 0.0
    %209 = vmatprep.subr.mxu0 0.0
    %210 = vmatpush2.msra.mxu0 0.0
    %211 = vmatprep.subr.mxu0 0.0
    %212 = vmatpush2.msra.mxu0 0.0
    %213 = vmatprep.subr.mxu0 0.0
    %214 = vmatpush2.msra.mxu0 0.0
    %215 = vmatprep.subr.mxu0 0.0
    %216 = vmatpush2.msra.mxu0 0.0
    %217 = vmatprep.subr.mxu0 0.0
    %218 = vmatpush2.msra.mxu0 0.0
    %219 = vmatprep.subr.mxu0 0.0
    %220 = vmatpush2.msra.mxu0 0.0
    %221 = vmatprep.mubr.f32.mxu0 0.0
    %222 = vmatmul.mubr.f32.gmra.mxu0 %v155
    %v223 = vpop.f32.mrf.mxu0
    %v224 = vadd.f32 %v147, %v223
    %v225 = vpop.f32.mrf.mxu0
    %226 = vdwg.mxu0
    %v227 = vrot.slane %v133, 1
    %v228 = vsel %vm152, %v134, %v227
    %v229 = vsel %vm154, %v228, 0
    %231 = vmatprep.subr.mxu0 0.0
    %232 = vmatpush1.msra.mxu0 0.0
    %233 = vmatprep.subr.mxu0 0.0
    %234 = vmatpush1.msra.mxu0 0.0
    %235 = vmatprep.subr.mxu0 0.0
    %236 = vmatpush1.msra.mxu0 0.0
    %237 = vmatprep.subr.mxu0 0.0
    %238 = vmatpush1.msra.mxu0 0.0
    %239 = vmatprep.subr.mxu0 0.0
    %240 = vmatpush1.msra.mxu0 0.0
    %241 = vmatprep.subr.mxu0 0.0
    %242 = vmatpush1.msra.mxu0 0.0
    %243 = vmatprep.subr.mxu0 0.0
    %244 = vmatpush1.msra.mxu0 0.0
    %245 = vmatprep.subr.mxu0 0.0
    %246 = vmatpush1.msra.mxu0 0.0
    %247 = vmatprep.subr.mxu0 0.0
    %248 = vmatpush1.msra.mxu0 0.0
    %249 = vmatprep.subr.mxu0 0.0
    %250 = vmatpush1.msra.mxu0 0.0
    %251 = vmatprep.subr.mxu0 0.0
    %252 = vmatpush1.msra.mxu0 0.0
    %253 = vmatprep.subr.mxu0 0.0
    %254 = vmatpush1.msra.mxu0 0.0
    %255 = vmatprep.subr.mxu0 0.0
    %256 = vmatpush1.msra.mxu0 0.0
    %257 = vmatprep.subr.mxu0 0.0
    %258 = vmatpush1.msra.mxu0 0.0
    %259 = vmatprep.subr.mxu0 0.0
    %260 = vmatpush1.msra.mxu0 %v136
    %261 = vmatprep.subr.mxu0 0.0
    %262 = vmatpush1.msra.mxu0 %v135
    %263 = vmatprep.subr.mxu0 0.0
    %264 = vmatpush2.msra.mxu0 0.0
    %265 = vmatprep.subr.mxu0 0.0
    %266 = vmatpush2.msra.mxu0 0.0
    %267 = vmatprep.subr.mxu0 0.0
    %268 = vmatpush2.msra.mxu0 0.0
    %269 = vmatprep.subr.mxu0 0.0
    %270 = vmatpush2.msra.mxu0 0.0
    %271 = vmatprep.subr.mxu0 0.0
    %272 = vmatpush2.msra.mxu0 0.0
    %273 = vmatprep.subr.mxu0 0.0
    %274 = vmatpush2.msra.mxu0 0.0
    %275 = vmatprep.subr.mxu0 0.0
    %276 = vmatpush2.msra.mxu0 0.0
    %277 = vmatprep.subr.mxu0 0.0
    %278 = vmatpush2.msra.mxu0 0.0
    %279 = vmatprep.subr.mxu0 0.0
    %280 = vmatpush2.msra.mxu0 0.0
    %281 = vmatprep.subr.mxu0 0.0
    %282 = vmatpush2.msra.mxu0 0.0
    %283 = vmatprep.subr.mxu0 0.0
    %284 = vmatpush2.msra.mxu0 0.0
    %285 = vmatprep.subr.mxu0 0.0
    %286 = vmatpush2.msra.mxu0 0.0
    %287 = vmatprep.subr.mxu0 0.0
    %288 = vmatpush2.msra.mxu0 0.0
    %289 = vmatprep.subr.mxu0 0.0
    %290 = vmatpush2.msra.mxu0 0.0
    %291 = vmatprep.subr.mxu0 0.0
    %292 = vmatpush2.msra.mxu0 0.0
    %293 = vmatprep.subr.mxu0 0.0
    %294 = vmatpush2.msra.mxu0 0.0
    %295 = vmatprep.mubr.f32.mxu0 0.0
    %296 = vmatmul.mubr.f32.gmra.mxu0 %v229
    %v297 = vpop.f32.mrf.mxu0
    %v298 = vadd.f32 %v147, %v297
    %v299 = vpop.f32.mrf.mxu0
    %300 = vdwg.mxu0
    %v301 = vrot.slane %v133, 2
    %v302 = vrot.slane %v134, 1
    %v303 = vsel %vm152, %v302, %v301
    %v304 = vsel %vm154, %v303, 0
    %306 = vmatprep.subr.mxu0 0.0
    %307 = vmatpush1.msra.mxu0 0.0
    %308 = vmatprep.subr.mxu0 0.0
    %309 = vmatpush1.msra.mxu0 0.0
    %310 = vmatprep.subr.mxu0 0.0
    %311 = vmatpush1.msra.mxu0 0.0
    %312 = vmatprep.subr.mxu0 0.0
    %313 = vmatpush1.msra.mxu0 0.0
    %314 = vmatprep.subr.mxu0 0.0
    %315 = vmatpush1.msra.mxu0 0.0
    %316 = vmatprep.subr.mxu0 0.0
    %317 = vmatpush1.msra.mxu0 0.0
    %318 = vmatprep.subr.mxu0 0.0
    %319 = vmatpush1.msra.mxu0 0.0
    %320 = vmatprep.subr.mxu0 0.0
    %321 = vmatpush1.msra.mxu0 0.0
    %322 = vmatprep.subr.mxu0 0.0
    %323 = vmatpush1.msra.mxu0 0.0
    %324 = vmatprep.subr.mxu0 0.0
    %325 = vmatpush1.msra.mxu0 0.0
    %326 = vmatprep.subr.mxu0 0.0
    %327 = vmatpush1.msra.mxu0 0.0
    %328 = vmatprep.subr.mxu0 0.0
    %329 = vmatpush1.msra.mxu0 0.0
    %330 = vmatprep.subr.mxu0 0.0
    %331 = vmatpush1.msra.mxu0 0.0
    %332 = vmatprep.subr.mxu0 0.0
    %333 = vmatpush1.msra.mxu0 0.0
    %334 = vmatprep.subr.mxu0 0.0
    %335 = vmatpush1.msra.mxu0 %v136
    %336 = vmatprep.subr.mxu0 0.0
    %337 = vmatpush1.msra.mxu0 %v135
    %338 = vmatprep.subr.mxu0 0.0
    %339 = vmatpush2.msra.mxu0 0.0
    %340 = vmatprep.subr.mxu0 0.0
    %341 = vmatpush2.msra.mxu0 0.0
    %342 = vmatprep.subr.mxu0 0.0
    %343 = vmatpush2.msra.mxu0 0.0
    %344 = vmatprep.subr.mxu0 0.0
    %345 = vmatpush2.msra.mxu0 0.0
    %346 = vmatprep.subr.mxu0 0.0
    %347 = vmatpush2.msra.mxu0 0.0
    %348 = vmatprep.subr.mxu0 0.0
    %349 = vmatpush2.msra.mxu0 0.0
    %350 = vmatprep.subr.mxu0 0.0
    %351 = vmatpush2.msra.mxu0 0.0
    %352 = vmatprep.subr.mxu0 0.0
    %353 = vmatpush2.msra.mxu0 0.0
    %354 = vmatprep.subr.mxu0 0.0
    %355 = vmatpush2.msra.mxu0 0.0
    %356 = vmatprep.subr.mxu0 0.0
    %357 = vmatpush2.msra.mxu0 0.0
    %358 = vmatprep.subr.mxu0 0.0
    %359 = vmatpush2.msra.mxu0 0.0
    %360 = vmatprep.subr.mxu0 0.0
    %361 = vmatpush2.msra.mxu0 0.0
    %362 = vmatprep.subr.mxu0 0.0
    %363 = vmatpush2.msra.mxu0 0.0
    %364 = vmatprep.subr.mxu0 0.0
    %365 = vmatpush2.msra.mxu0 0.0
    %366 = vmatprep.subr.mxu0 0.0
    %367 = vmatpush2.msra.mxu0 0.0
    %368 = vmatprep.subr.mxu0 0.0
    %369 = vmatpush2.msra.mxu0 0.0
    %370 = vmatprep.mubr.f32.mxu0 0.0
    %371 = vmatmul.mubr.f32.gmra.mxu0 %v304
    %v372 = vpop.f32.mrf.mxu0
    %v373 = vadd.f32 %v147, %v372
    %v374 = vpop.f32.mrf.mxu0
    %375 = vdwg.mxu0
    %v376 = vrot.slane %v133, 3
    %v377 = vrot.slane %v134, 2
    %v378 = vsel %vm152, %v377, %v376
    %v379 = vsel %vm154, %v378, 0
    %381 = vmatprep.subr.mxu0 0.0
    %382 = vmatpush1.msra.mxu0 0.0
    %383 = vmatprep.subr.mxu0 0.0
    %384 = vmatpush1.msra.mxu0 0.0
    %385 = vmatprep.subr.mxu0 0.0
    %386 = vmatpush1.msra.mxu0 0.0
    %387 = vmatprep.subr.mxu0 0.0
    %388 = vmatpush1.msra.mxu0 0.0
    %389 = vmatprep.subr.mxu0 0.0
    %390 = vmatpush1.msra.mxu0 0.0
    %391 = vmatprep.subr.mxu0 0.0
    %392 = vmatpush1.msra.mxu0 0.0
    %393 = vmatprep.subr.mxu0 0.0
    %394 = vmatpush1.msra.mxu0 0.0
    %395 = vmatprep.subr.mxu0 0.0
    %396 = vmatpush1.msra.mxu0 0.0
    %397 = vmatprep.subr.mxu0 0.0
    %398 = vmatpush1.msra.mxu0 0.0
    %399 = vmatprep.subr.mxu0 0.0
    %400 = vmatpush1.msra.mxu0 0.0
    %401 = vmatprep.subr.mxu0 0.0
    %402 = vmatpush1.msra.mxu0 0.0
    %403 = vmatprep.subr.mxu0 0.0
    %404 = vmatpush1.msra.mxu0 0.0
    %405 = vmatprep.subr.mxu0 0.0
    %406 = vmatpush1.msra.mxu0 0.0
    %407 = vmatprep.subr.mxu0 0.0
    %408 = vmatpush1.msra.mxu0 0.0
    %409 = vmatprep.subr.mxu0 0.0
    %410 = vmatpush1.msra.mxu0 %v136
    %411 = vmatprep.subr.mxu0 0.0
    %412 = vmatpush1.msra.mxu0 %v135
    %413 = vmatprep.subr.mxu0 0.0
    %414 = vmatpush2.msra.mxu0 0.0
    %415 = vmatprep.subr.mxu0 0.0
    %416 = vmatpush2.msra.mxu0 0.0
    %417 = vmatprep.subr.mxu0 0.0
    %418 = vmatpush2.msra.mxu0 0.0
    %419 = vmatprep.subr.mxu0 0.0
    %420 = vmatpush2.msra.mxu0 0.0
    %421 = vmatprep.subr.mxu0 0.0
    %422 = vmatpush2.msra.mxu0 0.0
    %423 = vmatprep.subr.mxu0 0.0
    %424 = vmatpush2.msra.mxu0 0.0
    %425 = vmatprep.subr.mxu0 0.0
    %426 = vmatpush2.msra.mxu0 0.0
    %427 = vmatprep.subr.mxu0 0.0
    %428 = vmatpush2.msra.mxu0 0.0
    %429 = vmatprep.subr.mxu0 0.0
    %430 = vmatpush2.msra.mxu0 0.0
    %431 = vmatprep.subr.mxu0 0.0
    %432 = vmatpush2.msra.mxu0 0.0
    %433 = vmatprep.subr.mxu0 0.0
    %434 = vmatpush2.msra.mxu0 0.0
    %435 = vmatprep.subr.mxu0 0.0
    %436 = vmatpush2.msra.mxu0 0.0
    %437 = vmatprep.subr.mxu0 0.0
    %438 = vmatpush2.msra.mxu0 0.0
    %439 = vmatprep.subr.mxu0 0.0
    %440 = vmatpush2.msra.mxu0 0.0
    %441 = vmatprep.subr.mxu0 0.0
    %442 = vmatpush2.msra.mxu0 0.0
    %443 = vmatprep.subr.mxu0 0.0
    %444 = vmatpush2.msra.mxu0 0.0
    %445 = vmatprep.mubr.f32.mxu0 0.0
    %446 = vmatmul.mubr.f32.gmra.mxu0 %v379
    %v447 = vpop.f32.mrf.mxu0
    %v448 = vadd.f32 %v147, %v447
    %v449 = vpop.f32.mrf.mxu0
    %450 = vdwg.mxu0
    %v451 = vrot.slane %v133, 4
    %v452 = vrot.slane %v134, 3
    %v453 = vsel %vm152, %v452, %v451
    %v454 = vsel %vm154, %v453, 0
    %456 = vmatprep.subr.mxu0 0.0
    %457 = vmatpush1.msra.mxu0 0.0
    %458 = vmatprep.subr.mxu0 0.0
    %459 = vmatpush1.msra.mxu0 0.0
    %460 = vmatprep.subr.mxu0 0.0
    %461 = vmatpush1.msra.mxu0 0.0
    %462 = vmatprep.subr.mxu0 0.0
    %463 = vmatpush1.msra.mxu0 0.0
    %464 = vmatprep.subr.mxu0 0.0
    %465 = vmatpush1.msra.mxu0 0.0
    %466 = vmatprep.subr.mxu0 0.0
    %467 = vmatpush1.msra.mxu0 0.0
    %468 = vmatprep.subr.mxu0 0.0
    %469 = vmatpush1.msra.mxu0 0.0
    %470 = vmatprep.subr.mxu0 0.0
    %471 = vmatpush1.msra.mxu0 0.0
    %472 = vmatprep.subr.mxu0 0.0
    %473 = vmatpush1.msra.mxu0 0.0
    %474 = vmatprep.subr.mxu0 0.0
    %475 = vmatpush1.msra.mxu0 0.0
    %476 = vmatprep.subr.mxu0 0.0
    %477 = vmatpush1.msra.mxu0 0.0
    %478 = vmatprep.subr.mxu0 0.0
    %479 = vmatpush1.msra.mxu0 0.0
    %480 = vmatprep.subr.mxu0 0.0
    %481 = vmatpush1.msra.mxu0 0.0
    %482 = vmatprep.subr.mxu0 0.0
    %483 = vmatpush1.msra.mxu0 0.0
    %484 = vmatprep.subr.mxu0 0.0
    %485 = vmatpush1.msra.mxu0 %v136
    %486 = vmatprep.subr.mxu0 0.0
    %487 = vmatpush1.msra.mxu0 %v135
    %488 = vmatprep.subr.mxu0 0.0
    %489 = vmatpush2.msra.mxu0 0.0
    %490 = vmatprep.subr.mxu0 0.0
    %491 = vmatpush2.msra.mxu0 0.0
    %492 = vmatprep.subr.mxu0 0.0
    %493 = vmatpush2.msra.mxu0 0.0
    %494 = vmatprep.subr.mxu0 0.0
    %495 = vmatpush2.msra.mxu0 0.0
    %496 = vmatprep.subr.mxu0 0.0
    %497 = vmatpush2.msra.mxu0 0.0
    %498 = vmatprep.subr.mxu0 0.0
    %499 = vmatpush2.msra.mxu0 0.0
    %500 = vmatprep.subr.mxu0 0.0
    %501 = vmatpush2.msra.mxu0 0.0
    %502 = vmatprep.subr.mxu0 0.0
    %503 = vmatpush2.msra.mxu0 0.0
    %504 = vmatprep.subr.mxu0 0.0
    %505 = vmatpush2.msra.mxu0 0.0
    %506 = vmatprep.subr.mxu0 0.0
    %507 = vmatpush2.msra.mxu0 0.0
    %508 = vmatprep.subr.mxu0 0.0
    %509 = vmatpush2.msra.mxu0 0.0
    %510 = vmatprep.subr.mxu0 0.0
    %511 = vmatpush2.msra.mxu0 0.0
    %512 = vmatprep.subr.mxu0 0.0
    %513 = vmatpush2.msra.mxu0 0.0
    %514 = vmatprep.subr.mxu0 0.0
    %515 = vmatpush2.msra.mxu0 0.0
    %516 = vmatprep.subr.mxu0 0.0
    %517 = vmatpush2.msra.mxu0 0.0
    %518 = vmatprep.subr.mxu0 0.0
    %519 = vmatpush2.msra.mxu0 0.0
    %520 = vmatprep.mubr.f32.mxu0 0.0
    %521 = vmatmul.mubr.f32.gmra.mxu0 %v454
    %v522 = vpop.f32.mrf.mxu0
    %v523 = vadd.f32 %v147, %v522
    %v524 = vpop.f32.mrf.mxu0
    %525 = vdwg.mxu0
    %v526 = vrot.slane %v133, 5
    %v527 = vrot.slane %v134, 4
    %v528 = vsel %vm152, %v527, %v526
    %v529 = vsel %vm154, %v528, 0
    %531 = vmatprep.subr.mxu0 0.0
    %532 = vmatpush1.msra.mxu0 0.0
    %533 = vmatprep.subr.mxu0 0.0
    %534 = vmatpush1.msra.mxu0 0.0
    %535 = vmatprep.subr.mxu0 0.0
    %536 = vmatpush1.msra.mxu0 0.0
    %537 = vmatprep.subr.mxu0 0.0
    %538 = vmatpush1.msra.mxu0 0.0
    %539 = vmatprep.subr.mxu0 0.0
    %540 = vmatpush1.msra.mxu0 0.0
    %541 = vmatprep.subr.mxu0 0.0
    %542 = vmatpush1.msra.mxu0 0.0
    %543 = vmatprep.subr.mxu0 0.0
    %544 = vmatpush1.msra.mxu0 0.0
    %545 = vmatprep.subr.mxu0 0.0
    %546 = vmatpush1.msra.mxu0 0.0
    %547 = vmatprep.subr.mxu0 0.0
    %548 = vmatpush1.msra.mxu0 0.0
    %549 = vmatprep.subr.mxu0 0.0
    %550 = vmatpush1.msra.mxu0 0.0
    %551 = vmatprep.subr.mxu0 0.0
    %552 = vmatpush1.msra.mxu0 0.0
    %553 = vmatprep.subr.mxu0 0.0
    %554 = vmatpush1.msra.mxu0 0.0
    %555 = vmatprep.subr.mxu0 0.0
    %556 = vmatpush1.msra.mxu0 0.0
    %557 = vmatprep.subr.mxu0 0.0
    %558 = vmatpush1.msra.mxu0 0.0
    %559 = vmatprep.subr.mxu0 0.0
    %560 = vmatpush1.msra.mxu0 %v136
    %561 = vmatprep.subr.mxu0 0.0
    %562 = vmatpush1.msra.mxu0 %v135
    %563 = vmatprep.subr.mxu0 0.0
    %564 = vmatpush2.msra.mxu0 0.0
    %565 = vmatprep.subr.mxu0 0.0
    %566 = vmatpush2.msra.mxu0 0.0
    %567 = vmatprep.subr.mxu0 0.0
    %568 = vmatpush2.msra.mxu0 0.0
    %569 = vmatprep.subr.mxu0 0.0
    %570 = vmatpush2.msra.mxu0 0.0
    %571 = vmatprep.subr.mxu0 0.0
    %572 = vmatpush2.msra.mxu0 0.0
    %573 = vmatprep.subr.mxu0 0.0
    %574 = vmatpush2.msra.mxu0 0.0
    %575 = vmatprep.subr.mxu0 0.0
    %576 = vmatpush2.msra.mxu0 0.0
    %577 = vmatprep.subr.mxu0 0.0
    %578 = vmatpush2.msra.mxu0 0.0
    %579 = vmatprep.subr.mxu0 0.0
    %580 = vmatpush2.msra.mxu0 0.0
    %581 = vmatprep.subr.mxu0 0.0
    %582 = vmatpush2.msra.mxu0 0.0
    %583 = vmatprep.subr.mxu0 0.0
    %584 = vmatpush2.msra.mxu0 0.0
    %585 = vmatprep.subr.mxu0 0.0
    %586 = vmatpush2.msra.mxu0 0.0
    %587 = vmatprep.subr.mxu0 0.0
    %588 = vmatpush2.msra.mxu0 0.0
    %589 = vmatprep.subr.mxu0 0.0
    %590 = vmatpush2.msra.mxu0 0.0
    %591 = vmatprep.subr.mxu0 0.0
    %592 = vmatpush2.msra.mxu0 0.0
    %593 = vmatprep.subr.mxu0 0.0
    %594 = vmatpush2.msra.mxu0 0.0
    %595 = vmatprep.mubr.f32.mxu0 0.0
    %596 = vmatmul.mubr.f32.gmra.mxu0 %v529
    %v597 = vpop.f32.mrf.mxu0
    %v598 = vadd.f32 %v147, %v597
    %v599 = vpop.f32.mrf.mxu0
    %600 = vdwg.mxu0
    %v601 = vrot.slane %v133, 6
    %v602 = vrot.slane %v134, 5
    %v603 = vsel %vm152, %v602, %v601
    %v604 = vsel %vm154, %v603, 0
    %606 = vmatprep.subr.mxu0 0.0
    %607 = vmatpush1.msra.mxu0 0.0
    %608 = vmatprep.subr.mxu0 0.0
    %609 = vmatpush1.msra.mxu0 0.0
    %610 = vmatprep.subr.mxu0 0.0
    %611 = vmatpush1.msra.mxu0 0.0
    %612 = vmatprep.subr.mxu0 0.0
    %613 = vmatpush1.msra.mxu0 0.0
    %614 = vmatprep.subr.mxu0 0.0
    %615 = vmatpush1.msra.mxu0 0.0
    %616 = vmatprep.subr.mxu0 0.0
    %617 = vmatpush1.msra.mxu0 0.0
    %618 = vmatprep.subr.mxu0 0.0
    %619 = vmatpush1.msra.mxu0 0.0
    %620 = vmatprep.subr.mxu0 0.0
    %621 = vmatpush1.msra.mxu0 0.0
    %622 = vmatprep.subr.mxu0 0.0
    %623 = vmatpush1.msra.mxu0 0.0
    %624 = vmatprep.subr.mxu0 0.0
    %625 = vmatpush1.msra.mxu0 0.0
    %626 = vmatprep.subr.mxu0 0.0
    %627 = vmatpush1.msra.mxu0 0.0
    %628 = vmatprep.subr.mxu0 0.0
    %629 = vmatpush1.msra.mxu0 0.0
    %630 = vmatprep.subr.mxu0 0.0
    %631 = vmatpush1.msra.mxu0 0.0
    %632 = vmatprep.subr.mxu0 0.0
    %633 = vmatpush1.msra.mxu0 0.0
    %634 = vmatprep.subr.mxu0 0.0
    %635 = vmatpush1.msra.mxu0 %v136
    %636 = vmatprep.subr.mxu0 0.0
    %637 = vmatpush1.msra.mxu0 %v135
    %638 = vmatprep.subr.mxu0 0.0
    %639 = vmatpush2.msra.mxu0 0.0
    %640 = vmatprep.subr.mxu0 0.0
    %641 = vmatpush2.msra.mxu0 0.0
    %642 = vmatprep.subr.mxu0 0.0
    %643 = vmatpush2.msra.mxu0 0.0
    %644 = vmatprep.subr.mxu0 0.0
    %645 = vmatpush2.msra.mxu0 0.0
    %646 = vmatprep.subr.mxu0 0.0
    %647 = vmatpush2.msra.mxu0 0.0
    %648 = vmatprep.subr.mxu0 0.0
    %649 = vmatpush2.msra.mxu0 0.0
    %650 = vmatprep.subr.mxu0 0.0
    %651 = vmatpush2.msra.mxu0 0.0
    %652 = vmatprep.subr.mxu0 0.0
    %653 = vmatpush2.msra.mxu0 0.0
    %654 = vmatprep.subr.mxu0 0.0
    %655 = vmatpush2.msra.mxu0 0.0
    %656 = vmatprep.subr.mxu0 0.0
    %657 = vmatpush2.msra.mxu0 0.0
    %658 = vmatprep.subr.mxu0 0.0
    %659 = vmatpush2.msra.mxu0 0.0
    %660 = vmatprep.subr.mxu0 0.0
    %661 = vmatpush2.msra.mxu0 0.0
    %662 = vmatprep.subr.mxu0 0.0
    %663 = vmatpush2.msra.mxu0 0.0
    %664 = vmatprep.subr.mxu0 0.0
    %665 = vmatpush2.msra.mxu0 0.0
    %666 = vmatprep.subr.mxu0 0.0
    %667 = vmatpush2.msra.mxu0 0.0
    %668 = vmatprep.subr.mxu0 0.0
    %669 = vmatpush2.msra.mxu0 0.0
    %670 = vmatprep.mubr.f32.mxu0 0.0
    %671 = vmatmul.mubr.f32.gmra.mxu0 %v604
    %v672 = vpop.f32.mrf.mxu0
    %v673 = vadd.f32 %v147, %v672
    %v674 = vpop.f32.mrf.mxu0
    %675 = vdwg.mxu0
    %v676 = vrot.slane %v133, 7
    %v677 = vrot.slane %v134, 6
    %v678 = vsel %vm152, %v677, %v676
    %v679 = vsel %vm154, %v678, 0
    %681 = vmatprep.subr.mxu0 0.0
    %682 = vmatpush1.msra.mxu0 0.0
    %683 = vmatprep.subr.mxu0 0.0
    %684 = vmatpush1.msra.mxu0 0.0
    %685 = vmatprep.subr.mxu0 0.0
    %686 = vmatpush1.msra.mxu0 0.0
    %687 = vmatprep.subr.mxu0 0.0
    %688 = vmatpush1.msra.mxu0 0.0
    %689 = vmatprep.subr.mxu0 0.0
    %690 = vmatpush1.msra.mxu0 0.0
    %691 = vmatprep.subr.mxu0 0.0
    %692 = vmatpush1.msra.mxu0 0.0
    %693 = vmatprep.subr.mxu0 0.0
    %694 = vmatpush1.msra.mxu0 0.0
    %695 = vmatprep.subr.mxu0 0.0
    %696 = vmatpush1.msra.mxu0 0.0
    %697 = vmatprep.subr.mxu0 0.0
    %698 = vmatpush1.msra.mxu0 0.0
    %699 = vmatprep.subr.mxu0 0.0
    %700 = vmatpush1.msra.mxu0 0.0
    %701 = vmatprep.subr.mxu0 0.0
    %702 = vmatpush1.msra.mxu0 0.0
    %703 = vmatprep.subr.mxu0 0.0
    %704 = vmatpush1.msra.mxu0 0.0
    %705 = vmatprep.subr.mxu0 0.0
    %706 = vmatpush1.msra.mxu0 0.0
    %707 = vmatprep.subr.mxu0 0.0
    %708 = vmatpush1.msra.mxu0 0.0
    %709 = vmatprep.subr.mxu0 0.0
    %710 = vmatpush1.msra.mxu0 %v136
    %711 = vmatprep.subr.mxu0 0.0
    %712 = vmatpush1.msra.mxu0 %v135
    %713 = vmatprep.subr.mxu0 0.0
    %714 = vmatpush2.msra.mxu0 0.0
    %715 = vmatprep.subr.mxu0 0.0
    %716 = vmatpush2.msra.mxu0 0.0
    %717 = vmatprep.subr.mxu0 0.0
    %718 = vmatpush2.msra.mxu0 0.0
    %719 = vmatprep.subr.mxu0 0.0
    %720 = vmatpush2.msra.mxu0 0.0
    %721 = vmatprep.subr.mxu0 0.0
    %722 = vmatpush2.msra.mxu0 0.0
    %723 = vmatprep.subr.mxu0 0.0
    %724 = vmatpush2.msra.mxu0 0.0
    %725 = vmatprep.subr.mxu0 0.0
    %726 = vmatpush2.msra.mxu0 0.0
    %727 = vmatprep.subr.mxu0 0.0
    %728 = vmatpush2.msra.mxu0 0.0
    %729 = vmatprep.subr.mxu0 0.0
    %730 = vmatpush2.msra.mxu0 0.0
    %731 = vmatprep.subr.mxu0 0.0
    %732 = vmatpush2.msra.mxu0 0.0
    %733 = vmatprep.subr.mxu0 0.0
    %734 = vmatpush2.msra.mxu0 0.0
    %735 = vmatprep.subr.mxu0 0.0
    %736 = vmatpush2.msra.mxu0 0.0
    %737 = vmatprep.subr.mxu0 0.0
    %738 = vmatpush2.msra.mxu0 0.0
    %739 = vmatprep.subr.mxu0 0.0
    %740 = vmatpush2.msra.mxu0 0.0
    %741 = vmatprep.subr.mxu0 0.0
    %742 = vmatpush2.msra.mxu0 0.0
    %743 = vmatprep.subr.mxu0 0.0
    %744 = vmatpush2.msra.mxu0 0.0
    %745 = vmatprep.mubr.f32.mxu0 0.0
    %746 = vmatmul.mubr.f32.gmra.mxu0 %v679
    %v747 = vpop.f32.mrf.mxu0
    %v748 = vadd.f32 %v147, %v747
    %v749 = vpop.f32.mrf.mxu0
    %750 = vdwg.mxu0
    %vm751 = vcmask 261120
    %v753 = vsel %vm751, 0.0, 0
    %755 = vmatprep.subr.mxu0 0.0
    %756 = vmatpush1.msra.mxu0 0.0
    %757 = vmatprep.subr.mxu0 0.0
    %758 = vmatpush1.msra.mxu0 0.0
    %759 = vmatprep.subr.mxu0 0.0
    %760 = vmatpush1.msra.mxu0 0.0
    %761 = vmatprep.subr.mxu0 0.0
    %762 = vmatpush1.msra.mxu0 0.0
    %763 = vmatprep.subr.mxu0 0.0
    %764 = vmatpush1.msra.mxu0 0.0
    %765 = vmatprep.subr.mxu0 0.0
    %766 = vmatpush1.msra.mxu0 0.0
    %767 = vmatprep.subr.mxu0 0.0
    %768 = vmatpush1.msra.mxu0 0.0
    %769 = vmatprep.subr.mxu0 0.0
    %770 = vmatpush1.msra.mxu0 0.0
    %771 = vmatprep.subr.mxu0 0.0
    %772 = vmatpush1.msra.mxu0 0.0
    %773 = vmatprep.subr.mxu0 0.0
    %774 = vmatpush1.msra.mxu0 0.0
    %775 = vmatprep.subr.mxu0 0.0
    %776 = vmatpush1.msra.mxu0 0.0
    %777 = vmatprep.subr.mxu0 0.0
    %778 = vmatpush1.msra.mxu0 0.0
    %779 = vmatprep.subr.mxu0 0.0
    %780 = vmatpush1.msra.mxu0 %v140
    %781 = vmatprep.subr.mxu0 0.0
    %782 = vmatpush1.msra.mxu0 %v139
    %783 = vmatprep.subr.mxu0 0.0
    %784 = vmatpush1.msra.mxu0 %v138
    %785 = vmatprep.subr.mxu0 0.0
    %786 = vmatpush1.msra.mxu0 %v137
    %787 = vmatprep.subr.mxu0 0.0
    %788 = vmatpush2.msra.mxu0 0.0
    %789 = vmatprep.subr.mxu0 0.0
    %790 = vmatpush2.msra.mxu0 0.0
    %791 = vmatprep.subr.mxu0 0.0
    %792 = vmatpush2.msra.mxu0 0.0
    %793 = vmatprep.subr.mxu0 0.0
    %794 = vmatpush2.msra.mxu0 0.0
    %795 = vmatprep.subr.mxu0 0.0
    %796 = vmatpush2.msra.mxu0 0.0
    %797 = vmatprep.subr.mxu0 0.0
    %798 = vmatpush2.msra.mxu0 0.0
    %799 = vmatprep.subr.mxu0 0.0
    %800 = vmatpush2.msra.mxu0 0.0
    %801 = vmatprep.subr.mxu0 0.0
    %802 = vmatpush2.msra.mxu0 0.0
    %803 = vmatprep.subr.mxu0 0.0
    %804 = vmatpush2.msra.mxu0 0.0
    %805 = vmatprep.subr.mxu0 0.0
    %806 = vmatpush2.msra.mxu0 0.0
    %807 = vmatprep.subr.mxu0 0.0
    %808 = vmatpush2.msra.mxu0 0.0
    %809 = vmatprep.subr.mxu0 0.0
    %810 = vmatpush2.msra.mxu0 0.0
    %811 = vmatprep.subr.mxu0 0.0
    %812 = vmatpush2.msra.mxu0 0.0
    %813 = vmatprep.subr.mxu0 0.0
    %814 = vmatpush2.msra.mxu0 0.0
    %815 = vmatprep.subr.mxu0 0.0
    %816 = vmatpush2.msra.mxu0 0.0
    %817 = vmatprep.subr.mxu0 0.0
    %818 = vmatpush2.msra.mxu0 0.0
    %819 = vmatprep.mubr.f32.mxu0 0.0
    %820 = vmatmul.mubr.f32.gmra.mxu0 %v753
    %v821 = vpop.f32.mrf.mxu0
    %v822 = vadd.f32 0.0, %v821
    %v823 = vpop.f32.mrf.mxu0
    %824 = vdwg.mxu0
    %v825 = vadd.f32 %v224, %v822
    %v826 = vxor.u32 %v825, 2147483648
    %v827 = vmul.f32 %v826, 1.442695
    %v828 = vpow.pop %v827
    %v829 = vadd.f32 %v828, 1.0
    %v830 = vrcp.pop %v829
    %v831 = vmul.f32 1.0, %v830
    %v833 = vlaneseq
    %v834 = vshrl.u32 %v833, 7
    %v835 = vsub.s32 0, %v834
    %v836 = vrot.slane %v142, %v835
    %837 = vrot.lane.b32.xlu0 %v836, 64
    %v838 = vpop.permute.xlu0 %837
    %v840 = vadd.f32 %v822, %v838
    %842 = vrot.lane.b32.xlu0 %v840, 64
    %v843 = vpop.permute.xlu0 %842
    %v845 = vmul.f32 %v831, %v843
    %847 = vrot.lane.b32.xlu0 %v845, 64
    %v848 = vpop.permute.xlu0 %847
    %v850 = vadd.f32 %v224, %v848
    %v851 = vtanh.pop %v850
    %v852 = vsub.f32 1.0, %v831
    %854 = vrot.lane.b32.xlu0 %v851, 96
    %v855 = vpop.permute.xlu0 %854
    %v857 = vmul.f32 %v852, %v855
    %v858 = vmul.f32 %v831, 0.0
    %v859 = vadd.f32 %v857, %v858
    %861 = vrot.lane.b32.xlu0 %v859, 96
    %v862 = vpop.permute.xlu0 %861
    %v863 = vsel %vm751, %v862, 0
    %865 = vmatprep.subr.mxu0 0.0
    %866 = vmatpush1.msra.mxu0 0.0
    %867 = vmatprep.subr.mxu0 0.0
    %868 = vmatpush1.msra.mxu0 0.0
    %869 = vmatprep.subr.mxu0 0.0
    %870 = vmatpush1.msra.mxu0 0.0
    %871 = vmatprep.subr.mxu0 0.0
    %872 = vmatpush1.msra.mxu0 0.0
    %873 = vmatprep.subr.mxu0 0.0
    %874 = vmatpush1.msra.mxu0 0.0
    %875 = vmatprep.subr.mxu0 0.0
    %876 = vmatpush1.msra.mxu0 0.0
    %877 = vmatprep.subr.mxu0 0.0
    %878 = vmatpush1.msra.mxu0 0.0
    %879 = vmatprep.subr.mxu0 0.0
    %880 = vmatpush1.msra.mxu0 0.0
    %881 = vmatprep.subr.mxu0 0.0
    %882 = vmatpush1.msra.mxu0 0.0
    %883 = vmatprep.subr.mxu0 0.0
    %884 = vmatpush1.msra.mxu0 0.0
    %885 = vmatprep.subr.mxu0 0.0
    %886 = vmatpush1.msra.mxu0 0.0
    %887 = vmatprep.subr.mxu0 0.0
    %888 = vmatpush1.msra.mxu0 0.0
    %889 = vmatprep.subr.mxu0 0.0
    %890 = vmatpush1.msra.mxu0 %v140
    %891 = vmatprep.subr.mxu0 0.0
    %892 = vmatpush1.msra.mxu0 %v139
    %893 = vmatprep.subr.mxu0 0.0
    %894 = vmatpush1.msra.mxu0 %v138
    %895 = vmatprep.subr.mxu0 0.0
    %896 = vmatpush1.msra.mxu0 %v137
    %897 = vmatprep.subr.mxu0 0.0
    %898 = vmatpush2.msra.mxu0 0.0
    %899 = vmatprep.subr.mxu0 0.0
    %900 = vmatpush2.msra.mxu0 0.0
    %901 = vmatprep.subr.mxu0 0.0
    %902 = vmatpush2.msra.mxu0 0.0
    %903 = vmatprep.subr.mxu0 0.0
    %904 = vmatpush2.msra.mxu0 0.0
    %905 = vmatprep.subr.mxu0 0.0
    %906 = vmatpush2.msra.mxu0 0.0
    %907 = vmatprep.subr.mxu0 0.0
    %908 = vmatpush2.msra.mxu0 0.0
    %909 = vmatprep.subr.mxu0 0.0
    %910 = vmatpush2.msra.mxu0 0.0
    %911 = vmatprep.subr.mxu0 0.0
    %912 = vmatpush2.msra.mxu0 0.0
    %913 = vmatprep.subr.mxu0 0.0
    %914 = vmatpush2.msra.mxu0 0.0
    %915 = vmatprep.subr.mxu0 0.0
    %916 = vmatpush2.msra.mxu0 0.0
    %917 = vmatprep.subr.mxu0 0.0
    %918 = vmatpush2.msra.mxu0 0.0
    %919 = vmatprep.subr.mxu0 0.0
    %920 = vmatpush2.msra.mxu0 0.0
    %921 = vmatprep.subr.mxu0 0.0
    %922 = vmatpush2.msra.mxu0 0.0
    %923 = vmatprep.subr.mxu0 0.0
    %924 = vmatpush2.msra.mxu0 0.0
    %925 = vmatprep.subr.mxu0 0.0
    %926 = vmatpush2.msra.mxu0 0.0
    %927 = vmatprep.subr.mxu0 0.0
    %928 = vmatpush2.msra.mxu0 0.0
    %929 = vmatprep.mubr.f32.mxu0 0.0
    %930 = vmatmul.mubr.f32.gmra.mxu0 %v863
    %v931 = vpop.f32.mrf.mxu0
    %v932 = vadd.f32 0.0, %v931
    %v933 = vpop.f32.mrf.mxu0
    %934 = vdwg.mxu0
    %v935 = vadd.f32 %v298, %v932
    %v936 = vxor.u32 %v935, 2147483648
    %v937 = vmul.f32 %v936, 1.442695
    %v938 = vpow.pop %v937
    %v939 = vadd.f32 %v938, 1.0
    %v940 = vrcp.pop %v939
    %v941 = vmul.f32 1.0, %v940
    %v942 = vadd.f32 %v932, %v838
    %944 = vrot.lane.b32.xlu0 %v942, 64
    %v945 = vpop.permute.xlu0 %944
    %v947 = vmul.f32 %v941, %v945
    %949 = vrot.lane.b32.xlu0 %v947, 64
    %v950 = vpop.permute.xlu0 %949
    %v952 = vadd.f32 %v298, %v950
    %v953 = vtanh.pop %v952
    %v954 = vsub.f32 1.0, %v941
    %956 = vrot.lane.b32.xlu0 %v953, 96
    %v957 = vpop.permute.xlu0 %956
    %v959 = vmul.f32 %v954, %v957
    %v960 = vmul.f32 %v941, %v859
    %v961 = vadd.f32 %v959, %v960
    %963 = vrot.lane.b32.xlu0 %v961, 96
    %v964 = vpop.permute.xlu0 %963
    %v965 = vsel %vm751, %v964, 0
    %967 = vmatprep.subr.mxu0 0.0
    %968 = vmatpush1.msra.mxu0 0.0
    %969 = vmatprep.subr.mxu0 0.0
    %970 = vmatpush1.msra.mxu0 0.0
    %971 = vmatprep.subr.mxu0 0.0
    %972 = vmatpush1.msra.mxu0 0.0
    %973 = vmatprep.subr.mxu0 0.0
    %974 = vmatpush1.msra.mxu0 0.0
    %975 = vmatprep.subr.mxu0 0.0
    %976 = vmatpush1.msra.mxu0 0.0
    %977 = vmatprep.subr.mxu0 0.0
    %978 = vmatpush1.msra.mxu0 0.0
    %979 = vmatprep.subr.mxu0 0.0
    %980 = vmatpush1.msra.mxu0 0.0
    %981 = vmatprep.subr.mxu0 0.0
    %982 = vmatpush1.msra.mxu0 0.0
    %983 = vmatprep.subr.mxu0 0.0
    %984 = vmatpush1.msra.mxu0 0.0
    %985 = vmatprep.subr.mxu0 0.0
    %986 = vmatpush1.msra.mxu0 0.0
    %987 = vmatprep.subr.mxu0 0.0
    %988 = vmatpush1.msra.mxu0 0.0
    %989 = vmatprep.subr.mxu0 0.0
    %990 = vmatpush1.msra.mxu0 0.0
    %991 = vmatprep.subr.mxu0 0.0
    %992 = vmatpush1.msra.mxu0 %v140
    %993 = vmatprep.subr.mxu0 0.0
    %994 = vmatpush1.msra.mxu0 %v139
    %995 = vmatprep.subr.mxu0 0.0
    %996 = vmatpush1.msra.mxu0 %v138
    %997 = vmatprep.subr.mxu0 0.0
    %998 = vmatpush1.msra.mxu0 %v137
    %999 = vmatprep.subr.mxu0 0.0
    %1000 = vmatpush2.msra.mxu0 0.0
    %1001 = vmatprep.subr.mxu0 0.0
    %1002 = vmatpush2.msra.mxu0 0.0
    %1003 = vmatprep.subr.mxu0 0.0
    %1004 = vmatpush2.msra.mxu0 0.0
    %1005 = vmatprep.subr.mxu0 0.0
    %1006 = vmatpush2.msra.mxu0 0.0
    %1007 = vmatprep.subr.mxu0 0.0
    %1008 = vmatpush2.msra.mxu0 0.0
    %1009 = vmatprep.subr.mxu0 0.0
    %1010 = vmatpush2.msra.mxu0 0.0
    %1011 = vmatprep.subr.mxu0 0.0
    %1012 = vmatpush2.msra.mxu0 0.0
    %1013 = vmatprep.subr.mxu0 0.0
    %1014 = vmatpush2.msra.mxu0 0.0
    %1015 = vmatprep.subr.mxu0 0.0
    %1016 = vmatpush2.msra.mxu0 0.0
    %1017 = vmatprep.subr.mxu0 0.0
    %1018 = vmatpush2.msra.mxu0 0.0
    %1019 = vmatprep.subr.mxu0 0.0
    %1020 = vmatpush2.msra.mxu0 0.0
    %1021 = vmatprep.subr.mxu0 0.0
    %1022 = vmatpush2.msra.mxu0 0.0
    %1023 = vmatprep.subr.mxu0 0.0
    %1024 = vmatpush2.msra.mxu0 0.0
    %1025 = vmatprep.subr.mxu0 0.0
    %1026 = vmatpush2.msra.mxu0 0.0
    %1027 = vmatprep.subr.mxu0 0.0
    %1028 = vmatpush2.msra.mxu0 0.0
    %1029 = vmatprep.subr.mxu0 0.0
    %1030 = vmatpush2.msra.mxu0 0.0
    %1031 = vmatprep.mubr.f32.mxu0 0.0
    %1032 = vmatmul.mubr.f32.gmra.mxu0 %v965
    %v1033 = vpop.f32.mrf.mxu0
    %v1034 = vadd.f32 0.0, %v1033
    %v1035 = vpop.f32.mrf.mxu0
    %1036 = vdwg.mxu0
    %v1037 = vadd.f32 %v373, %v1034
    %v1038 = vxor.u32 %v1037, 2147483648
    %v1039 = vmul.f32 %v1038, 1.442695
    %v1040 = vpow.pop %v1039
    %v1041 = vadd.f32 %v1040, 1.0
    %v1042 = vrcp.pop %v1041
    %v1043 = vmul.f32 1.0, %v1042
    %v1044 = vadd.f32 %v1034, %v838
    %1046 = vrot.lane.b32.xlu0 %v1044, 64
    %v1047 = vpop.permute.xlu0 %1046
    %v1049 = vmul.f32 %v1043, %v1047
    %1051 = vrot.lane.b32.xlu0 %v1049, 64
    %v1052 = vpop.permute.xlu0 %1051
    %v1054 = vadd.f32 %v373, %v1052
    %v1055 = vtanh.pop %v1054
    %v1056 = vsub.f32 1.0, %v1043
    %1058 = vrot.lane.b32.xlu0 %v1055, 96
    %v1059 = vpop.permute.xlu0 %1058
    %v1061 = vmul.f32 %v1056, %v1059
    %v1062 = vmul.f32 %v1043, %v961
    %v1063 = vadd.f32 %v1061, %v1062
    %1065 = vrot.lane.b32.xlu0 %v1063, 96
    %v1066 = vpop.permute.xlu0 %1065
    %v1067 = vsel %vm751, %v1066, 0
    %1069 = vmatprep.subr.mxu0 0.0
    %1070 = vmatpush1.msra.mxu0 0.0
    %1071 = vmatprep.subr.mxu0 0.0
    %1072 = vmatpush1.msra.mxu0 0.0
    %1073 = vmatprep.subr.mxu0 0.0
    %1074 = vmatpush1.msra.mxu0 0.0
    %1075 = vmatprep.subr.mxu0 0.0
    %1076 = vmatpush1.msra.mxu0 0.0
    %1077 = vmatprep.subr.mxu0 0.0
    %1078 = vmatpush1.msra.mxu0 0.0
    %1079 = vmatprep.subr.mxu0 0.0
    %1080 = vmatpush1.msra.mxu0 0.0
    %1081 = vmatprep.subr.mxu0 0.0
    %1082 = vmatpush1.msra.mxu0 0.0
    %1083 = vmatprep.subr.mxu0 0.0
    %1084 = vmatpush1.msra.mxu0 0.0
    %1085 = vmatprep.subr.mxu0 0.0
    %1086 = vmatpush1.msra.mxu0 0.0
    %1087 = vmatprep.subr.mxu0 0.0
    %1088 = vmatpush1.msra.mxu0 0.0
    %1089 = vmatprep.subr.mxu0 0.0
    %1090 = vmatpush1.msra.mxu0 0.0
    %1091 = vmatprep.subr.mxu0 0.0
    %1092 = vmatpush1.msra.mxu0 0.0
    %1093 = vmatprep.subr.mxu0 0.0
    %1094 = vmatpush1.msra.mxu0 %v140
    %1095 = vmatprep.subr.mxu0 0.0
    %1096 = vmatpush1.msra.mxu0 %v139
    %1097 = vmatprep.subr.mxu0 0.0
    %1098 = vmatpush1.msra.mxu0 %v138
    %1099 = vmatprep.subr.mxu0 0.0
    %1100 = vmatpush1.msra.mxu0 %v137
    %1101 = vmatprep.subr.mxu0 0.0
    %1102 = vmatpush2.msra.mxu0 0.0
    %1103 = vmatprep.subr.mxu0 0.0
    %1104 = vmatpush2.msra.mxu0 0.0
    %1105 = vmatprep.subr.mxu0 0.0
    %1106 = vmatpush2.msra.mxu0 0.0
    %1107 = vmatprep.subr.mxu0 0.0
    %1108 = vmatpush2.msra.mxu0 0.0
    %1109 = vmatprep.subr.mxu0 0.0
    %1110 = vmatpush2.msra.mxu0 0.0
    %1111 = vmatprep.subr.mxu0 0.0
    %1112 = vmatpush2.msra.mxu0 0.0
    %1113 = vmatprep.subr.mxu0 0.0
    %1114 = vmatpush2.msra.mxu0 0.0
    %1115 = vmatprep.subr.mxu0 0.0
    %1116 = vmatpush2.msra.mxu0 0.0
    %1117 = vmatprep.subr.mxu0 0.0
    %1118 = vmatpush2.msra.mxu0 0.0
    %1119 = vmatprep.subr.mxu0 0.0
    %1120 = vmatpush2.msra.mxu0 0.0
    %1121 = vmatprep.subr.mxu0 0.0
    %1122 = vmatpush2.msra.mxu0 0.0
    %1123 = vmatprep.subr.mxu0 0.0
    %1124 = vmatpush2.msra.mxu0 0.0
    %1125 = vmatprep.subr.mxu0 0.0
    %1126 = vmatpush2.msra.mxu0 0.0
    %1127 = vmatprep.subr.mxu0 0.0
    %1128 = vmatpush2.msra.mxu0 0.0
    %1129 = vmatprep.subr.mxu0 0.0
    %1130 = vmatpush2.msra.mxu0 0.0
    %1131 = vmatprep.subr.mxu0 0.0
    %1132 = vmatpush2.msra.mxu0 0.0
    %1133 = vmatprep.mubr.f32.mxu0 0.0
    %1134 = vmatmul.mubr.f32.gmra.mxu0 %v1067
    %v1135 = vpop.f32.mrf.mxu0
    %v1136 = vadd.f32 0.0, %v1135
    %v1137 = vpop.f32.mrf.mxu0
    %1138 = vdwg.mxu0
    %v1139 = vadd.f32 %v448, %v1136
    %v1140 = vxor.u32 %v1139, 2147483648
    %v1141 = vmul.f32 %v1140, 1.442695
    %v1142 = vpow.pop %v1141
    %v1143 = vadd.f32 %v1142, 1.0
    %v1144 = vrcp.pop %v1143
    %v1145 = vmul.f32 1.0, %v1144
    %v1146 = vadd.f32 %v1136, %v838
    %1148 = vrot.lane.b32.xlu0 %v1146, 64
    %v1149 = vpop.permute.xlu0 %1148
    %v1151 = vmul.f32 %v1145, %v1149
    %1153 = vrot.lane.b32.xlu0 %v1151, 64
    %v1154 = vpop.permute.xlu0 %1153
    %v1156 = vadd.f32 %v448, %v1154
    %v1157 = vtanh.pop %v1156
    %v1158 = vsub.f32 1.0, %v1145
    %1160 = vrot.lane.b32.xlu0 %v1157, 96
    %v1161 = vpop.permute.xlu0 %1160
    %v1163 = vmul.f32 %v1158, %v1161
    %v1164 = vmul.f32 %v1145, %v1063
    %v1165 = vadd.f32 %v1163, %v1164
    %1167 = vrot.lane.b32.xlu0 %v1165, 96
    %v1168 = vpop.permute.xlu0 %1167
    %v1169 = vsel %vm751, %v1168, 0
    %1171 = vmatprep.subr.mxu0 0.0
    %1172 = vmatpush1.msra.mxu0 0.0
    %1173 = vmatprep.subr.mxu0 0.0
    %1174 = vmatpush1.msra.mxu0 0.0
    %1175 = vmatprep.subr.mxu0 0.0
    %1176 = vmatpush1.msra.mxu0 0.0
    %1177 = vmatprep.subr.mxu0 0.0
    %1178 = vmatpush1.msra.mxu0 0.0
    %1179 = vmatprep.subr.mxu0 0.0
    %1180 = vmatpush1.msra.mxu0 0.0
    %1181 = vmatprep.subr.mxu0 0.0
    %1182 = vmatpush1.msra.mxu0 0.0
    %1183 = vmatprep.subr.mxu0 0.0
    %1184 = vmatpush1.msra.mxu0 0.0
    %1185 = vmatprep.subr.mxu0 0.0
    %1186 = vmatpush1.msra.mxu0 0.0
    %1187 = vmatprep.subr.mxu0 0.0
    %1188 = vmatpush1.msra.mxu0 0.0
    %1189 = vmatprep.subr.mxu0 0.0
    %1190 = vmatpush1.msra.mxu0 0.0
    %1191 = vmatprep.subr.mxu0 0.0
    %1192 = vmatpush1.msra.mxu0 0.0
    %1193 = vmatprep.subr.mxu0 0.0
    %1194 = vmatpush1.msra.mxu0 0.0
    %1195 = vmatprep.subr.mxu0 0.0
    %1196 = vmatpush1.msra.mxu0 %v140
    %1197 = vmatprep.subr.mxu0 0.0
    %1198 = vmatpush1.msra.mxu0 %v139
    %1199 = vmatprep.subr.mxu0 0.0
    %1200 = vmatpush1.msra.mxu0 %v138
    %1201 = vmatprep.subr.mxu0 0.0
    %1202 = vmatpush1.msra.mxu0 %v137
    %1203 = vmatprep.subr.mxu0 0.0
    %1204 = vmatpush2.msra.mxu0 0.0
    %1205 = vmatprep.subr.mxu0 0.0
    %1206 = vmatpush2.msra.mxu0 0.0
    %1207 = vmatprep.subr.mxu0 0.0
    %1208 = vmatpush2.msra.mxu0 0.0
    %1209 = vmatprep.subr.mxu0 0.0
    %1210 = vmatpush2.msra.mxu0 0.0
    %1211 = vmatprep.subr.mxu0 0.0
    %1212 = vmatpush2.msra.mxu0 0.0
    %1213 = vmatprep.subr.mxu0 0.0
    %1214 = vmatpush2.msra.mxu0 0.0
    %1215 = vmatprep.subr.mxu0 0.0
    %1216 = vmatpush2.msra.mxu0 0.0
    %1217 = vmatprep.subr.mxu0 0.0
    %1218 = vmatpush2.msra.mxu0 0.0
    %1219 = vmatprep.subr.mxu0 0.0
    %1220 = vmatpush2.msra.mxu0 0.0
    %1221 = vmatprep.subr.mxu0 0.0
    %1222 = vmatpush2.msra.mxu0 0.0
    %1223 = vmatprep.subr.mxu0 0.0
    %1224 = vmatpush2.msra.mxu0 0.0
    %1225 = vmatprep.subr.mxu0 0.0
    %1226 = vmatpush2.msra.mxu0 0.0
    %1227 = vmatprep.subr.mxu0 0.0
    %1228 = vmatpush2.msra.mxu0 0.0
    %1229 = vmatprep.subr.mxu0 0.0
    %1230 = vmatpush2.msra.mxu0 0.0
    %1231 = vmatprep.subr.mxu0 0.0
    %1232 = vmatpush2.msra.mxu0 0.0
    %1233 = vmatprep.subr.mxu0 0.0
    %1234 = vmatpush2.msra.mxu0 0.0
    %1235 = vmatprep.mubr.f32.mxu0 0.0
    %1236 = vmatmul.mubr.f32.gmra.mxu0 %v1169
    %v1237 = vpop.f32.mrf.mxu0
    %v1238 = vadd.f32 0.0, %v1237
    %v1239 = vpop.f32.mrf.mxu0
    %1240 = vdwg.mxu0
    %v1241 = vadd.f32 %v523, %v1238
    %v1242 = vxor.u32 %v1241, 2147483648
    %v1243 = vmul.f32 %v1242, 1.442695
    %v1244 = vpow.pop %v1243
    %v1245 = vadd.f32 %v1244, 1.0
    %v1246 = vrcp.pop %v1245
    %v1247 = vmul.f32 1.0, %v1246
    %v1248 = vadd.f32 %v1238, %v838
    %1250 = vrot.lane.b32.xlu0 %v1248, 64
    %v1251 = vpop.permute.xlu0 %1250
    %v1253 = vmul.f32 %v1247, %v1251
    %1255 = vrot.lane.b32.xlu0 %v1253, 64
    %v1256 = vpop.permute.xlu0 %1255
    %v1258 = vadd.f32 %v523, %v1256
    %v1259 = vtanh.pop %v1258
    %v1260 = vsub.f32 1.0, %v1247
    %1262 = vrot.lane.b32.xlu0 %v1259, 96
    %v1263 = vpop.permute.xlu0 %1262
    %v1265 = vmul.f32 %v1260, %v1263
    %v1266 = vmul.f32 %v1247, %v1165
    %v1267 = vadd.f32 %v1265, %v1266
    %1269 = vrot.lane.b32.xlu0 %v1267, 96
    %v1270 = vpop.permute.xlu0 %1269
    %v1271 = vsel %vm751, %v1270, 0
    %1273 = vmatprep.subr.mxu0 0.0
    %1274 = vmatpush1.msra.mxu0 0.0
    %1275 = vmatprep.subr.mxu0 0.0
    %1276 = vmatpush1.msra.mxu0 0.0
    %1277 = vmatprep.subr.mxu0 0.0
    %1278 = vmatpush1.msra.mxu0 0.0
    %1279 = vmatprep.subr.mxu0 0.0
    %1280 = vmatpush1.msra.mxu0 0.0
    %1281 = vmatprep.subr.mxu0 0.0
    %1282 = vmatpush1.msra.mxu0 0.0
    %1283 = vmatprep.subr.mxu0 0.0
    %1284 = vmatpush1.msra.mxu0 0.0
    %1285 = vmatprep.subr.mxu0 0.0
    %1286 = vmatpush1.msra.mxu0 0.0
    %1287 = vmatprep.subr.mxu0 0.0
    %1288 = vmatpush1.msra.mxu0 0.0
    %1289 = vmatprep.subr.mxu0 0.0
    %1290 = vmatpush1.msra.mxu0 0.0
    %1291 = vmatprep.subr.mxu0 0.0
    %1292 = vmatpush1.msra.mxu0 0.0
    %1293 = vmatprep.subr.mxu0 0.0
    %1294 = vmatpush1.msra.mxu0 0.0
    %1295 = vmatprep.subr.mxu0 0.0
    %1296 = vmatpush1.msra.mxu0 0.0
    %1297 = vmatprep.subr.mxu0 0.0
    %1298 = vmatpush1.msra.mxu0 %v140
    %1299 = vmatprep.subr.mxu0 0.0
    %1300 = vmatpush1.msra.mxu0 %v139
    %1301 = vmatprep.subr.mxu0 0.0
    %1302 = vmatpush1.msra.mxu0 %v138
    %1303 = vmatprep.subr.mxu0 0.0
    %1304 = vmatpush1.msra.mxu0 %v137
    %1305 = vmatprep.subr.mxu0 0.0
    %1306 = vmatpush2.msra.mxu0 0.0
    %1307 = vmatprep.subr.mxu0 0.0
    %1308 = vmatpush2.msra.mxu0 0.0
    %1309 = vmatprep.subr.mxu0 0.0
    %1310 = vmatpush2.msra.mxu0 0.0
    %1311 = vmatprep.subr.mxu0 0.0
    %1312 = vmatpush2.msra.mxu0 0.0
    %1313 = vmatprep.subr.mxu0 0.0
    %1314 = vmatpush2.msra.mxu0 0.0
    %1315 = vmatprep.subr.mxu0 0.0
    %1316 = vmatpush2.msra.mxu0 0.0
    %1317 = vmatprep.subr.mxu0 0.0
    %1318 = vmatpush2.msra.mxu0 0.0
    %1319 = vmatprep.subr.mxu0 0.0
    %1320 = vmatpush2.msra.mxu0 0.0
    %1321 = vmatprep.subr.mxu0 0.0
    %1322 = vmatpush2.msra.mxu0 0.0
    %1323 = vmatprep.subr.mxu0 0.0
    %1324 = vmatpush2.msra.mxu0 0.0
    %1325 = vmatprep.subr.mxu0 0.0
    %1326 = vmatpush2.msra.mxu0 0.0
    %1327 = vmatprep.subr.mxu0 0.0
    %1328 = vmatpush2.msra.mxu0 0.0
    %1329 = vmatprep.subr.mxu0 0.0
    %1330 = vmatpush2.msra.mxu0 0.0
    %1331 = vmatprep.subr.mxu0 0.0
    %1332 = vmatpush2.msra.mxu0 0.0
    %1333 = vmatprep.subr.mxu0 0.0
    %1334 = vmatpush2.msra.mxu0 0.0
    %1335 = vmatprep.subr.mxu0 0.0
    %1336 = vmatpush2.msra.mxu0 0.0
    %1337 = vmatprep.mubr.f32.mxu0 0.0
    %1338 = vmatmul.mubr.f32.gmra.mxu0 %v1271
    %v1339 = vpop.f32.mrf.mxu0
    %v1340 = vadd.f32 0.0, %v1339
    %v1341 = vpop.f32.mrf.mxu0
    %1342 = vdwg.mxu0
    %v1343 = vadd.f32 %v598, %v1340
    %v1344 = vxor.u32 %v1343, 2147483648
    %v1345 = vmul.f32 %v1344, 1.442695
    %v1346 = vpow.pop %v1345
    %v1347 = vadd.f32 %v1346, 1.0
    %v1348 = vrcp.pop %v1347
    %v1349 = vmul.f32 1.0, %v1348
    %v1350 = vadd.f32 %v1340, %v838
    %1352 = vrot.lane.b32.xlu0 %v1350, 64
    %v1353 = vpop.permute.xlu0 %1352
    %v1355 = vmul.f32 %v1349, %v1353
    %1357 = vrot.lane.b32.xlu0 %v1355, 64
    %v1358 = vpop.permute.xlu0 %1357
    %v1360 = vadd.f32 %v598, %v1358
    %v1361 = vtanh.pop %v1360
    %v1362 = vsub.f32 1.0, %v1349
    %1364 = vrot.lane.b32.xlu0 %v1361, 96
    %v1365 = vpop.permute.xlu0 %1364
    %v1367 = vmul.f32 %v1362, %v1365
    %v1368 = vmul.f32 %v1349, %v1267
    %v1369 = vadd.f32 %v1367, %v1368
    %1371 = vrot.lane.b32.xlu0 %v1369, 96
    %v1372 = vpop.permute.xlu0 %1371
    %v1373 = vsel %vm751, %v1372, 0
    %1375 = vmatprep.subr.mxu0 0.0
    %1376 = vmatpush1.msra.mxu0 0.0
    %1377 = vmatprep.subr.mxu0 0.0
    %1378 = vmatpush1.msra.mxu0 0.0
    %1379 = vmatprep.subr.mxu0 0.0
    %1380 = vmatpush1.msra.mxu0 0.0
    %1381 = vmatprep.subr.mxu0 0.0
    %1382 = vmatpush1.msra.mxu0 0.0
    %1383 = vmatprep.subr.mxu0 0.0
    %1384 = vmatpush1.msra.mxu0 0.0
    %1385 = vmatprep.subr.mxu0 0.0
    %1386 = vmatpush1.msra.mxu0 0.0
    %1387 = vmatprep.subr.mxu0 0.0
    %1388 = vmatpush1.msra.mxu0 0.0
    %1389 = vmatprep.subr.mxu0 0.0
    %1390 = vmatpush1.msra.mxu0 0.0
    %1391 = vmatprep.subr.mxu0 0.0
    %1392 = vmatpush1.msra.mxu0 0.0
    %1393 = vmatprep.subr.mxu0 0.0
    %1394 = vmatpush1.msra.mxu0 0.0
    %1395 = vmatprep.subr.mxu0 0.0
    %1396 = vmatpush1.msra.mxu0 0.0
    %1397 = vmatprep.subr.mxu0 0.0
    %1398 = vmatpush1.msra.mxu0 0.0
    %1399 = vmatprep.subr.mxu0 0.0
    %1400 = vmatpush1.msra.mxu0 %v140
    %1401 = vmatprep.subr.mxu0 0.0
    %1402 = vmatpush1.msra.mxu0 %v139
    %1403 = vmatprep.subr.mxu0 0.0
    %1404 = vmatpush1.msra.mxu0 %v138
    %1405 = vmatprep.subr.mxu0 0.0
    %1406 = vmatpush1.msra.mxu0 %v137
    %1407 = vmatprep.subr.mxu0 0.0
    %1408 = vmatpush2.msra.mxu0 0.0
    %1409 = vmatprep.subr.mxu0 0.0
    %1410 = vmatpush2.msra.mxu0 0.0
    %1411 = vmatprep.subr.mxu0 0.0
    %1412 = vmatpush2.msra.mxu0 0.0
    %1413 = vmatprep.subr.mxu0 0.0
    %1414 = vmatpush2.msra.mxu0 0.0
    %1415 = vmatprep.subr.mxu0 0.0
    %1416 = vmatpush2.msra.mxu0 0.0
    %1417 = vmatprep.subr.mxu0 0.0
    %1418 = vmatpush2.msra.mxu0 0.0
    %1419 = vmatprep.subr.mxu0 0.0
    %1420 = vmatpush2.msra.mxu0 0.0
    %1421 = vmatprep.subr.mxu0 0.0
    %1422 = vmatpush2.msra.mxu0 0.0
    %1423 = vmatprep.subr.mxu0 0.0
    %1424 = vmatpush2.msra.mxu0 0.0
    %1425 = vmatprep.subr.mxu0 0.0
    %1426 = vmatpush2.msra.mxu0 0.0
    %1427 = vmatprep.subr.mxu0 0.0
    %1428 = vmatpush2.msra.mxu0 0.0
    %1429 = vmatprep.subr.mxu0 0.0
    %1430 = vmatpush2.msra.mxu0 0.0
    %1431 = vmatprep.subr.mxu0 0.0
    %1432 = vmatpush2.msra.mxu0 0.0
    %1433 = vmatprep.subr.mxu0 0.0
    %1434 = vmatpush2.msra.mxu0 0.0
    %1435 = vmatprep.subr.mxu0 0.0
    %1436 = vmatpush2.msra.mxu0 0.0
    %1437 = vmatprep.subr.mxu0 0.0
    %1438 = vmatpush2.msra.mxu0 0.0
    %1439 = vmatprep.mubr.f32.mxu0 0.0
    %1440 = vmatmul.mubr.f32.gmra.mxu0 %v1373
    %v1441 = vpop.f32.mrf.mxu0
    %v1442 = vadd.f32 0.0, %v1441
    %v1443 = vpop.f32.mrf.mxu0
    %1444 = vdwg.mxu0
    %v1445 = vadd.f32 %v673, %v1442
    %v1446 = vxor.u32 %v1445, 2147483648
    %v1447 = vmul.f32 %v1446, 1.442695
    %v1448 = vpow.pop %v1447
    %v1449 = vadd.f32 %v1448, 1.0
    %v1450 = vrcp.pop %v1449
    %v1451 = vmul.f32 1.0, %v1450
    %v1452 = vadd.f32 %v1442, %v838
    %1454 = vrot.lane.b32.xlu0 %v1452, 64
    %v1455 = vpop.permute.xlu0 %1454
    %v1457 = vmul.f32 %v1451, %v1455
    %1459 = vrot.lane.b32.xlu0 %v1457, 64
    %v1460 = vpop.permute.xlu0 %1459
    %v1462 = vadd.f32 %v673, %v1460
    %v1463 = vtanh.pop %v1462
    %v1464 = vsub.f32 1.0, %v1451
    %1466 = vrot.lane.b32.xlu0 %v1463, 96
    %v1467 = vpop.permute.xlu0 %1466
    %v1469 = vmul.f32 %v1464, %v1467
    %v1470 = vmul.f32 %v1451, %v1369
    %v1471 = vadd.f32 %v1469, %v1470
    %1473 = vrot.lane.b32.xlu0 %v1471, 96
    %v1474 = vpop.permute.xlu0 %1473
    %v1475 = vsel %vm751, %v1474, 0
    %1477 = vmatprep.subr.mxu0 0.0
    %1478 = vmatpush1.msra.mxu0 0.0
    %1479 = vmatprep.subr.mxu0 0.0
    %1480 = vmatpush1.msra.mxu0 0.0
    %1481 = vmatprep.subr.mxu0 0.0
    %1482 = vmatpush1.msra.mxu0 0.0
    %1483 = vmatprep.subr.mxu0 0.0
    %1484 = vmatpush1.msra.mxu0 0.0
    %1485 = vmatprep.subr.mxu0 0.0
    %1486 = vmatpush1.msra.mxu0 0.0
    %1487 = vmatprep.subr.mxu0 0.0
    %1488 = vmatpush1.msra.mxu0 0.0
    %1489 = vmatprep.subr.mxu0 0.0
    %1490 = vmatpush1.msra.mxu0 0.0
    %1491 = vmatprep.subr.mxu0 0.0
    %1492 = vmatpush1.msra.mxu0 0.0
    %1493 = vmatprep.subr.mxu0 0.0
    %1494 = vmatpush1.msra.mxu0 0.0
    %1495 = vmatprep.subr.mxu0 0.0
    %1496 = vmatpush1.msra.mxu0 0.0
    %1497 = vmatprep.subr.mxu0 0.0
    %1498 = vmatpush1.msra.mxu0 0.0
    %1499 = vmatprep.subr.mxu0 0.0
    %1500 = vmatpush1.msra.mxu0 0.0
    %1501 = vmatprep.subr.mxu0 0.0
    %1502 = vmatpush1.msra.mxu0 %v140
    %1503 = vmatprep.subr.mxu0 0.0
    %1504 = vmatpush1.msra.mxu0 %v139
    %1505 = vmatprep.subr.mxu0 0.0
    %1506 = vmatpush1.msra.mxu0 %v138
    %1507 = vmatprep.subr.mxu0 0.0
    %1508 = vmatpush1.msra.mxu0 %v137
    %1509 = vmatprep.subr.mxu0 0.0
    %1510 = vmatpush2.msra.mxu0 0.0
    %1511 = vmatprep.subr.mxu0 0.0
    %1512 = vmatpush2.msra.mxu0 0.0
    %1513 = vmatprep.subr.mxu0 0.0
    %1514 = vmatpush2.msra.mxu0 0.0
    %1515 = vmatprep.subr.mxu0 0.0
    %1516 = vmatpush2.msra.mxu0 0.0
    %1517 = vmatprep.subr.mxu0 0.0
    %1518 = vmatpush2.msra.mxu0 0.0
    %1519 = vmatprep.subr.mxu0 0.0
    %1520 = vmatpush2.msra.mxu0 0.0
    %1521 = vmatprep.subr.mxu0 0.0
    %1522 = vmatpush2.msra.mxu0 0.0
    %1523 = vmatprep.subr.mxu0 0.0
    %1524 = vmatpush2.msra.mxu0 0.0
    %1525 = vmatprep.subr.mxu0 0.0
    %1526 = vmatpush2.msra.mxu0 0.0
    %1527 = vmatprep.subr.mxu0 0.0
    %1528 = vmatpush2.msra.mxu0 0.0
    %1529 = vmatprep.subr.mxu0 0.0
    %1530 = vmatpush2.msra.mxu0 0.0
    %1531 = vmatprep.subr.mxu0 0.0
    %1532 = vmatpush2.msra.mxu0 0.0
    %1533 = vmatprep.subr.mxu0 0.0
    %1534 = vmatpush2.msra.mxu0 0.0
    %1535 = vmatprep.subr.mxu0 0.0
    %1536 = vmatpush2.msra.mxu0 0.0
    %1537 = vmatprep.subr.mxu0 0.0
    %1538 = vmatpush2.msra.mxu0 0.0
    %1539 = vmatprep.subr.mxu0 0.0
    %1540 = vmatpush2.msra.mxu0 0.0
    %1541 = vmatprep.mubr.f32.mxu0 0.0
    %1542 = vmatmul.mubr.f32.gmra.mxu0 %v1475
    %v1543 = vpop.f32.mrf.mxu0
    %v1544 = vadd.f32 0.0, %v1543
    %v1545 = vpop.f32.mrf.mxu0
    %1546 = vdwg.mxu0
    %v1547 = vadd.f32 %v748, %v1544
    %v1548 = vxor.u32 %v1547, 2147483648
    %v1549 = vmul.f32 %v1548, 1.442695
    %v1550 = vpow.pop %v1549
    %v1551 = vadd.f32 %v1550, 1.0
    %v1552 = vrcp.pop %v1551
    %v1553 = vmul.f32 1.0, %v1552
    %v1554 = vadd.f32 %v1544, %v838
    %1556 = vrot.lane.b32.xlu0 %v1554, 64
    %v1557 = vpop.permute.xlu0 %1556
    %v1559 = vmul.f32 %v1553, %v1557
    %1561 = vrot.lane.b32.xlu0 %v1559, 64
    %v1562 = vpop.permute.xlu0 %1561
    %v1564 = vadd.f32 %v748, %v1562
    %v1565 = vtanh.pop %v1564
    %v1566 = vsub.f32 1.0, %v1553
    %1568 = vrot.lane.b32.xlu0 %v1565, 96
    %v1569 = vpop.permute.xlu0 %1568
    %v1571 = vmul.f32 %v1566, %v1569
    %v1572 = vmul.f32 %v1553, %v1471
    %v1573 = vadd.f32 %v1571, %v1572
    %v1574 = vld [vmem:[#allocation7] sm:$0xff]
    %v1575 = vld [vmem:[#allocation7 + $0x8] sm:$0xff]
    %v1576 = vld [vmem:[#allocation7 + $0x10] sm:$0xff]
    %v1577 = vld [vmem:[#allocation7 + $0x18] sm:$0xff]
    %v1578 = vld [vmem:[#allocation8] sm:$0xff]
    %v1579 = vld [vmem:[#allocation8 + $0x8] sm:$0xff]
    %v1580 = vld [vmem:[#allocation8 + $0x10] sm:$0xff]
    %v1581 = vld [vmem:[#allocation8 + $0x18] sm:$0xff]
    %v1582 = vld [vmem:[%s7] sm:$0x1]
    %v1583 = vld [vmem:[%s8] sm:$0x1]
    %v1585 = vlaneseq
    %v1586 = vshrl.u32 %v1585, 7
    %v1587 = vsub.s32 0, %v1586
    %v1588 = vrot.slane %v1582, %v1587
    %1590 = vmatprep.subr.mxu0 0.0
    %1591 = vmatpush1.msra.mxu0 0.0
    %1592 = vmatprep.subr.mxu0 0.0
    %1593 = vmatpush1.msra.mxu0 0.0
    %1594 = vmatprep.subr.mxu0 0.0
    %1595 = vmatpush1.msra.mxu0 0.0
    %1596 = vmatprep.subr.mxu0 0.0
    %1597 = vmatpush1.msra.mxu0 0.0
    %1598 = vmatprep.subr.mxu0 0.0
    %1599 = vmatpush1.msra.mxu0 0.0
    %1600 = vmatprep.subr.mxu0 0.0
    %1601 = vmatpush1.msra.mxu0 0.0
    %1602 = vmatprep.subr.mxu0 0.0
    %1603 = vmatpush1.msra.mxu0 0.0
    %1604 = vmatprep.subr.mxu0 0.0
    %1605 = vmatpush1.msra.mxu0 0.0
    %1606 = vmatprep.subr.mxu0 0.0
    %1607 = vmatpush1.msra.mxu0 0.0
    %1608 = vmatprep.subr.mxu0 0.0
    %1609 = vmatpush1.msra.mxu0 0.0
    %1610 = vmatprep.subr.mxu0 0.0
    %1611 = vmatpush1.msra.mxu0 0.0
    %1612 = vmatprep.subr.mxu0 0.0
    %1613 = vmatpush1.msra.mxu0 0.0
    %1614 = vmatprep.subr.mxu0 0.0
    %1615 = vmatpush1.msra.mxu0 %v1577
    %1616 = vmatprep.subr.mxu0 0.0
    %1617 = vmatpush1.msra.mxu0 %v1576
    %1618 = vmatprep.subr.mxu0 0.0
    %1619 = vmatpush1.msra.mxu0 %v1575
    %1620 = vmatprep.subr.mxu0 0.0
    %1621 = vmatpush1.msra.mxu0 %v1574
    %1622 = vmatprep.subr.mxu0 0.0
    %1623 = vmatpush2.msra.mxu0 0.0
    %1624 = vmatprep.subr.mxu0 0.0
    %1625 = vmatpush2.msra.mxu0 0.0
    %1626 = vmatprep.subr.mxu0 0.0
    %1627 = vmatpush2.msra.mxu0 0.0
    %1628 = vmatprep.subr.mxu0 0.0
    %1629 = vmatpush2.msra.mxu0 0.0
    %1630 = vmatprep.subr.mxu0 0.0
    %1631 = vmatpush2.msra.mxu0 0.0
    %1632 = vmatprep.subr.mxu0 0.0
    %1633 = vmatpush2.msra.mxu0 0.0
    %1634 = vmatprep.subr.mxu0 0.0
    %1635 = vmatpush2.msra.mxu0 0.0
    %1636 = vmatprep.subr.mxu0 0.0
    %1637 = vmatpush2.msra.mxu0 0.0
    %1638 = vmatprep.subr.mxu0 0.0
    %1639 = vmatpush2.msra.mxu0 0.0
    %1640 = vmatprep.subr.mxu0 0.0
    %1641 = vmatpush2.msra.mxu0 0.0
    %1642 = vmatprep.subr.mxu0 0.0
    %1643 = vmatpush2.msra.mxu0 0.0
    %1644 = vmatprep.subr.mxu0 0.0
    %1645 = vmatpush2.msra.mxu0 0.0
    %1646 = vmatprep.subr.mxu0 0.0
    %1647 = vmatpush2.msra.mxu0 0.0
    %1648 = vmatprep.subr.mxu0 0.0
    %1649 = vmatpush2.msra.mxu0 0.0
    %1650 = vmatprep.subr.mxu0 0.0
    %1651 = vmatpush2.msra.mxu0 0.0
    %1652 = vmatprep.subr.mxu0 0.0
    %1653 = vmatpush2.msra.mxu0 0.0
    %1654 = vmatprep.mubr.f32.mxu0 0.0
    %1655 = vmatmul.mubr.f32.gmra.mxu0 %v863
    %v1656 = vpop.f32.mrf.mxu0
    %v1657 = vadd.f32 %v1588, %v1656
    %v1658 = vpop.f32.mrf.mxu0
    %1659 = vdwg.mxu0
    %1660 = vmatprep.subr.mxu0 0.0
    %1661 = vmatpush1.msra.mxu0 0.0
    %1662 = vmatprep.subr.mxu0 0.0
    %1663 = vmatpush1.msra.mxu0 0.0
    %1664 = vmatprep.subr.mxu0 0.0
    %1665 = vmatpush1.msra.mxu0 0.0
    %1666 = vmatprep.subr.mxu0 0.0
    %1667 = vmatpush1.msra.mxu0 0.0
    %1668 = vmatprep.subr.mxu0 0.0
    %1669 = vmatpush1.msra.mxu0 0.0
    %1670 = vmatprep.subr.mxu0 0.0
    %1671 = vmatpush1.msra.mxu0 0.0
    %1672 = vmatprep.subr.mxu0 0.0
    %1673 = vmatpush1.msra.mxu0 0.0
    %1674 = vmatprep.subr.mxu0 0.0
    %1675 = vmatpush1.msra.mxu0 0.0
    %1676 = vmatprep.subr.mxu0 0.0
    %1677 = vmatpush1.msra.mxu0 0.0
    %1678 = vmatprep.subr.mxu0 0.0
    %1679 = vmatpush1.msra.mxu0 0.0
    %1680 = vmatprep.subr.mxu0 0.0
    %1681 = vmatpush1.msra.mxu0 0.0
    %1682 = vmatprep.subr.mxu0 0.0
    %1683 = vmatpush1.msra.mxu0 0.0
    %1684 = vmatprep.subr.mxu0 0.0
    %1685 = vmatpush1.msra.mxu0 %v1577
    %1686 = vmatprep.subr.mxu0 0.0
    %1687 = vmatpush1.msra.mxu0 %v1576
    %1688 = vmatprep.subr.mxu0 0.0
    %1689 = vmatpush1.msra.mxu0 %v1575
    %1690 = vmatprep.subr.mxu0 0.0
    %1691 = vmatpush1.msra.mxu0 %v1574
    %1692 = vmatprep.subr.mxu0 0.0
    %1693 = vmatpush2.msra.mxu0 0.0
    %1694 = vmatprep.subr.mxu0 0.0
    %1695 = vmatpush2.msra.mxu0 0.0
    %1696 = vmatprep.subr.mxu0 0.0
    %1697 = vmatpush2.msra.mxu0 0.0
    %1698 = vmatprep.subr.mxu0 0.0
    %1699 = vmatpush2.msra.mxu0 0.0
    %1700 = vmatprep.subr.mxu0 0.0
    %1701 = vmatpush2.msra.mxu0 0.0
    %1702 = vmatprep.subr.mxu0 0.0
    %1703 = vmatpush2.msra.mxu0 0.0
    %1704 = vmatprep.subr.mxu0 0.0
    %1705 = vmatpush2.msra.mxu0 0.0
    %1706 = vmatprep.subr.mxu0 0.0
    %1707 = vmatpush2.msra.mxu0 0.0
    %1708 = vmatprep.subr.mxu0 0.0
    %1709 = vmatpush2.msra.mxu0 0.0
    %1710 = vmatprep.subr.mxu0 0.0
    %1711 = vmatpush2.msra.mxu0 0.0
    %1712 = vmatprep.subr.mxu0 0.0
    %1713 = vmatpush2.msra.mxu0 0.0
    %1714 = vmatprep.subr.mxu0 0.0
    %1715 = vmatpush2.msra.mxu0 0.0
    %1716 = vmatprep.subr.mxu0 0.0
    %1717 = vmatpush2.msra.mxu0 0.0
    %1718 = vmatprep.subr.mxu0 0.0
    %1719 = vmatpush2.msra.mxu0 0.0
    %1720 = vmatprep.subr.mxu0 0.0
    %1721 = vmatpush2.msra.mxu0 0.0
    %1722 = vmatprep.subr.mxu0 0.0
    %1723 = vmatpush2.msra.mxu0 0.0
    %1724 = vmatprep.mubr.f32.mxu0 0.0
    %1725 = vmatmul.mubr.f32.gmra.mxu0 %v965
    %v1726 = vpop.f32.mrf.mxu0
    %v1727 = vadd.f32 %v1588, %v1726
    %v1728 = vpop.f32.mrf.mxu0
    %1729 = vdwg.mxu0
    %1730 = vmatprep.subr.mxu0 0.0
    %1731 = vmatpush1.msra.mxu0 0.0
    %1732 = vmatprep.subr.mxu0 0.0
    %1733 = vmatpush1.msra.mxu0 0.0
    %1734 = vmatprep.subr.mxu0 0.0
    %1735 = vmatpush1.msra.mxu0 0.0
    %1736 = vmatprep.subr.mxu0 0.0
    %1737 = vmatpush1.msra.mxu0 0.0
    %1738 = vmatprep.subr.mxu0 0.0
    %1739 = vmatpush1.msra.mxu0 0.0
    %1740 = vmatprep.subr.mxu0 0.0
    %1741 = vmatpush1.msra.mxu0 0.0
    %1742 = vmatprep.subr.mxu0 0.0
    %1743 = vmatpush1.msra.mxu0 0.0
    %1744 = vmatprep.subr.mxu0 0.0
    %1745 = vmatpush1.msra.mxu0 0.0
    %1746 = vmatprep.subr.mxu0 0.0
    %1747 = vmatpush1.msra.mxu0 0.0
    %1748 = vmatprep.subr.mxu0 0.0
    %1749 = vmatpush1.msra.mxu0 0.0
    %1750 = vmatprep.subr.mxu0 0.0
    %1751 = vmatpush1.msra.mxu0 0.0
    %1752 = vmatprep.subr.mxu0 0.0
    %1753 = vmatpush1.msra.mxu0 0.0
    %1754 = vmatprep.subr.mxu0 0.0
    %1755 = vmatpush1.msra.mxu0 %v1577
    %1756 = vmatprep.subr.mxu0 0.0
    %1757 = vmatpush1.msra.mxu0 %v1576
    %1758 = vmatprep.subr.mxu0 0.0
    %1759 = vmatpush1.msra.mxu0 %v1575
    %1760 = vmatprep.subr.mxu0 0.0
    %1761 = vmatpush1.msra.mxu0 %v1574
    %1762 = vmatprep.subr.mxu0 0.0
    %1763 = vmatpush2.msra.mxu0 0.0
    %1764 = vmatprep.subr.mxu0 0.0
    %1765 = vmatpush2.msra.mxu0 0.0
    %1766 = vmatprep.subr.mxu0 0.0
    %1767 = vmatpush2.msra.mxu0 0.0
    %1768 = vmatprep.subr.mxu0 0.0
    %1769 = vmatpush2.msra.mxu0 0.0
    %1770 = vmatprep.subr.mxu0 0.0
    %1771 = vmatpush2.msra.mxu0 0.0
    %1772 = vmatprep.subr.mxu0 0.0
    %1773 = vmatpush2.msra.mxu0 0.0
    %1774 = vmatprep.subr.mxu0 0.0
    %1775 = vmatpush2.msra.mxu0 0.0
    %1776 = vmatprep.subr.mxu0 0.0
    %1777 = vmatpush2.msra.mxu0 0.0
    %1778 = vmatprep.subr.mxu0 0.0
    %1779 = vmatpush2.msra.mxu0 0.0
    %1780 = vmatprep.subr.mxu0 0.0
    %1781 = vmatpush2.msra.mxu0 0.0
    %1782 = vmatprep.subr.mxu0 0.0
    %1783 = vmatpush2.msra.mxu0 0.0
    %1784 = vmatprep.subr.mxu0 0.0
    %1785 = vmatpush2.msra.mxu0 0.0
    %1786 = vmatprep.subr.mxu0 0.0
    %1787 = vmatpush2.msra.mxu0 0.0
    %1788 = vmatprep.subr.mxu0 0.0
    %1789 = vmatpush2.msra.mxu0 0.0
    %1790 = vmatprep.subr.mxu0 0.0
    %1791 = vmatpush2.msra.mxu0 0.0
    %1792 = vmatprep.subr.mxu0 0.0
    %1793 = vmatpush2.msra.mxu0 0.0
    %1794 = vmatprep.mubr.f32.mxu0 0.0
    %1795 = vmatmul.mubr.f32.gmra.mxu0 %v1067
    %v1796 = vpop.f32.mrf.mxu0
    %v1797 = vadd.f32 %v1588, %v1796
    %v1798 = vpop.f32.mrf.mxu0
    %1799 = vdwg.mxu0
    %1800 = vmatprep.subr.mxu0 0.0
    %1801 = vmatpush1.msra.mxu0 0.0
    %1802 = vmatprep.subr.mxu0 0.0
    %1803 = vmatpush1.msra.mxu0 0.0
    %1804 = vmatprep.subr.mxu0 0.0
    %1805 = vmatpush1.msra.mxu0 0.0
    %1806 = vmatprep.subr.mxu0 0.0
    %1807 = vmatpush1.msra.mxu0 0.0
    %1808 = vmatprep.subr.mxu0 0.0
    %1809 = vmatpush1.msra.mxu0 0.0
    %1810 = vmatprep.subr.mxu0 0.0
    %1811 = vmatpush1.msra.mxu0 0.0
    %1812 = vmatprep.subr.mxu0 0.0
    %1813 = vmatpush1.msra.mxu0 0.0
    %1814 = vmatprep.subr.mxu0 0.0
    %1815 = vmatpush1.msra.mxu0 0.0
    %1816 = vmatprep.subr.mxu0 0.0
    %1817 = vmatpush1.msra.mxu0 0.0
    %1818 = vmatprep.subr.mxu0 0.0
    %1819 = vmatpush1.msra.mxu0 0.0
    %1820 = vmatprep.subr.mxu0 0.0
    %1821 = vmatpush1.msra.mxu0 0.0
    %1822 = vmatprep.subr.mxu0 0.0
    %1823 = vmatpush1.msra.mxu0 0.0
    %1824 = vmatprep.subr.mxu0 0.0
    %1825 = vmatpush1.msra.mxu0 %v1577
    %1826 = vmatprep.subr.mxu0 0.0
    %1827 = vmatpush1.msra.mxu0 %v1576
    %1828 = vmatprep.subr.mxu0 0.0
    %1829 = vmatpush1.msra.mxu0 %v1575
    %1830 = vmatprep.subr.mxu0 0.0
    %1831 = vmatpush1.msra.mxu0 %v1574
    %1832 = vmatprep.subr.mxu0 0.0
    %1833 = vmatpush2.msra.mxu0 0.0
    %1834 = vmatprep.subr.mxu0 0.0
    %1835 = vmatpush2.msra.mxu0 0.0
    %1836 = vmatprep.subr.mxu0 0.0
    %1837 = vmatpush2.msra.mxu0 0.0
    %1838 = vmatprep.subr.mxu0 0.0
    %1839 = vmatpush2.msra.mxu0 0.0
    %1840 = vmatprep.subr.mxu0 0.0
    %1841 = vmatpush2.msra.mxu0 0.0
    %1842 = vmatprep.subr.mxu0 0.0
    %1843 = vmatpush2.msra.mxu0 0.0
    %1844 = vmatprep.subr.mxu0 0.0
    %1845 = vmatpush2.msra.mxu0 0.0
    %1846 = vmatprep.subr.mxu0 0.0
    %1847 = vmatpush2.msra.mxu0 0.0
    %1848 = vmatprep.subr.mxu0 0.0
    %1849 = vmatpush2.msra.mxu0 0.0
    %1850 = vmatprep.subr.mxu0 0.0
    %1851 = vmatpush2.msra.mxu0 0.0
    %1852 = vmatprep.subr.mxu0 0.0
    %1853 = vmatpush2.msra.mxu0 0.0
    %1854 = vmatprep.subr.mxu0 0.0
    %1855 = vmatpush2.msra.mxu0 0.0
    %1856 = vmatprep.subr.mxu0 0.0
    %1857 = vmatpush2.msra.mxu0 0.0
    %1858 = vmatprep.subr.mxu0 0.0
    %1859 = vmatpush2.msra.mxu0 0.0
    %1860 = vmatprep.subr.mxu0 0.0
    %1861 = vmatpush2.msra.mxu0 0.0
    %1862 = vmatprep.subr.mxu0 0.0
    %1863 = vmatpush2.msra.mxu0 0.0
    %1864 = vmatprep.mubr.f32.mxu0 0.0
    %1865 = vmatmul.mubr.f32.gmra.mxu0 %v1169
    %v1866 = vpop.f32.mrf.mxu0
    %v1867 = vadd.f32 %v1588, %v1866
    %v1868 = vpop.f32.mrf.mxu0
    %1869 = vdwg.mxu0
    %1870 = vmatprep.subr.mxu0 0.0
    %1871 = vmatpush1.msra.mxu0 0.0
    %1872 = vmatprep.subr.mxu0 0.0
    %1873 = vmatpush1.msra.mxu0 0.0
    %1874 = vmatprep.subr.mxu0 0.0
    %1875 = vmatpush1.msra.mxu0 0.0
    %1876 = vmatprep.subr.mxu0 0.0
    %1877 = vmatpush1.msra.mxu0 0.0
    %1878 = vmatprep.subr.mxu0 0.0
    %1879 = vmatpush1.msra.mxu0 0.0
    %1880 = vmatprep.subr.mxu0 0.0
    %1881 = vmatpush1.msra.mxu0 0.0
    %1882 = vmatprep.subr.mxu0 0.0
    %1883 = vmatpush1.msra.mxu0 0.0
    %1884 = vmatprep.subr.mxu0 0.0
    %1885 = vmatpush1.msra.mxu0 0.0
    %1886 = vmatprep.subr.mxu0 0.0
    %1887 = vmatpush1.msra.mxu0 0.0
    %1888 = vmatprep.subr.mxu0 0.0
    %1889 = vmatpush1.msra.mxu0 0.0
    %1890 = vmatprep.subr.mxu0 0.0
    %1891 = vmatpush1.msra.mxu0 0.0
    %1892 = vmatprep.subr.mxu0 0.0
    %1893 = vmatpush1.msra.mxu0 0.0
    %1894 = vmatprep.subr.mxu0 0.0
    %1895 = vmatpush1.msra.mxu0 %v1577
    %1896 = vmatprep.subr.mxu0 0.0
    %1897 = vmatpush1.msra.mxu0 %v1576
    %1898 = vmatprep.subr.mxu0 0.0
    %1899 = vmatpush1.msra.mxu0 %v1575
    %1900 = vmatprep.subr.mxu0 0.0
    %1901 = vmatpush1.msra.mxu0 %v1574
    %1902 = vmatprep.subr.mxu0 0.0
    %1903 = vmatpush2.msra.mxu0 0.0
    %1904 = vmatprep.subr.mxu0 0.0
    %1905 = vmatpush2.msra.mxu0 0.0
    %1906 = vmatprep.subr.mxu0 0.0
    %1907 = vmatpush2.msra.mxu0 0.0
    %1908 = vmatprep.subr.mxu0 0.0
    %1909 = vmatpush2.msra.mxu0 0.0
    %1910 = vmatprep.subr.mxu0 0.0
    %1911 = vmatpush2.msra.mxu0 0.0
    %1912 = vmatprep.subr.mxu0 0.0
    %1913 = vmatpush2.msra.mxu0 0.0
    %1914 = vmatprep.subr.mxu0 0.0
    %1915 = vmatpush2.msra.mxu0 0.0
    %1916 = vmatprep.subr.mxu0 0.0
    %1917 = vmatpush2.msra.mxu0 0.0
    %1918 = vmatprep.subr.mxu0 0.0
    %1919 = vmatpush2.msra.mxu0 0.0
    %1920 = vmatprep.subr.mxu0 0.0
    %1921 = vmatpush2.msra.mxu0 0.0
    %1922 = vmatprep.subr.mxu0 0.0
    %1923 = vmatpush2.msra.mxu0 0.0
    %1924 = vmatprep.subr.mxu0 0.0
    %1925 = vmatpush2.msra.mxu0 0.0
    %1926 = vmatprep.subr.mxu0 0.0
    %1927 = vmatpush2.msra.mxu0 0.0
    %1928 = vmatprep.subr.mxu0 0.0
    %1929 = vmatpush2.msra.mxu0 0.0
    %1930 = vmatprep.subr.mxu0 0.0
    %1931 = vmatpush2.msra.mxu0 0.0
    %1932 = vmatprep.subr.mxu0 0.0
    %1933 = vmatpush2.msra.mxu0 0.0
    %1934 = vmatprep.mubr.f32.mxu0 0.0
    %1935 = vmatmul.mubr.f32.gmra.mxu0 %v1271
    %v1936 = vpop.f32.mrf.mxu0
    %v1937 = vadd.f32 %v1588, %v1936
    %v1938 = vpop.f32.mrf.mxu0
    %1939 = vdwg.mxu0
    %1940 = vmatprep.subr.mxu0 0.0
    %1941 = vmatpush1.msra.mxu0 0.0
    %1942 = vmatprep.subr.mxu0 0.0
    %1943 = vmatpush1.msra.mxu0 0.0
    %1944 = vmatprep.subr.mxu0 0.0
    %1945 = vmatpush1.msra.mxu0 0.0
    %1946 = vmatprep.subr.mxu0 0.0
    %1947 = vmatpush1.msra.mxu0 0.0
    %1948 = vmatprep.subr.mxu0 0.0
    %1949 = vmatpush1.msra.mxu0 0.0
    %1950 = vmatprep.subr.mxu0 0.0
    %1951 = vmatpush1.msra.mxu0 0.0
    %1952 = vmatprep.subr.mxu0 0.0
    %1953 = vmatpush1.msra.mxu0 0.0
    %1954 = vmatprep.subr.mxu0 0.0
    %1955 = vmatpush1.msra.mxu0 0.0
    %1956 = vmatprep.subr.mxu0 0.0
    %1957 = vmatpush1.msra.mxu0 0.0
    %1958 = vmatprep.subr.mxu0 0.0
    %1959 = vmatpush1.msra.mxu0 0.0
    %1960 = vmatprep.subr.mxu0 0.0
    %1961 = vmatpush1.msra.mxu0 0.0
    %1962 = vmatprep.subr.mxu0 0.0
    %1963 = vmatpush1.msra.mxu0 0.0
    %1964 = vmatprep.subr.mxu0 0.0
    %1965 = vmatpush1.msra.mxu0 %v1577
    %1966 = vmatprep.subr.mxu0 0.0
    %1967 = vmatpush1.msra.mxu0 %v1576
    %1968 = vmatprep.subr.mxu0 0.0
    %1969 = vmatpush1.msra.mxu0 %v1575
    %1970 = vmatprep.subr.mxu0 0.0
    %1971 = vmatpush1.msra.mxu0 %v1574
    %1972 = vmatprep.subr.mxu0 0.0
    %1973 = vmatpush2.msra.mxu0 0.0
    %1974 = vmatprep.subr.mxu0 0.0
    %1975 = vmatpush2.msra.mxu0 0.0
    %1976 = vmatprep.subr.mxu0 0.0
    %1977 = vmatpush2.msra.mxu0 0.0
    %1978 = vmatprep.subr.mxu0 0.0
    %1979 = vmatpush2.msra.mxu0 0.0
    %1980 = vmatprep.subr.mxu0 0.0
    %1981 = vmatpush2.msra.mxu0 0.0
    %1982 = vmatprep.subr.mxu0 0.0
    %1983 = vmatpush2.msra.mxu0 0.0
    %1984 = vmatprep.subr.mxu0 0.0
    %1985 = vmatpush2.msra.mxu0 0.0
    %1986 = vmatprep.subr.mxu0 0.0
    %1987 = vmatpush2.msra.mxu0 0.0
    %1988 = vmatprep.subr.mxu0 0.0
    %1989 = vmatpush2.msra.mxu0 0.0
    %1990 = vmatprep.subr.mxu0 0.0
    %1991 = vmatpush2.msra.mxu0 0.0
    %1992 = vmatprep.subr.mxu0 0.0
    %1993 = vmatpush2.msra.mxu0 0.0
    %1994 = vmatprep.subr.mxu0 0.0
    %1995 = vmatpush2.msra.mxu0 0.0
    %1996 = vmatprep.subr.mxu0 0.0
    %1997 = vmatpush2.msra.mxu0 0.0
    %1998 = vmatprep.subr.mxu0 0.0
    %1999 = vmatpush2.msra.mxu0 0.0
    %2000 = vmatprep.subr.mxu0 0.0
    %2001 = vmatpush2.msra.mxu0 0.0
    %2002 = vmatprep.subr.mxu0 0.0
    %2003 = vmatpush2.msra.mxu0 0.0
    %2004 = vmatprep.mubr.f32.mxu0 0.0
    %2005 = vmatmul.mubr.f32.gmra.mxu0 %v1373
    %v2006 = vpop.f32.mrf.mxu0
    %v2007 = vadd.f32 %v1588, %v2006
    %v2008 = vpop.f32.mrf.mxu0
    %2009 = vdwg.mxu0
    %2010 = vmatprep.subr.mxu0 0.0
    %2011 = vmatpush1.msra.mxu0 0.0
    %2012 = vmatprep.subr.mxu0 0.0
    %2013 = vmatpush1.msra.mxu0 0.0
    %2014 = vmatprep.subr.mxu0 0.0
    %2015 = vmatpush1.msra.mxu0 0.0
    %2016 = vmatprep.subr.mxu0 0.0
    %2017 = vmatpush1.msra.mxu0 0.0
    %2018 = vmatprep.subr.mxu0 0.0
    %2019 = vmatpush1.msra.mxu0 0.0
    %2020 = vmatprep.subr.mxu0 0.0
    %2021 = vmatpush1.msra.mxu0 0.0
    %2022 = vmatprep.subr.mxu0 0.0
    %2023 = vmatpush1.msra.mxu0 0.0
    %2024 = vmatprep.subr.mxu0 0.0
    %2025 = vmatpush1.msra.mxu0 0.0
    %2026 = vmatprep.subr.mxu0 0.0
    %2027 = vmatpush1.msra.mxu0 0.0
    %2028 = vmatprep.subr.mxu0 0.0
    %2029 = vmatpush1.msra.mxu0 0.0
    %2030 = vmatprep.subr.mxu0 0.0
    %2031 = vmatpush1.msra.mxu0 0.0
    %2032 = vmatprep.subr.mxu0 0.0
    %2033 = vmatpush1.msra.mxu0 0.0
    %2034 = vmatprep.subr.mxu0 0.0
    %2035 = vmatpush1.msra.mxu0 %v1577
    %2036 = vmatprep.subr.mxu0 0.0
    %2037 = vmatpush1.msra.mxu0 %v1576
    %2038 = vmatprep.subr.mxu0 0.0
    %2039 = vmatpush1.msra.mxu0 %v1575
    %2040 = vmatprep.subr.mxu0 0.0
    %2041 = vmatpush1.msra.mxu0 %v1574
    %2042 = vmatprep.subr.mxu0 0.0
    %2043 = vmatpush2.msra.mxu0 0.0
    %2044 = vmatprep.subr.mxu0 0.0
    %2045 = vmatpush2.msra.mxu0 0.0
    %2046 = vmatprep.subr.mxu0 0.0
    %2047 = vmatpush2.msra.mxu0 0.0
    %2048 = vmatprep.subr.mxu0 0.0
    %2049 = vmatpush2.msra.mxu0 0.0
    %2050 = vmatprep.subr.mxu0 0.0
    %2051 = vmatpush2.msra.mxu0 0.0
    %2052 = vmatprep.subr.mxu0 0.0
    %2053 = vmatpush2.msra.mxu0 0.0
    %2054 = vmatprep.subr.mxu0 0.0
    %2055 = vmatpush2.msra.mxu0 0.0
    %2056 = vmatprep.subr.mxu0 0.0
    %2057 = vmatpush2.msra.mxu0 0.0
    %2058 = vmatprep.subr.mxu0 0.0
    %2059 = vmatpush2.msra.mxu0 0.0
    %2060 = vmatprep.subr.mxu0 0.0
    %2061 = vmatpush2.msra.mxu0 0.0
    %2062 = vmatprep.subr.mxu0 0.0
    %2063 = vmatpush2.msra.mxu0 0.0
    %2064 = vmatprep.subr.mxu0 0.0
    %2065 = vmatpush2.msra.mxu0 0.0
    %2066 = vmatprep.subr.mxu0 0.0
    %2067 = vmatpush2.msra.mxu0 0.0
    %2068 = vmatprep.subr.mxu0 0.0
    %2069 = vmatpush2.msra.mxu0 0.0
    %2070 = vmatprep.subr.mxu0 0.0
    %2071 = vmatpush2.msra.mxu0 0.0
    %2072 = vmatprep.subr.mxu0 0.0
    %2073 = vmatpush2.msra.mxu0 0.0
    %2074 = vmatprep.mubr.f32.mxu0 0.0
    %2075 = vmatmul.mubr.f32.gmra.mxu0 %v1475
    %v2076 = vpop.f32.mrf.mxu0
    %v2077 = vadd.f32 %v1588, %v2076
    %v2078 = vpop.f32.mrf.mxu0
    %2079 = vdwg.mxu0
    %2081 = vrot.lane.b32.xlu0 %v1573, 96
    %v2082 = vpop.permute.xlu0 %2081
    %v2083 = vsel %vm751, %v2082, 0
    %2085 = vmatprep.subr.mxu0 0.0
    %2086 = vmatpush1.msra.mxu0 0.0
    %2087 = vmatprep.subr.mxu0 0.0
    %2088 = vmatpush1.msra.mxu0 0.0
    %2089 = vmatprep.subr.mxu0 0.0
    %2090 = vmatpush1.msra.mxu0 0.0
    %2091 = vmatprep.subr.mxu0 0.0
    %2092 = vmatpush1.msra.mxu0 0.0
    %2093 = vmatprep.subr.mxu0 0.0
    %2094 = vmatpush1.msra.mxu0 0.0
    %2095 = vmatprep.subr.mxu0 0.0
    %2096 = vmatpush1.msra.mxu0 0.0
    %2097 = vmatprep.subr.mxu0 0.0
    %2098 = vmatpush1.msra.mxu0 0.0
    %2099 = vmatprep.subr.mxu0 0.0
    %2100 = vmatpush1.msra.mxu0 0.0
    %2101 = vmatprep.subr.mxu0 0.0
    %2102 = vmatpush1.msra.mxu0 0.0
    %2103 = vmatprep.subr.mxu0 0.0
    %2104 = vmatpush1.msra.mxu0 0.0
    %2105 = vmatprep.subr.mxu0 0.0
    %2106 = vmatpush1.msra.mxu0 0.0
    %2107 = vmatprep.subr.mxu0 0.0
    %2108 = vmatpush1.msra.mxu0 0.0
    %2109 = vmatprep.subr.mxu0 0.0
    %2110 = vmatpush1.msra.mxu0 %v1577
    %2111 = vmatprep.subr.mxu0 0.0
    %2112 = vmatpush1.msra.mxu0 %v1576
    %2113 = vmatprep.subr.mxu0 0.0
    %2114 = vmatpush1.msra.mxu0 %v1575
    %2115 = vmatprep.subr.mxu0 0.0
    %2116 = vmatpush1.msra.mxu0 %v1574
    %2117 = vmatprep.subr.mxu0 0.0
    %2118 = vmatpush2.msra.mxu0 0.0
    %2119 = vmatprep.subr.mxu0 0.0
    %2120 = vmatpush2.msra.mxu0 0.0
    %2121 = vmatprep.subr.mxu0 0.0
    %2122 = vmatpush2.msra.mxu0 0.0
    %2123 = vmatprep.subr.mxu0 0.0
    %2124 = vmatpush2.msra.mxu0 0.0
    %2125 = vmatprep.subr.mxu0 0.0
    %2126 = vmatpush2.msra.mxu0 0.0
    %2127 = vmatprep.subr.mxu0 0.0
    %2128 = vmatpush2.msra.mxu0 0.0
    %2129 = vmatprep.subr.mxu0 0.0
    %2130 = vmatpush2.msra.mxu0 0.0
    %2131 = vmatprep.subr.mxu0 0.0
    %2132 = vmatpush2.msra.mxu0 0.0
    %2133 = vmatprep.subr.mxu0 0.0
    %2134 = vmatpush2.msra.mxu0 0.0
    %2135 = vmatprep.subr.mxu0 0.0
    %2136 = vmatpush2.msra.mxu0 0.0
    %2137 = vmatprep.subr.mxu0 0.0
    %2138 = vmatpush2.msra.mxu0 0.0
    %2139 = vmatprep.subr.mxu0 0.0
    %2140 = vmatpush2.msra.mxu0 0.0
    %2141 = vmatprep.subr.mxu0 0.0
    %2142 = vmatpush2.msra.mxu0 0.0
    %2143 = vmatprep.subr.mxu0 0.0
    %2144 = vmatpush2.msra.mxu0 0.0
    %2145 = vmatprep.subr.mxu0 0.0
    %2146 = vmatpush2.msra.mxu0 0.0
    %2147 = vmatprep.subr.mxu0 0.0
    %2148 = vmatpush2.msra.mxu0 0.0
    %2149 = vmatprep.mubr.f32.mxu0 0.0
    %2150 = vmatmul.mubr.f32.gmra.mxu0 %v2083
    %v2151 = vpop.f32.mrf.mxu0
    %v2152 = vadd.f32 %v1588, %v2151
    %v2153 = vpop.f32.mrf.mxu0
    %2154 = vdwg.mxu0
    %2155 = vmatprep.subr.mxu0 0.0
    %2156 = vmatpush1.msra.mxu0 0.0
    %2157 = vmatprep.subr.mxu0 0.0
    %2158 = vmatpush1.msra.mxu0 0.0
    %2159 = vmatprep.subr.mxu0 0.0
    %2160 = vmatpush1.msra.mxu0 0.0
    %2161 = vmatprep.subr.mxu0 0.0
    %2162 = vmatpush1.msra.mxu0 0.0
    %2163 = vmatprep.subr.mxu0 0.0
    %2164 = vmatpush1.msra.mxu0 0.0
    %2165 = vmatprep.subr.mxu0 0.0
    %2166 = vmatpush1.msra.mxu0 0.0
    %2167 = vmatprep.subr.mxu0 0.0
    %2168 = vmatpush1.msra.mxu0 0.0
    %2169 = vmatprep.subr.mxu0 0.0
    %2170 = vmatpush1.msra.mxu0 0.0
    %2171 = vmatprep.subr.mxu0 0.0
    %2172 = vmatpush1.msra.mxu0 0.0
    %2173 = vmatprep.subr.mxu0 0.0
    %2174 = vmatpush1.msra.mxu0 0.0
    %2175 = vmatprep.subr.mxu0 0.0
    %2176 = vmatpush1.msra.mxu0 0.0
    %2177 = vmatprep.subr.mxu0 0.0
    %2178 = vmatpush1.msra.mxu0 0.0
    %2179 = vmatprep.subr.mxu0 0.0
    %2180 = vmatpush1.msra.mxu0 %v1581
    %2181 = vmatprep.subr.mxu0 0.0
    %2182 = vmatpush1.msra.mxu0 %v1580
    %2183 = vmatprep.subr.mxu0 0.0
    %2184 = vmatpush1.msra.mxu0 %v1579
    %2185 = vmatprep.subr.mxu0 0.0
    %2186 = vmatpush1.msra.mxu0 %v1578
    %2187 = vmatprep.subr.mxu0 0.0
    %2188 = vmatpush2.msra.mxu0 0.0
    %2189 = vmatprep.subr.mxu0 0.0
    %2190 = vmatpush2.msra.mxu0 0.0
    %2191 = vmatprep.subr.mxu0 0.0
    %2192 = vmatpush2.msra.mxu0 0.0
    %2193 = vmatprep.subr.mxu0 0.0
    %2194 = vmatpush2.msra.mxu0 0.0
    %2195 = vmatprep.subr.mxu0 0.0
    %2196 = vmatpush2.msra.mxu0 0.0
    %2197 = vmatprep.subr.mxu0 0.0
    %2198 = vmatpush2.msra.mxu0 0.0
    %2199 = vmatprep.subr.mxu0 0.0
    %2200 = vmatpush2.msra.mxu0 0.0
    %2201 = vmatprep.subr.mxu0 0.0
    %2202 = vmatpush2.msra.mxu0 0.0
    %2203 = vmatprep.subr.mxu0 0.0
    %2204 = vmatpush2.msra.mxu0 0.0
    %2205 = vmatprep.subr.mxu0 0.0
    %2206 = vmatpush2.msra.mxu0 0.0
    %2207 = vmatprep.subr.mxu0 0.0
    %2208 = vmatpush2.msra.mxu0 0.0
    %2209 = vmatprep.subr.mxu0 0.0
    %2210 = vmatpush2.msra.mxu0 0.0
    %2211 = vmatprep.subr.mxu0 0.0
    %2212 = vmatpush2.msra.mxu0 0.0
    %2213 = vmatprep.subr.mxu0 0.0
    %2214 = vmatpush2.msra.mxu0 0.0
    %2215 = vmatprep.subr.mxu0 0.0
    %2216 = vmatpush2.msra.mxu0 0.0
    %2217 = vmatprep.subr.mxu0 0.0
    %2218 = vmatpush2.msra.mxu0 0.0
    %2219 = vmatprep.mubr.f32.mxu0 0.0
    %2220 = vmatmul.mubr.f32.gmra.mxu0 %v753
    %v2221 = vpop.f32.mrf.mxu0
    %v2222 = vadd.f32 0.0, %v2221
    %v2223 = vpop.f32.mrf.mxu0
    %2224 = vdwg.mxu0
    %v2225 = vadd.f32 %v1657, %v2222
    %v2226 = vxor.u32 %v2225, 2147483648
    %v2227 = vmul.f32 %v2226, 1.442695
    %v2228 = vpow.pop %v2227
    %v2229 = vadd.f32 %v2228, 1.0
    %v2230 = vrcp.pop %v2229
    %v2231 = vmul.f32 1.0, %v2230
    %v2233 = vlaneseq
    %v2234 = vshrl.u32 %v2233, 7
    %v2235 = vsub.s32 0, %v2234
    %v2236 = vrot.slane %v1583, %v2235
    %2237 = vrot.lane.b32.xlu0 %v2236, 64
    %v2238 = vpop.permute.xlu0 %2237
    %v2240 = vadd.f32 %v2222, %v2238
    %2242 = vrot.lane.b32.xlu0 %v2240, 64
    %v2243 = vpop.permute.xlu0 %2242
    %v2245 = vmul.f32 %v2231, %v2243
    %2247 = vrot.lane.b32.xlu0 %v2245, 64
    %v2248 = vpop.permute.xlu0 %2247
    %v2250 = vadd.f32 %v1657, %v2248
    %v2251 = vtanh.pop %v2250
    %v2252 = vsub.f32 1.0, %v2231
    %2254 = vrot.lane.b32.xlu0 %v2251, 96
    %v2255 = vpop.permute.xlu0 %2254
    %v2257 = vmul.f32 %v2252, %v2255
    %v2258 = vmul.f32 %v2231, 0.0
    %v2259 = vadd.f32 %v2257, %v2258
    %2261 = vrot.lane.b32.xlu0 %v2259, 96
    %v2262 = vpop.permute.xlu0 %2261
    %v2263 = vsel %vm751, %v2262, 0
    %2265 = vmatprep.subr.mxu0 0.0
    %2266 = vmatpush1.msra.mxu0 0.0
    %2267 = vmatprep.subr.mxu0 0.0
    %2268 = vmatpush1.msra.mxu0 0.0
    %2269 = vmatprep.subr.mxu0 0.0
    %2270 = vmatpush1.msra.mxu0 0.0
    %2271 = vmatprep.subr.mxu0 0.0
    %2272 = vmatpush1.msra.mxu0 0.0
    %2273 = vmatprep.subr.mxu0 0.0
    %2274 = vmatpush1.msra.mxu0 0.0
    %2275 = vmatprep.subr.mxu0 0.0
    %2276 = vmatpush1.msra.mxu0 0.0
    %2277 = vmatprep.subr.mxu0 0.0
    %2278 = vmatpush1.msra.mxu0 0.0
    %2279 = vmatprep.subr.mxu0 0.0
    %2280 = vmatpush1.msra.mxu0 0.0
    %2281 = vmatprep.subr.mxu0 0.0
    %2282 = vmatpush1.msra.mxu0 0.0
    %2283 = vmatprep.subr.mxu0 0.0
    %2284 = vmatpush1.msra.mxu0 0.0
    %2285 = vmatprep.subr.mxu0 0.0
    %2286 = vmatpush1.msra.mxu0 0.0
    %2287 = vmatprep.subr.mxu0 0.0
    %2288 = vmatpush1.msra.mxu0 0.0
    %2289 = vmatprep.subr.mxu0 0.0
    %2290 = vmatpush1.msra.mxu0 %v1581
    %2291 = vmatprep.subr.mxu0 0.0
    %2292 = vmatpush1.msra.mxu0 %v1580
    %2293 = vmatprep.subr.mxu0 0.0
    %2294 = vmatpush1.msra.mxu0 %v1579
    %2295 = vmatprep.subr.mxu0 0.0
    %2296 = vmatpush1.msra.mxu0 %v1578
    %2297 = vmatprep.subr.mxu0 0.0
    %2298 = vmatpush2.msra.mxu0 0.0
    %2299 = vmatprep.subr.mxu0 0.0
    %2300 = vmatpush2.msra.mxu0 0.0
    %2301 = vmatprep.subr.mxu0 0.0
    %2302 = vmatpush2.msra.mxu0 0.0
    %2303 = vmatprep.subr.mxu0 0.0
    %2304 = vmatpush2.msra.mxu0 0.0
    %2305 = vmatprep.subr.mxu0 0.0
    %2306 = vmatpush2.msra.mxu0 0.0
    %2307 = vmatprep.subr.mxu0 0.0
    %2308 = vmatpush2.msra.mxu0 0.0
    %2309 = vmatprep.subr.mxu0 0.0
    %2310 = vmatpush2.msra.mxu0 0.0
    %2311 = vmatprep.subr.mxu0 0.0
    %2312 = vmatpush2.msra.mxu0 0.0
    %2313 = vmatprep.subr.mxu0 0.0
    %2314 = vmatpush2.msra.mxu0 0.0
    %2315 = vmatprep.subr.mxu0 0.0
    %2316 = vmatpush2.msra.mxu0 0.0
    %2317 = vmatprep.subr.mxu0 0.0
    %2318 = vmatpush2.msra.mxu0 0.0
    %2319 = vmatprep.subr.mxu0 0.0
    %2320 = vmatpush2.msra.mxu0 0.0
    %2321 = vmatprep.subr.mxu0 0.0
    %2322 = vmatpush2.msra.mxu0 0.0
    %2323 = vmatprep.subr.mxu0 0.0
    %2324 = vmatpush2.msra.mxu0 0.0
    %2325 = vmatprep.subr.mxu0 0.0
    %2326 = vmatpush2.msra.mxu0 0.0
    %2327 = vmatprep.subr.mxu0 0.0
    %2328 = vmatpush2.msra.mxu0 0.0
    %2329 = vmatprep.mubr.f32.mxu0 0.0
    %2330 = vmatmul.mubr.f32.gmra.mxu0 %v2263
    %v2331 = vpop.f32.mrf.mxu0
    %v2332 = vadd.f32 0.0, %v2331
    %v2333 = vpop.f32.mrf.mxu0
    %2334 = vdwg.mxu0
    %v2335 = vadd.f32 %v1727, %v2332
    %v2336 = vxor.u32 %v2335, 2147483648
    %v2337 = vmul.f32 %v2336, 1.442695
    %v2338 = vpow.pop %v2337
    %v2339 = vadd.f32 %v2338, 1.0
    %v2340 = vrcp.pop %v2339
    %v2341 = vmul.f32 1.0, %v2340
    %v2342 = vadd.f32 %v2332, %v2238
    %2344 = vrot.lane.b32.xlu0 %v2342, 64
    %v2345 = vpop.permute.xlu0 %2344
    %v2347 = vmul.f32 %v2341, %v2345
    %2349 = vrot.lane.b32.xlu0 %v2347, 64
    %v2350 = vpop.permute.xlu0 %2349
    %v2352 = vadd.f32 %v1727, %v2350
    %v2353 = vtanh.pop %v2352
    %v2354 = vsub.f32 1.0, %v2341
    %2356 = vrot.lane.b32.xlu0 %v2353, 96
    %v2357 = vpop.permute.xlu0 %2356
    %v2359 = vmul.f32 %v2354, %v2357
    %v2360 = vmul.f32 %v2341, %v2259
    %v2361 = vadd.f32 %v2359, %v2360
    %2363 = vrot.lane.b32.xlu0 %v2361, 96
    %v2364 = vpop.permute.xlu0 %2363
    %v2365 = vsel %vm751, %v2364, 0
    %2367 = vmatprep.subr.mxu0 0.0
    %2368 = vmatpush1.msra.mxu0 0.0
    %2369 = vmatprep.subr.mxu0 0.0
    %2370 = vmatpush1.msra.mxu0 0.0
    %2371 = vmatprep.subr.mxu0 0.0
    %2372 = vmatpush1.msra.mxu0 0.0
    %2373 = vmatprep.subr.mxu0 0.0
    %2374 = vmatpush1.msra.mxu0 0.0
    %2375 = vmatprep.subr.mxu0 0.0
    %2376 = vmatpush1.msra.mxu0 0.0
    %2377 = vmatprep.subr.mxu0 0.0
    %2378 = vmatpush1.msra.mxu0 0.0
    %2379 = vmatprep.subr.mxu0 0.0
    %2380 = vmatpush1.msra.mxu0 0.0
    %2381 = vmatprep.subr.mxu0 0.0
    %2382 = vmatpush1.msra.mxu0 0.0
    %2383 = vmatprep.subr.mxu0 0.0
    %2384 = vmatpush1.msra.mxu0 0.0
    %2385 = vmatprep.subr.mxu0 0.0
    %2386 = vmatpush1.msra.mxu0 0.0
    %2387 = vmatprep.subr.mxu0 0.0
    %2388 = vmatpush1.msra.mxu0 0.0
    %2389 = vmatprep.subr.mxu0 0.0
    %2390 = vmatpush1.msra.mxu0 0.0
    %2391 = vmatprep.subr.mxu0 0.0
    %2392 = vmatpush1.msra.mxu0 %v1581
    %2393 = vmatprep.subr.mxu0 0.0
    %2394 = vmatpush1.msra.mxu0 %v1580
    %2395 = vmatprep.subr.mxu0 0.0
    %2396 = vmatpush1.msra.mxu0 %v1579
    %2397 = vmatprep.subr.mxu0 0.0
    %2398 = vmatpush1.msra.mxu0 %v1578
    %2399 = vmatprep.subr.mxu0 0.0
    %2400 = vmatpush2.msra.mxu0 0.0
    %2401 = vmatprep.subr.mxu0 0.0
    %2402 = vmatpush2.msra.mxu0 0.0
    %2403 = vmatprep.subr.mxu0 0.0
    %2404 = vmatpush2.msra.mxu0 0.0
    %2405 = vmatprep.subr.mxu0 0.0
    %2406 = vmatpush2.msra.mxu0 0.0
    %2407 = vmatprep.subr.mxu0 0.0
    %2408 = vmatpush2.msra.mxu0 0.0
    %2409 = vmatprep.subr.mxu0 0.0
    %2410 = vmatpush2.msra.mxu0 0.0
    %2411 = vmatprep.subr.mxu0 0.0
    %2412 = vmatpush2.msra.mxu0 0.0
    %2413 = vmatprep.subr.mxu0 0.0
    %2414 = vmatpush2.msra.mxu0 0.0
    %2415 = vmatprep.subr.mxu0 0.0
    %2416 = vmatpush2.msra.mxu0 0.0
    %2417 = vmatprep.subr.mxu0 0.0
    %2418 = vmatpush2.msra.mxu0 0.0
    %2419 = vmatprep.subr.mxu0 0.0
    %2420 = vmatpush2.msra.mxu0 0.0
    %2421 = vmatprep.subr.mxu0 0.0
    %2422 = vmatpush2.msra.mxu0 0.0
    %2423 = vmatprep.subr.mxu0 0.0
    %2424 = vmatpush2.msra.mxu0 0.0
    %2425 = vmatprep.subr.mxu0 0.0
    %2426 = vmatpush2.msra.mxu0 0.0
    %2427 = vmatprep.subr.mxu0 0.0
    %2428 = vmatpush2.msra.mxu0 0.0
    %2429 = vmatprep.subr.mxu0 0.0
    %2430 = vmatpush2.msra.mxu0 0.0
    %2431 = vmatprep.mubr.f32.mxu0 0.0
    %2432 = vmatmul.mubr.f32.gmra.mxu0 %v2365
    %v2433 = vpop.f32.mrf.mxu0
    %v2434 = vadd.f32 0.0, %v2433
    %v2435 = vpop.f32.mrf.mxu0
    %2436 = vdwg.mxu0
    %v2437 = vadd.f32 %v1797, %v2434
    %v2438 = vxor.u32 %v2437, 2147483648
    %v2439 = vmul.f32 %v2438, 1.442695
    %v2440 = vpow.pop %v2439
    %v2441 = vadd.f32 %v2440, 1.0
    %v2442 = vrcp.pop %v2441
    %v2443 = vmul.f32 1.0, %v2442
    %v2444 = vadd.f32 %v2434, %v2238
    %2446 = vrot.lane.b32.xlu0 %v2444, 64
    %v2447 = vpop.permute.xlu0 %2446
    %v2449 = vmul.f32 %v2443, %v2447
    %2451 = vrot.lane.b32.xlu0 %v2449, 64
    %v2452 = vpop.permute.xlu0 %2451
    %v2454 = vadd.f32 %v1797, %v2452
    %v2455 = vtanh.pop %v2454
    %v2456 = vsub.f32 1.0, %v2443
    %2458 = vrot.lane.b32.xlu0 %v2455, 96
    %v2459 = vpop.permute.xlu0 %2458
    %v2461 = vmul.f32 %v2456, %v2459
    %v2462 = vmul.f32 %v2443, %v2361
    %v2463 = vadd.f32 %v2461, %v2462
    %2465 = vrot.lane.b32.xlu0 %v2463, 96
    %v2466 = vpop.permute.xlu0 %2465
    %v2467 = vsel %vm751, %v2466, 0
    %2469 = vmatprep.subr.mxu0 0.0
    %2470 = vmatpush1.msra.mxu0 0.0
    %2471 = vmatprep.subr.mxu0 0.0
    %2472 = vmatpush1.msra.mxu0 0.0
    %2473 = vmatprep.subr.mxu0 0.0
    %2474 = vmatpush1.msra.mxu0 0.0
    %2475 = vmatprep.subr.mxu0 0.0
    %2476 = vmatpush1.msra.mxu0 0.0
    %2477 = vmatprep.subr.mxu0 0.0
    %2478 = vmatpush1.msra.mxu0 0.0
    %2479 = vmatprep.subr.mxu0 0.0
    %2480 = vmatpush1.msra.mxu0 0.0
    %2481 = vmatprep.subr.mxu0 0.0
    %2482 = vmatpush1.msra.mxu0 0.0
    %2483 = vmatprep.subr.mxu0 0.0
    %2484 = vmatpush1.msra.mxu0 0.0
    %2485 = vmatprep.subr.mxu0 0.0
    %2486 = vmatpush1.msra.mxu0 0.0
    %2487 = vmatprep.subr.mxu0 0.0
    %2488 = vmatpush1.msra.mxu0 0.0
    %2489 = vmatprep.subr.mxu0 0.0
    %2490 = vmatpush1.msra.mxu0 0.0
    %2491 = vmatprep.subr.mxu0 0.0
    %2492 = vmatpush1.msra.mxu0 0.0
    %2493 = vmatprep.subr.mxu0 0.0
    %2494 = vmatpush1.msra.mxu0 %v1581
    %2495 = vmatprep.subr.mxu0 0.0
    %2496 = vmatpush1.msra.mxu0 %v1580
    %2497 = vmatprep.subr.mxu0 0.0
    %2498 = vmatpush1.msra.mxu0 %v1579
    %2499 = vmatprep.subr.mxu0 0.0
    %2500 = vmatpush1.msra.mxu0 %v1578
    %2501 = vmatprep.subr.mxu0 0.0
    %2502 = vmatpush2.msra.mxu0 0.0
    %2503 = vmatprep.subr.mxu0 0.0
    %2504 = vmatpush2.msra.mxu0 0.0
    %2505 = vmatprep.subr.mxu0 0.0
    %2506 = vmatpush2.msra.mxu0 0.0
    %2507 = vmatprep.subr.mxu0 0.0
    %2508 = vmatpush2.msra.mxu0 0.0
    %2509 = vmatprep.subr.mxu0 0.0
    %2510 = vmatpush2.msra.mxu0 0.0
    %2511 = vmatprep.subr.mxu0 0.0
    %2512 = vmatpush2.msra.mxu0 0.0
    %2513 = vmatprep.subr.mxu0 0.0
    %2514 = vmatpush2.msra.mxu0 0.0
    %2515 = vmatprep.subr.mxu0 0.0
    %2516 = vmatpush2.msra.mxu0 0.0
    %2517 = vmatprep.subr.mxu0 0.0
    %2518 = vmatpush2.msra.mxu0 0.0
    %2519 = vmatprep.subr.mxu0 0.0
    %2520 = vmatpush2.msra.mxu0 0.0
    %2521 = vmatprep.subr.mxu0 0.0
    %2522 = vmatpush2.msra.mxu0 0.0
    %2523 = vmatprep.subr.mxu0 0.0
    %2524 = vmatpush2.msra.mxu0 0.0
    %2525 = vmatprep.subr.mxu0 0.0
    %2526 = vmatpush2.msra.mxu0 0.0
    %2527 = vmatprep.subr.mxu0 0.0
    %2528 = vmatpush2.msra.mxu0 0.0
    %2529 = vmatprep.subr.mxu0 0.0
    %2530 = vmatpush2.msra.mxu0 0.0
    %2531 = vmatprep.subr.mxu0 0.0
    %2532 = vmatpush2.msra.mxu0 0.0
    %2533 = vmatprep.mubr.f32.mxu0 0.0
    %2534 = vmatmul.mubr.f32.gmra.mxu0 %v2467
    %v2535 = vpop.f32.mrf.mxu0
    %v2536 = vadd.f32 0.0, %v2535
    %v2537 = vpop.f32.mrf.mxu0
    %2538 = vdwg.mxu0
    %v2539 = vadd.f32 %v1867, %v2536
    %v2540 = vxor.u32 %v2539, 2147483648
    %v2541 = vmul.f32 %v2540, 1.442695
    %v2542 = vpow.pop %v2541
    %v2543 = vadd.f32 %v2542, 1.0
    %v2544 = vrcp.pop %v2543
    %v2545 = vmul.f32 1.0, %v2544
    %v2546 = vadd.f32 %v2536, %v2238
    %2548 = vrot.lane.b32.xlu0 %v2546, 64
    %v2549 = vpop.permute.xlu0 %2548
    %v2551 = vmul.f32 %v2545, %v2549
    %2553 = vrot.lane.b32.xlu0 %v2551, 64
    %v2554 = vpop.permute.xlu0 %2553
    %v2556 = vadd.f32 %v1867, %v2554
    %v2557 = vtanh.pop %v2556
    %v2558 = vsub.f32 1.0, %v2545
    %2560 = vrot.lane.b32.xlu0 %v2557, 96
    %v2561 = vpop.permute.xlu0 %2560
    %v2563 = vmul.f32 %v2558, %v2561
    %v2564 = vmul.f32 %v2545, %v2463
    %v2565 = vadd.f32 %v2563, %v2564
    %2567 = vrot.lane.b32.xlu0 %v2565, 96
    %v2568 = vpop.permute.xlu0 %2567
    %v2569 = vsel %vm751, %v2568, 0
    %2571 = vmatprep.subr.mxu0 0.0
    %2572 = vmatpush1.msra.mxu0 0.0
    %2573 = vmatprep.subr.mxu0 0.0
    %2574 = vmatpush1.msra.mxu0 0.0
    %2575 = vmatprep.subr.mxu0 0.0
    %2576 = vmatpush1.msra.mxu0 0.0
    %2577 = vmatprep.subr.mxu0 0.0
    %2578 = vmatpush1.msra.mxu0 0.0
    %2579 = vmatprep.subr.mxu0 0.0
    %2580 = vmatpush1.msra.mxu0 0.0
    %2581 = vmatprep.subr.mxu0 0.0
    %2582 = vmatpush1.msra.mxu0 0.0
    %2583 = vmatprep.subr.mxu0 0.0
    %2584 = vmatpush1.msra.mxu0 0.0
    %2585 = vmatprep.subr.mxu0 0.0
    %2586 = vmatpush1.msra.mxu0 0.0
    %2587 = vmatprep.subr.mxu0 0.0
    %2588 = vmatpush1.msra.mxu0 0.0
    %2589 = vmatprep.subr.mxu0 0.0
    %2590 = vmatpush1.msra.mxu0 0.0
    %2591 = vmatprep.subr.mxu0 0.0
    %2592 = vmatpush1.msra.mxu0 0.0
    %2593 = vmatprep.subr.mxu0 0.0
    %2594 = vmatpush1.msra.mxu0 0.0
    %2595 = vmatprep.subr.mxu0 0.0
    %2596 = vmatpush1.msra.mxu0 %v1581
    %2597 = vmatprep.subr.mxu0 0.0
    %2598 = vmatpush1.msra.mxu0 %v1580
    %2599 = vmatprep.subr.mxu0 0.0
    %2600 = vmatpush1.msra.mxu0 %v1579
    %2601 = vmatprep.subr.mxu0 0.0
    %2602 = vmatpush1.msra.mxu0 %v1578
    %2603 = vmatprep.subr.mxu0 0.0
    %2604 = vmatpush2.msra.mxu0 0.0
    %2605 = vmatprep.subr.mxu0 0.0
    %2606 = vmatpush2.msra.mxu0 0.0
    %2607 = vmatprep.subr.mxu0 0.0
    %2608 = vmatpush2.msra.mxu0 0.0
    %2609 = vmatprep.subr.mxu0 0.0
    %2610 = vmatpush2.msra.mxu0 0.0
    %2611 = vmatprep.subr.mxu0 0.0
    %2612 = vmatpush2.msra.mxu0 0.0
    %2613 = vmatprep.subr.mxu0 0.0
    %2614 = vmatpush2.msra.mxu0 0.0
    %2615 = vmatprep.subr.mxu0 0.0
    %2616 = vmatpush2.msra.mxu0 0.0
    %2617 = vmatprep.subr.mxu0 0.0
    %2618 = vmatpush2.msra.mxu0 0.0
    %2619 = vmatprep.subr.mxu0 0.0
    %2620 = vmatpush2.msra.mxu0 0.0
    %2621 = vmatprep.subr.mxu0 0.0
    %2622 = vmatpush2.msra.mxu0 0.0
    %2623 = vmatprep.subr.mxu0 0.0
    %2624 = vmatpush2.msra.mxu0 0.0
    %2625 = vmatprep.subr.mxu0 0.0
    %2626 = vmatpush2.msra.mxu0 0.0
    %2627 = vmatprep.subr.mxu0 0.0
    %2628 = vmatpush2.msra.mxu0 0.0
    %2629 = vmatprep.subr.mxu0 0.0
    %2630 = vmatpush2.msra.mxu0 0.0
    %2631 = vmatprep.subr.mxu0 0.0
    %2632 = vmatpush2.msra.mxu0 0.0
    %2633 = vmatprep.subr.mxu0 0.0
    %2634 = vmatpush2.msra.mxu0 0.0
    %2635 = vmatprep.mubr.f32.mxu0 0.0
    %2636 = vmatmul.mubr.f32.gmra.mxu0 %v2569
    %v2637 = vpop.f32.mrf.mxu0
    %v2638 = vadd.f32 0.0, %v2637
    %v2639 = vpop.f32.mrf.mxu0
    %2640 = vdwg.mxu0
    %v2641 = vadd.f32 %v1937, %v2638
    %v2642 = vxor.u32 %v2641, 2147483648
    %v2643 = vmul.f32 %v2642, 1.442695
    %v2644 = vpow.pop %v2643
    %v2645 = vadd.f32 %v2644, 1.0
    %v2646 = vrcp.pop %v2645
    %v2647 = vmul.f32 1.0, %v2646
    %v2648 = vadd.f32 %v2638, %v2238
    %2650 = vrot.lane.b32.xlu0 %v2648, 64
    %v2651 = vpop.permute.xlu0 %2650
    %v2653 = vmul.f32 %v2647, %v2651
    %2655 = vrot.lane.b32.xlu0 %v2653, 64
    %v2656 = vpop.permute.xlu0 %2655
    %v2658 = vadd.f32 %v1937, %v2656
    %v2659 = vtanh.pop %v2658
    %v2660 = vsub.f32 1.0, %v2647
    %2662 = vrot.lane.b32.xlu0 %v2659, 96
    %v2663 = vpop.permute.xlu0 %2662
    %v2665 = vmul.f32 %v2660, %v2663
    %v2666 = vmul.f32 %v2647, %v2565
    %v2667 = vadd.f32 %v2665, %v2666
    %2669 = vrot.lane.b32.xlu0 %v2667, 96
    %v2670 = vpop.permute.xlu0 %2669
    %v2671 = vsel %vm751, %v2670, 0
    %2673 = vmatprep.subr.mxu0 0.0
    %2674 = vmatpush1.msra.mxu0 0.0
    %2675 = vmatprep.subr.mxu0 0.0
    %2676 = vmatpush1.msra.mxu0 0.0
    %2677 = vmatprep.subr.mxu0 0.0
    %2678 = vmatpush1.msra.mxu0 0.0
    %2679 = vmatprep.subr.mxu0 0.0
    %2680 = vmatpush1.msra.mxu0 0.0
    %2681 = vmatprep.subr.mxu0 0.0
    %2682 = vmatpush1.msra.mxu0 0.0
    %2683 = vmatprep.subr.mxu0 0.0
    %2684 = vmatpush1.msra.mxu0 0.0
    %2685 = vmatprep.subr.mxu0 0.0
    %2686 = vmatpush1.msra.mxu0 0.0
    %2687 = vmatprep.subr.mxu0 0.0
    %2688 = vmatpush1.msra.mxu0 0.0
    %2689 = vmatprep.subr.mxu0 0.0
    %2690 = vmatpush1.msra.mxu0 0.0
    %2691 = vmatprep.subr.mxu0 0.0
    %2692 = vmatpush1.msra.mxu0 0.0
    %2693 = vmatprep.subr.mxu0 0.0
    %2694 = vmatpush1.msra.mxu0 0.0
    %2695 = vmatprep.subr.mxu0 0.0
    %2696 = vmatpush1.msra.mxu0 0.0
    %2697 = vmatprep.subr.mxu0 0.0
    %2698 = vmatpush1.msra.mxu0 %v1581
    %2699 = vmatprep.subr.mxu0 0.0
    %2700 = vmatpush1.msra.mxu0 %v1580
    %2701 = vmatprep.subr.mxu0 0.0
    %2702 = vmatpush1.msra.mxu0 %v1579
    %2703 = vmatprep.subr.mxu0 0.0
    %2704 = vmatpush1.msra.mxu0 %v1578
    %2705 = vmatprep.subr.mxu0 0.0
    %2706 = vmatpush2.msra.mxu0 0.0
    %2707 = vmatprep.subr.mxu0 0.0
    %2708 = vmatpush2.msra.mxu0 0.0
    %2709 = vmatprep.subr.mxu0 0.0
    %2710 = vmatpush2.msra.mxu0 0.0
    %2711 = vmatprep.subr.mxu0 0.0
    %2712 = vmatpush2.msra.mxu0 0.0
    %2713 = vmatprep.subr.mxu0 0.0
    %2714 = vmatpush2.msra.mxu0 0.0
    %2715 = vmatprep.subr.mxu0 0.0
    %2716 = vmatpush2.msra.mxu0 0.0
    %2717 = vmatprep.subr.mxu0 0.0
    %2718 = vmatpush2.msra.mxu0 0.0
    %2719 = vmatprep.subr.mxu0 0.0
    %2720 = vmatpush2.msra.mxu0 0.0
    %2721 = vmatprep.subr.mxu0 0.0
    %2722 = vmatpush2.msra.mxu0 0.0
    %2723 = vmatprep.subr.mxu0 0.0
    %2724 = vmatpush2.msra.mxu0 0.0
    %2725 = vmatprep.subr.mxu0 0.0
    %2726 = vmatpush2.msra.mxu0 0.0
    %2727 = vmatprep.subr.mxu0 0.0
    %2728 = vmatpush2.msra.mxu0 0.0
    %2729 = vmatprep.subr.mxu0 0.0
    %2730 = vmatpush2.msra.mxu0 0.0
    %2731 = vmatprep.subr.mxu0 0.0
    %2732 = vmatpush2.msra.mxu0 0.0
    %2733 = vmatprep.subr.mxu0 0.0
    %2734 = vmatpush2.msra.mxu0 0.0
    %2735 = vmatprep.subr.mxu0 0.0
    %2736 = vmatpush2.msra.mxu0 0.0
    %2737 = vmatprep.mubr.f32.mxu0 0.0
    %2738 = vmatmul.mubr.f32.gmra.mxu0 %v2671
    %v2739 = vpop.f32.mrf.mxu0
    %v2740 = vadd.f32 0.0, %v2739
    %v2741 = vpop.f32.mrf.mxu0
    %2742 = vdwg.mxu0
    %v2743 = vadd.f32 %v2007, %v2740
    %v2744 = vxor.u32 %v2743, 2147483648
    %v2745 = vmul.f32 %v2744, 1.442695
    %v2746 = vpow.pop %v2745
    %v2747 = vadd.f32 %v2746, 1.0
    %v2748 = vrcp.pop %v2747
    %v2749 = vmul.f32 1.0, %v2748
    %v2750 = vadd.f32 %v2740, %v2238
    %2752 = vrot.lane.b32.xlu0 %v2750, 64
    %v2753 = vpop.permute.xlu0 %2752
    %v2755 = vmul.f32 %v2749, %v2753
    %2757 = vrot.lane.b32.xlu0 %v2755, 64
    %v2758 = vpop.permute.xlu0 %2757
    %v2760 = vadd.f32 %v2007, %v2758
    %v2761 = vtanh.pop %v2760
    %v2762 = vsub.f32 1.0, %v2749
    %2764 = vrot.lane.b32.xlu0 %v2761, 96
    %v2765 = vpop.permute.xlu0 %2764
    %v2767 = vmul.f32 %v2762, %v2765
    %v2768 = vmul.f32 %v2749, %v2667
    %v2769 = vadd.f32 %v2767, %v2768
    %2771 = vrot.lane.b32.xlu0 %v2769, 96
    %v2772 = vpop.permute.xlu0 %2771
    %v2773 = vsel %vm751, %v2772, 0
    %2775 = vmatprep.subr.mxu0 0.0
    %2776 = vmatpush1.msra.mxu0 0.0
    %2777 = vmatprep.subr.mxu0 0.0
    %2778 = vmatpush1.msra.mxu0 0.0
    %2779 = vmatprep.subr.mxu0 0.0
    %2780 = vmatpush1.msra.mxu0 0.0
    %2781 = vmatprep.subr.mxu0 0.0
    %2782 = vmatpush1.msra.mxu0 0.0
    %2783 = vmatprep.subr.mxu0 0.0
    %2784 = vmatpush1.msra.mxu0 0.0
    %2785 = vmatprep.subr.mxu0 0.0
    %2786 = vmatpush1.msra.mxu0 0.0
    %2787 = vmatprep.subr.mxu0 0.0
    %2788 = vmatpush1.msra.mxu0 0.0
    %2789 = vmatprep.subr.mxu0 0.0
    %2790 = vmatpush1.msra.mxu0 0.0
    %2791 = vmatprep.subr.mxu0 0.0
    %2792 = vmatpush1.msra.mxu0 0.0
    %2793 = vmatprep.subr.mxu0 0.0
    %2794 = vmatpush1.msra.mxu0 0.0
    %2795 = vmatprep.subr.mxu0 0.0
    %2796 = vmatpush1.msra.mxu0 0.0
    %2797 = vmatprep.subr.mxu0 0.0
    %2798 = vmatpush1.msra.mxu0 0.0
    %2799 = vmatprep.subr.mxu0 0.0
    %2800 = vmatpush1.msra.mxu0 %v1581
    %2801 = vmatprep.subr.mxu0 0.0
    %2802 = vmatpush1.msra.mxu0 %v1580
    %2803 = vmatprep.subr.mxu0 0.0
    %2804 = vmatpush1.msra.mxu0 %v1579
    %2805 = vmatprep.subr.mxu0 0.0
    %2806 = vmatpush1.msra.mxu0 %v1578
    %2807 = vmatprep.subr.mxu0 0.0
    %2808 = vmatpush2.msra.mxu0 0.0
    %2809 = vmatprep.subr.mxu0 0.0
    %2810 = vmatpush2.msra.mxu0 0.0
    %2811 = vmatprep.subr.mxu0 0.0
    %2812 = vmatpush2.msra.mxu0 0.0
    %2813 = vmatprep.subr.mxu0 0.0
    %2814 = vmatpush2.msra.mxu0 0.0
    %2815 = vmatprep.subr.mxu0 0.0
    %2816 = vmatpush2.msra.mxu0 0.0
    %2817 = vmatprep.subr.mxu0 0.0
    %2818 = vmatpush2.msra.mxu0 0.0
    %2819 = vmatprep.subr.mxu0 0.0
    %2820 = vmatpush2.msra.mxu0 0.0
    %2821 = vmatprep.subr.mxu0 0.0
    %2822 = vmatpush2.msra.mxu0 0.0
    %2823 = vmatprep.subr.mxu0 0.0
    %2824 = vmatpush2.msra.mxu0 0.0
    %2825 = vmatprep.subr.mxu0 0.0
    %2826 = vmatpush2.msra.mxu0 0.0
    %2827 = vmatprep.subr.mxu0 0.0
    %2828 = vmatpush2.msra.mxu0 0.0
    %2829 = vmatprep.subr.mxu0 0.0
    %2830 = vmatpush2.msra.mxu0 0.0
    %2831 = vmatprep.subr.mxu0 0.0
    %2832 = vmatpush2.msra.mxu0 0.0
    %2833 = vmatprep.subr.mxu0 0.0
    %2834 = vmatpush2.msra.mxu0 0.0
    %2835 = vmatprep.subr.mxu0 0.0
    %2836 = vmatpush2.msra.mxu0 0.0
    %2837 = vmatprep.subr.mxu0 0.0
    %2838 = vmatpush2.msra.mxu0 0.0
    %2839 = vmatprep.mubr.f32.mxu0 0.0
    %2840 = vmatmul.mubr.f32.gmra.mxu0 %v2773
    %v2841 = vpop.f32.mrf.mxu0
    %v2842 = vadd.f32 0.0, %v2841
    %v2843 = vpop.f32.mrf.mxu0
    %2844 = vdwg.mxu0
    %v2845 = vadd.f32 %v2077, %v2842
    %v2846 = vxor.u32 %v2845, 2147483648
    %v2847 = vmul.f32 %v2846, 1.442695
    %v2848 = vpow.pop %v2847
    %v2849 = vadd.f32 %v2848, 1.0
    %v2850 = vrcp.pop %v2849
    %v2851 = vmul.f32 1.0, %v2850
    %v2852 = vadd.f32 %v2842, %v2238
    %2854 = vrot.lane.b32.xlu0 %v2852, 64
    %v2855 = vpop.permute.xlu0 %2854
    %v2857 = vmul.f32 %v2851, %v2855
    %2859 = vrot.lane.b32.xlu0 %v2857, 64
    %v2860 = vpop.permute.xlu0 %2859
    %v2862 = vadd.f32 %v2077, %v2860
    %v2863 = vtanh.pop %v2862
    %v2864 = vsub.f32 1.0, %v2851
    %2866 = vrot.lane.b32.xlu0 %v2863, 96
    %v2867 = vpop.permute.xlu0 %2866
    %v2869 = vmul.f32 %v2864, %v2867
    %v2870 = vmul.f32 %v2851, %v2769
    %v2871 = vadd.f32 %v2869, %v2870
    %2873 = vrot.lane.b32.xlu0 %v2871, 96
    %v2874 = vpop.permute.xlu0 %2873
    %v2875 = vsel %vm751, %v2874, 0
    %2877 = vmatprep.subr.mxu0 0.0
    %2878 = vmatpush1.msra.mxu0 0.0
    %2879 = vmatprep.subr.mxu0 0.0
    %2880 = vmatpush1.msra.mxu0 0.0
    %2881 = vmatprep.subr.mxu0 0.0
    %2882 = vmatpush1.msra.mxu0 0.0
    %2883 = vmatprep.subr.mxu0 0.0
    %2884 = vmatpush1.msra.mxu0 0.0
    %2885 = vmatprep.subr.mxu0 0.0
    %2886 = vmatpush1.msra.mxu0 0.0
    %2887 = vmatprep.subr.mxu0 0.0
    %2888 = vmatpush1.msra.mxu0 0.0
    %2889 = vmatprep.subr.mxu0 0.0
    %2890 = vmatpush1.msra.mxu0 0.0
    %2891 = vmatprep.subr.mxu0 0.0
    %2892 = vmatpush1.msra.mxu0 0.0
    %2893 = vmatprep.subr.mxu0 0.0
    %2894 = vmatpush1.msra.mxu0 0.0
    %2895 = vmatprep.subr.mxu0 0.0
    %2896 = vmatpush1.msra.mxu0 0.0
    %2897 = vmatprep.subr.mxu0 0.0
    %2898 = vmatpush1.msra.mxu0 0.0
    %2899 = vmatprep.subr.mxu0 0.0
    %2900 = vmatpush1.msra.mxu0 0.0
    %2901 = vmatprep.subr.mxu0 0.0
    %2902 = vmatpush1.msra.mxu0 %v1581
    %2903 = vmatprep.subr.mxu0 0.0
    %2904 = vmatpush1.msra.mxu0 %v1580
    %2905 = vmatprep.subr.mxu0 0.0
    %2906 = vmatpush1.msra.mxu0 %v1579
    %2907 = vmatprep.subr.mxu0 0.0
    %2908 = vmatpush1.msra.mxu0 %v1578
    %2909 = vmatprep.subr.mxu0 0.0
    %2910 = vmatpush2.msra.mxu0 0.0
    %2911 = vmatprep.subr.mxu0 0.0
    %2912 = vmatpush2.msra.mxu0 0.0
    %2913 = vmatprep.subr.mxu0 0.0
    %2914 = vmatpush2.msra.mxu0 0.0
    %2915 = vmatprep.subr.mxu0 0.0
    %2916 = vmatpush2.msra.mxu0 0.0
    %2917 = vmatprep.subr.mxu0 0.0
    %2918 = vmatpush2.msra.mxu0 0.0
    %2919 = vmatprep.subr.mxu0 0.0
    %2920 = vmatpush2.msra.mxu0 0.0
    %2921 = vmatprep.subr.mxu0 0.0
    %2922 = vmatpush2.msra.mxu0 0.0
    %2923 = vmatprep.subr.mxu0 0.0
    %2924 = vmatpush2.msra.mxu0 0.0
    %2925 = vmatprep.subr.mxu0 0.0
    %2926 = vmatpush2.msra.mxu0 0.0
    %2927 = vmatprep.subr.mxu0 0.0
    %2928 = vmatpush2.msra.mxu0 0.0
    %2929 = vmatprep.subr.mxu0 0.0
    %2930 = vmatpush2.msra.mxu0 0.0
    %2931 = vmatprep.subr.mxu0 0.0
    %2932 = vmatpush2.msra.mxu0 0.0
    %2933 = vmatprep.subr.mxu0 0.0
    %2934 = vmatpush2.msra.mxu0 0.0
    %2935 = vmatprep.subr.mxu0 0.0
    %2936 = vmatpush2.msra.mxu0 0.0
    %2937 = vmatprep.subr.mxu0 0.0
    %2938 = vmatpush2.msra.mxu0 0.0
    %2939 = vmatprep.subr.mxu0 0.0
    %2940 = vmatpush2.msra.mxu0 0.0
    %2941 = vmatprep.mubr.f32.mxu0 0.0
    %2942 = vmatmul.mubr.f32.gmra.mxu0 %v2875
    %v2943 = vpop.f32.mrf.mxu0
    %v2944 = vadd.f32 0.0, %v2943
    %v2945 = vpop.f32.mrf.mxu0
    %2946 = vdwg.mxu0
    %v2947 = vadd.f32 %v2152, %v2944
    %v2948 = vxor.u32 %v2947, 2147483648
    %v2949 = vmul.f32 %v2948, 1.442695
    %v2950 = vpow.pop %v2949
    %v2951 = vadd.f32 %v2950, 1.0
    %v2952 = vrcp.pop %v2951
    %v2953 = vmul.f32 1.0, %v2952
    %v2954 = vadd.f32 %v2944, %v2238
    %2956 = vrot.lane.b32.xlu0 %v2954, 64
    %v2957 = vpop.permute.xlu0 %2956
    %v2959 = vmul.f32 %v2953, %v2957
    %2961 = vrot.lane.b32.xlu0 %v2959, 64
    %v2962 = vpop.permute.xlu0 %2961
    %v2964 = vadd.f32 %v2152, %v2962
    %v2965 = vtanh.pop %v2964
    %v2966 = vsub.f32 1.0, %v2953
    %2968 = vrot.lane.b32.xlu0 %v2965, 96
    %v2969 = vpop.permute.xlu0 %2968
    %v2971 = vmul.f32 %v2966, %v2969
    %v2972 = vmul.f32 %v2953, %v2871
    %v2973 = vadd.f32 %v2971, %v2972
    %v2974 = vld [vmem:[#allocation10] sm:$0xff]
    %v2975 = vld [vmem:[#allocation10 + $0x8] sm:$0xff]
    %v2976 = vld [vmem:[#allocation10 + $0x10] sm:$0xff]
    %v2977 = vld [vmem:[#allocation10 + $0x18] sm:$0xff]
    %v2978 = vld [vmem:[%s10] sm:$0x1]
    %v2980 = vlaneseq
    %v2981 = vshrl.u32 %v2980, 7
    %v2982 = vsub.s32 0, %v2981
    %v2983 = vrot.slane %v2978, %v2982
    %2986 = vrot.lane.b32.xlu0 %v2973, 96
    %v2987 = vpop.permute.xlu0 %2986
    %v2988 = vsel %vm751, %v2987, 0
    %2990 = vmatprep.subr.mxu0 0.0
    %2991 = vmatpush1.msra.mxu0 0.0
    %2992 = vmatprep.subr.mxu0 0.0
    %2993 = vmatpush1.msra.mxu0 0.0
    %2994 = vmatprep.subr.mxu0 0.0
    %2995 = vmatpush1.msra.mxu0 0.0
    %2996 = vmatprep.subr.mxu0 0.0
    %2997 = vmatpush1.msra.mxu0 0.0
    %2998 = vmatprep.subr.mxu0 0.0
    %2999 = vmatpush1.msra.mxu0 0.0
    %3000 = vmatprep.subr.mxu0 0.0
    %3001 = vmatpush1.msra.mxu0 0.0
    %3002 = vmatprep.subr.mxu0 0.0
    %3003 = vmatpush1.msra.mxu0 0.0
    %3004 = vmatprep.subr.mxu0 0.0
    %3005 = vmatpush1.msra.mxu0 0.0
    %3006 = vmatprep.subr.mxu0 0.0
    %3007 = vmatpush1.msra.mxu0 0.0
    %3008 = vmatprep.subr.mxu0 0.0
    %3009 = vmatpush1.msra.mxu0 0.0
    %3010 = vmatprep.subr.mxu0 0.0
    %3011 = vmatpush1.msra.mxu0 0.0
    %3012 = vmatprep.subr.mxu0 0.0
    %3013 = vmatpush1.msra.mxu0 0.0
    %3014 = vmatprep.subr.mxu0 0.0
    %3015 = vmatpush1.msra.mxu0 %v2977
    %3016 = vmatprep.subr.mxu0 0.0
    %3017 = vmatpush1.msra.mxu0 %v2976
    %3018 = vmatprep.subr.mxu0 0.0
    %3019 = vmatpush1.msra.mxu0 %v2975
    %3020 = vmatprep.subr.mxu0 0.0
    %3021 = vmatpush1.msra.mxu0 %v2974
    %3022 = vmatprep.subr.mxu0 0.0
    %3023 = vmatpush2.msra.mxu0 0.0
    %3024 = vmatprep.subr.mxu0 0.0
    %3025 = vmatpush2.msra.mxu0 0.0
    %3026 = vmatprep.subr.mxu0 0.0
    %3027 = vmatpush2.msra.mxu0 0.0
    %3028 = vmatprep.subr.mxu0 0.0
    %3029 = vmatpush2.msra.mxu0 0.0
    %3030 = vmatprep.subr.mxu0 0.0
    %3031 = vmatpush2.msra.mxu0 0.0
    %3032 = vmatprep.subr.mxu0 0.0
    %3033 = vmatpush2.msra.mxu0 0.0
    %3034 = vmatprep.subr.mxu0 0.0
    %3035 = vmatpush2.msra.mxu0 0.0
    %3036 = vmatprep.subr.mxu0 0.0
    %3037 = vmatpush2.msra.mxu0 0.0
    %3038 = vmatprep.subr.mxu0 0.0
    %3039 = vmatpush2.msra.mxu0 0.0
    %3040 = vmatprep.subr.mxu0 0.0
    %3041 = vmatpush2.msra.mxu0 0.0
    %3042 = vmatprep.subr.mxu0 0.0
    %3043 = vmatpush2.msra.mxu0 0.0
    %3044 = vmatprep.subr.mxu0 0.0
    %3045 = vmatpush2.msra.mxu0 0.0
    %3046 = vmatprep.subr.mxu0 0.0
    %3047 = vmatpush2.msra.mxu0 0.0
    %3048 = vmatprep.subr.mxu0 0.0
    %3049 = vmatpush2.msra.mxu0 0.0
    %3050 = vmatprep.subr.mxu0 0.0
    %3051 = vmatpush2.msra.mxu0 0.0
    %3052 = vmatprep.subr.mxu0 0.0
    %3053 = vmatpush2.msra.mxu0 0.0
    %3054 = vmatprep.mubr.f32.mxu0 0.0
    %3055 = vmatmul.mubr.f32.gmra.mxu0 %v2988
    %v3056 = vpop.f32.mrf.mxu0
    %v3057 = vadd.f32 %v2983, %v3056
    %v3058 = vpop.f32.mrf.mxu0
    %3059 = vdwg.mxu0
    %v3060 = vmax.f32 %v3057, 0.0
    %v3061 = vld [vmem:[#allocation11] sm:$0xff]
    %v3062 = vld [vmem:[#allocation11 + $0x8] sm:$0xff]
    %v3063 = vld [vmem:[#allocation11 + $0x10] sm:$0xff]
    %v3064 = vld [vmem:[#allocation11 + $0x18] sm:$0xff]
    %v3065 = vld [vmem:[%s12] sm:$0x1]
    %v3067 = vlaneseq
    %v3068 = vshrl.u32 %v3067, 7
    %v3069 = vsub.s32 0, %v3068
    %v3070 = vrot.slane %v3065, %v3069
    %v3073 = vsel %vm751, %v3060, 0
    %3075 = vmatprep.subr.mxu0 0.0
    %3076 = vmatpush1.msra.mxu0 0.0
    %3077 = vmatprep.subr.mxu0 0.0
    %3078 = vmatpush1.msra.mxu0 0.0
    %3079 = vmatprep.subr.mxu0 0.0
    %3080 = vmatpush1.msra.mxu0 0.0
    %3081 = vmatprep.subr.mxu0 0.0
    %3082 = vmatpush1.msra.mxu0 0.0
    %3083 = vmatprep.subr.mxu0 0.0
    %3084 = vmatpush1.msra.mxu0 0.0
    %3085 = vmatprep.subr.mxu0 0.0
    %3086 = vmatpush1.msra.mxu0 0.0
    %3087 = vmatprep.subr.mxu0 0.0
    %3088 = vmatpush1.msra.mxu0 0.0
    %3089 = vmatprep.subr.mxu0 0.0
    %3090 = vmatpush1.msra.mxu0 0.0
    %3091 = vmatprep.subr.mxu0 0.0
    %3092 = vmatpush1.msra.mxu0 0.0
    %3093 = vmatprep.subr.mxu0 0.0
    %3094 = vmatpush1.msra.mxu0 0.0
    %3095 = vmatprep.subr.mxu0 0.0
    %3096 = vmatpush1.msra.mxu0 0.0
    %3097 = vmatprep.subr.mxu0 0.0
    %3098 = vmatpush1.msra.mxu0 0.0
    %3099 = vmatprep.subr.mxu0 0.0
    %3100 = vmatpush1.msra.mxu0 %v3064
    %3101 = vmatprep.subr.mxu0 0.0
    %3102 = vmatpush1.msra.mxu0 %v3063
    %3103 = vmatprep.subr.mxu0 0.0
    %3104 = vmatpush1.msra.mxu0 %v3062
    %3105 = vmatprep.subr.mxu0 0.0
    %3106 = vmatpush1.msra.mxu0 %v3061
    %3107 = vmatprep.subr.mxu0 0.0
    %3108 = vmatpush2.msra.mxu0 0.0
    %3109 = vmatprep.subr.mxu0 0.0
    %3110 = vmatpush2.msra.mxu0 0.0
    %3111 = vmatprep.subr.mxu0 0.0
    %3112 = vmatpush2.msra.mxu0 0.0
    %3113 = vmatprep.subr.mxu0 0.0
    %3114 = vmatpush2.msra.mxu0 0.0
    %3115 = vmatprep.subr.mxu0 0.0
    %3116 = vmatpush2.msra.mxu0 0.0
    %3117 = vmatprep.subr.mxu0 0.0
    %3118 = vmatpush2.msra.mxu0 0.0
    %3119 = vmatprep.subr.mxu0 0.0
    %3120 = vmatpush2.msra.mxu0 0.0
    %3121 = vmatprep.subr.mxu0 0.0
    %3122 = vmatpush2.msra.mxu0 0.0
    %3123 = vmatprep.subr.mxu0 0.0
    %3124 = vmatpush2.msra.mxu0 0.0
    %3125 = vmatprep.subr.mxu0 0.0
    %3126 = vmatpush2.msra.mxu0 0.0
    %3127 = vmatprep.subr.mxu0 0.0
    %3128 = vmatpush2.msra.mxu0 0.0
    %3129 = vmatprep.subr.mxu0 0.0
    %3130 = vmatpush2.msra.mxu0 0.0
    %3131 = vmatprep.subr.mxu0 0.0
    %3132 = vmatpush2.msra.mxu0 0.0
    %3133 = vmatprep.subr.mxu0 0.0
    %3134 = vmatpush2.msra.mxu0 0.0
    %3135 = vmatprep.subr.mxu0 0.0
    %3136 = vmatpush2.msra.mxu0 0.0
    %3137 = vmatprep.subr.mxu0 0.0
    %3138 = vmatpush2.msra.mxu0 0.0
    %3139 = vmatprep.mubr.f32.mxu0 0.0
    %3140 = vmatmul.mubr.f32.gmra.mxu0 %v3073
    %v3141 = vpop.f32.mrf.mxu0
    %v3142 = vadd.f32 %v3070, %v3141
    %v3143 = vpop.f32.mrf.mxu0
    %3144 = vdwg.mxu0
    %v3145 = vmax.f32 %v3142, 0.0
    %v3146 = vld [vmem:[%s13] sm:$0xff]
    %v3147 = vld [vmem:[%s13 + $0x8] sm:$0xff]
    %v3148 = vld [vmem:[%s13 + $0x10] sm:$0xff]
    %v3149 = vld [vmem:[%s13 + $0x18] sm:$0xff]
    %v3150 = vld [vmem:[%s14] sm:$0x1]
    %v3152 = vlaneseq
    %v3153 = vshrl.u32 %v3152, 7
    %v3154 = vsub.s32 0, %v3153
    %v3155 = vrot.slane %v3150, %v3154
    %v3158 = vsel %vm751, %v3145, 0
    %3160 = vmatprep.subr.mxu0 0.0
    %3161 = vmatpush1.msra.mxu0 0.0
    %3162 = vmatprep.subr.mxu0 0.0
    %3163 = vmatpush1.msra.mxu0 0.0
    %3164 = vmatprep.subr.mxu0 0.0
    %3165 = vmatpush1.msra.mxu0 0.0
    %3166 = vmatprep.subr.mxu0 0.0
    %3167 = vmatpush1.msra.mxu0 0.0
    %3168 = vmatprep.subr.mxu0 0.0
    %3169 = vmatpush1.msra.mxu0 0.0
    %3170 = vmatprep.subr.mxu0 0.0
    %3171 = vmatpush1.msra.mxu0 0.0
    %3172 = vmatprep.subr.mxu0 0.0
    %3173 = vmatpush1.msra.mxu0 0.0
    %3174 = vmatprep.subr.mxu0 0.0
    %3175 = vmatpush1.msra.mxu0 0.0
    %3176 = vmatprep.subr.mxu0 0.0
    %3177 = vmatpush1.msra.mxu0 0.0
    %3178 = vmatprep.subr.mxu0 0.0
    %3179 = vmatpush1.msra.mxu0 0.0
    %3180 = vmatprep.subr.mxu0 0.0
    %3181 = vmatpush1.msra.mxu0 0.0
    %3182 = vmatprep.subr.mxu0 0.0
    %3183 = vmatpush1.msra.mxu0 0.0
    %3184 = vmatprep.subr.mxu0 0.0
    %3185 = vmatpush1.msra.mxu0 %v3149
    %3186 = vmatprep.subr.mxu0 0.0
    %3187 = vmatpush1.msra.mxu0 %v3148
    %3188 = vmatprep.subr.mxu0 0.0
    %3189 = vmatpush1.msra.mxu0 %v3147
    %3190 = vmatprep.subr.mxu0 0.0
    %3191 = vmatpush1.msra.mxu0 %v3146
    %3192 = vmatprep.subr.mxu0 0.0
    %3193 = vmatpush2.msra.mxu0 0.0
    %3194 = vmatprep.subr.mxu0 0.0
    %3195 = vmatpush2.msra.mxu0 0.0
    %3196 = vmatprep.subr.mxu0 0.0
    %3197 = vmatpush2.msra.mxu0 0.0
    %3198 = vmatprep.subr.mxu0 0.0
    %3199 = vmatpush2.msra.mxu0 0.0
    %3200 = vmatprep.subr.mxu0 0.0
    %3201 = vmatpush2.msra.mxu0 0.0
    %3202 = vmatprep.subr.mxu0 0.0
    %3203 = vmatpush2.msra.mxu0 0.0
    %3204 = vmatprep.subr.mxu0 0.0
    %3205 = vmatpush2.msra.mxu0 0.0
    %3206 = vmatprep.subr.mxu0 0.0
    %3207 = vmatpush2.msra.mxu0 0.0
    %3208 = vmatprep.subr.mxu0 0.0
    %3209 = vmatpush2.msra.mxu0 0.0
    %3210 = vmatprep.subr.mxu0 0.0
    %3211 = vmatpush2.msra.mxu0 0.0
    %3212 = vmatprep.subr.mxu0 0.0
    %3213 = vmatpush2.msra.mxu0 0.0
    %3214 = vmatprep.subr.mxu0 0.0
    %3215 = vmatpush2.msra.mxu0 0.0
    %3216 = vmatprep.subr.mxu0 0.0
    %3217 = vmatpush2.msra.mxu0 0.0
    %3218 = vmatprep.subr.mxu0 0.0
    %3219 = vmatpush2.msra.mxu0 0.0
    %3220 = vmatprep.subr.mxu0 0.0
    %3221 = vmatpush2.msra.mxu0 0.0
    %3222 = vmatprep.subr.mxu0 0.0
    %3223 = vmatpush2.msra.mxu0 0.0
    %3224 = vmatprep.mubr.f32.mxu0 0.0
    %3225 = vmatmul.mubr.f32.gmra.mxu0 %v3158
    %v3226 = vpop.f32.mrf.mxu0
    %v3227 = vadd.f32 %v3155, %v3226
    %v3228 = vpop.f32.mrf.mxu0
    %3229 = vdwg.mxu0
    %vm3230 = vcmask 58368
    %3231 = vst.msk [vmem:[#allocation13] sm:$0x3] %vm3230, %v3227
    // Predicated region
    $region86: #{tpu_custom_call.1} parent=1 // pred_check
      _
    $region87: #{tpu_custom_call.1} parent=1 // pred_check_branch
      %3233 = sbr.rel (0) target = $region89
    $region88: #{tpu_custom_call.1} parent=1 // pred_region
      %s3235 = ssub.s32 32, 32
      %3236 = vsyncadd [#allocation4], %s3235
      %s3238 = sshll.u32 [#allocation13], 4
      %s3239 = int_to_ptr.vmem [resolvable:$true] %s3238
      %3241 = dma.vmem_to_hbm [thread:$0]  %s3239, 32, %s15, [#allocation4]
    $region89: #{tpu_custom_call.1} parent=1 // pred_fallthru
      _
    // Predicated region
    $region90: #{tpu_custom_call.1} parent=1 // pred_check
      _
    $region91: #{tpu_custom_call.1} parent=1 // pred_check_branch
      %3243 = sbr.rel (0) target = $region93
    $region92: #{tpu_custom_call.1} parent=1 // pred_region
      %3244 = dma.done [#allocation4], 32
    $region93: #{tpu_custom_call.1} parent=1 // pred_fallthru
      _
    %3245 = vsyncpa [#allocation3], 1
    %3246 = vsyncpa [#allocation6], 1
    %3247 = vsyncpa [#allocation9], 1
    %3248 = vsyncpa [#allocation12], 1
    %3249 = vsyncpa [#allocation4], 1

</llo_original>
